<compile_context>
chip_gen: v7x
topology: tpu7x:2x2x1
jax: 0.10.0
libtpu: 0.0.40
codegen_flags: <defaults>
</compile_context>

<pallas_src>
import math

import jax
import jax.numpy as jnp
from jax import lax
from jax.experimental import pallas as pl
from jax.experimental.pallas import tpu as pltpu

F32 = jnp.float32
LN_EPS = 1e-6
MATMUL_DTYPE = jnp.bfloat16   # MXU operand dtype (accumulation is always f32)
NEG = -1e9


# ----------------------------------------------------------------------------
# Weight re-layout (pure XLA, outside the kernel)
# ----------------------------------------------------------------------------
def _prep_params(params, n_head, d_k, d_v, mm_dtype):
    scale = 1.0 / math.sqrt(d_k)

    def mha(p):
        return (
            (p["wq"] * scale).astype(mm_dtype),                             # (dm, H*dk), 1/sqrt(dk) folded
            jnp.concatenate([p["wk"], p["wv"]], axis=1).astype(mm_dtype),   # (dm, H*dk + H*dv)
            p["wfc"].astype(mm_dtype),                                      # (H*dv, dm)
            p["gamma"].astype(F32),
            p["beta"].astype(F32),
        )

    f = params["pos_ffn"]
    return (mha(params["slf_attn"]) + mha(params["enc_attn"]) +
            (f["w1"].astype(mm_dtype), f["b1"].astype(F32),
             f["w2"].astype(mm_dtype), f["b2"].astype(F32),
             f["gamma"].astype(F32), f["beta"].astype(F32)))


# ----------------------------------------------------------------------------
# Fused decoder-layer kernel wrapper
# ----------------------------------------------------------------------------
def decoder_layer(dec_input, enc_output, slf_attn_mask, dec_enc_attn_mask, params, *,
                  n_head, d_k, d_v, slf_mask_is_causal=False,
                  matmul_dtype=MATMUL_DTYPE, attn_dtype=F32, return_attn=True):
    B, Lq, dm = dec_input.shape
    Lk = enc_output.shape[1]
    d_inner = params["pos_ffn"]["w1"].shape[1]

    # Query-row tiling: every sub-layer is row-wise in the queries, so the whole layer can be
    # computed one query tile at a time (K/V taken from the full dec/enc sequences).
    TQ = Lq if Lq <= 128 else 128
    assert Lq % TQ == 0, "Lq must be a multiple of the query tile size"
    n_q = Lq // TQ

    slf_mode = "causal" if slf_mask_is_causal else ("none" if slf_attn_mask is None else "array")
    enc_mode = "none" if dec_enc_attn_mask is None else "array"

    weights = _prep_params(params, n_head, d_k, d_v, matmul_dtype)
    mm = matmul_dtype

    # ------------------------- kernel (closure over static config) -------------------------
    def kernel(*refs):
        it = iter(refs)
        dec_ref = next(it)
        enc_ref = next(it)
        slf_bias_ref = next(it) if slf_mode == "array" else None
        de_bias_ref = next(it) if enc_mode == "array" else None
        (s_wq, s_wkv, s_wfc, s_g, s_b,
         e_wq, e_wkv, e_wfc, e_g, e_b,
         w1, b1, w2, b2, f_g, f_b) = [next(it) for _ in range(16)]
        out_ref = next(it)
        slf_attn_ref = next(it) if return_attn else None
        enc_attn_ref = next(it) if return_attn else None

        qi = pl.program_id(1)
        q0 = pl.multiple_of(qi * TQ, TQ)

        dec = dec_ref[0]                           # (Lq, dm) f32 : self-attn keys/values
        enc = enc_ref[0]                           # (Lk, dm) f32 : enc-attn keys/values
        dec_q = dec_ref[0, pl.ds(q0, TQ), :]       # (TQ, dm) f32 : query-row tile

        def layer_norm(x, g, b):
            mu = jnp.mean(x, axis=-1, keepdims=True)
            var = jnp.mean(jnp.square(x - mu), axis=-1, keepdims=True)
            return (x - mu) * lax.rsqrt(var + LN_EPS) * g[...] + b[...]

        def split_heads(x2d, d):                   # (L, H*d) -> (H, L, d)
            L = x2d.shape[0]
            return x2d.reshape(L, n_head, d).transpose(1, 0, 2)

        def attend(q_rows, kv_rows, wq, wkv, wfc, g, b, bias, residual):
            # Full MXU-width 2-D projections (no per-head matmuls, no activation duplication).
            q2 = jnp.dot(q_rows.astype(mm), wq[...], preferred_element_type=F32)    # (TQ, H*dk)
            kv2 = jnp.dot(kv_rows.astype(mm), wkv[...], preferred_element_type=F32)  # (Lkv, H*(dk+dv))
            q3 = split_heads(q2, d_k)                                # (H, TQ, dk)
            k3 = split_heads(kv2[:, :n_head * d_k], d_k)             # (H, Lkv, dk)
            v3 = split_heads(kv2[:, n_head * d_k:], d_v)             # (H, Lkv, dv)
            s = jnp.einsum('hqd,hkd->hqk', q3.astype(mm), k3.astype(mm),
                           preferred_element_type=F32)               # (H, TQ, Lkv)
            if bias is not None:
                s = s + bias[None, :, :]
            m = jnp.max(s, axis=-1, keepdims=True)
            e = jnp.exp(s - m)
            attn = e / jnp.sum(e, axis=-1, keepdims=True)            # exact softmax (maps are outputs)
            ctx = jnp.einsum('hqk,hkv->hqv', attn.astype(mm), v3.astype(mm),
                             preferred_element_type=F32)             # (H, TQ, dv)
            # Head-merge fused into the output projection: one K = H*dv full-depth matmul.
            ctx2 = ctx.transpose(1, 0, 2).reshape(TQ, n_head * d_v)
            o = jnp.dot(ctx2.astype(mm), wfc[...], preferred_element_type=F32) + residual
            return layer_norm(o, g, b), attn

        # ---- sub-layer 1: masked self-attention ------------------------------------------
        if slf_mode == "causal":
            row = q0 + lax.broadcasted_iota(jnp.int32, (TQ, Lq), 0)
            col = lax.broadcasted_iota(jnp.int32, (TQ, Lq), 1)
            slf_bias = jnp.where(col <= row, 0.0, NEG).astype(F32)
        elif slf_mode == "array":
            slf_bias = slf_bias_ref[0]
        else:
            slf_bias = None
        x1, a1 = attend(dec_q, dec, s_wq, s_wkv, s_wfc, s_g, s_b, slf_bias, dec_q)

        # ---- sub-layer 2: decoder-encoder attention --------------------------------------
        de_bias = de_bias_ref[0] if enc_mode == "array" else None
        x2, a2 = attend(x1, enc, e_wq, e_wkv, e_wfc, e_g, e_b, de_bias, x1)

        # ---- sub-layer 3: position-wise feed-forward -------------------------------------
        h = jnp.maximum(jnp.dot(x2.astype(mm), w1[...], preferred_element_type=F32) + b1[...], 0.0)
        y = jnp.dot(h.astype(mm), w2[...], preferred_element_type=F32) + b2[...] + x2
        out_ref[0] = layer_norm(y, f_g, f_b)
        if return_attn:
            slf_attn_ref[0] = a1.astype(slf_attn_ref.dtype)
            enc_attn_ref[0] = a2.astype(enc_attn_ref.dtype)

    # ------------------------------ specs & pallas_call ------------------------------------
    in_arrays = [dec_input.astype(F32), enc_output.astype(F32)]
    in_specs = [pl.BlockSpec((1, Lq, dm), lambda b, q: (b, 0, 0)),
                pl.BlockSpec((1, Lk, dm), lambda b, q: (b, 0, 0))]
    if slf_mode == "array":
        mask = jnp.broadcast_to(slf_attn_mask.astype(F32), (B, Lq, Lq))
        in_arrays.append((mask - 1.0) * 1e9)          # 0 = keep, -1e9 = masked
        in_specs.append(pl.BlockSpec((1, TQ, Lq), lambda b, q: (b, q, 0)))
    if enc_mode == "array":
        mask = jnp.broadcast_to(dec_enc_attn_mask.astype(F32), (B, Lq, Lk))
        in_arrays.append((mask - 1.0) * 1e9)
        in_specs.append(pl.BlockSpec((1, TQ, Lk), lambda b, q: (b, q, 0)))

    # Weights / LN params: whole array resident in VMEM (single copy, not double-buffered).
    in_arrays += list(weights)
    in_specs += [pl.BlockSpec(memory_space=pltpu.MemorySpace.VMEM) for _ in weights]

    out_shapes = [jax.ShapeDtypeStruct((B, Lq, dm), F32)]
    out_specs = [pl.BlockSpec((1, TQ, dm), lambda b, q: (b, q, 0))]
    if return_attn:
        out_shapes += [jax.ShapeDtypeStruct((B, n_head, Lq, Lq), attn_dtype),
                       jax.ShapeDtypeStruct((B, n_head, Lq, Lk), attn_dtype)]
        out_specs += [pl.BlockSpec((1, n_head, TQ, Lq), lambda b, q: (b, 0, q, 0)),
                      pl.BlockSpec((1, n_head, TQ, Lk), lambda b, q: (b, 0, q, 0))]

    # Scoped-VMEM budget from actual buffer sizes (defaults are only 16/32 MiB; v7x physical 64 MiB).
    def nbytes(shape, dtype):
        return math.prod(shape) * jnp.dtype(dtype).itemsize

    weight_bytes = sum(int(w.size) * w.dtype.itemsize for w in weights)
    io_bytes = 2 * (nbytes((Lq, dm), F32) + nbytes((Lk, dm), F32) + nbytes((TQ, dm), F32))
    if slf_mode == "array":
        io_bytes += 2 * nbytes((TQ, Lq), F32)
    if enc_mode == "array":
        io_bytes += 2 * nbytes((TQ, Lk), F32)
    if return_attn:
        io_bytes += 2 * (nbytes((n_head, TQ, Lq), attn_dtype) + nbytes((n_head, TQ, Lk), attn_dtype))
    interm_bytes = 4 * nbytes((n_head, TQ, max(Lq, Lk)), F32) + 2 * nbytes((TQ, d_inner), F32)
    vmem_limit = int(min(64 * 2 ** 20,
                         max(32 * 2 ** 20,
                             weight_bytes + io_bytes + 2 * interm_bytes + 4 * 2 ** 20)))

    outs = pl.pallas_call(
        kernel,
        out_shape=tuple(out_shapes),
        grid=(B, n_q),
        in_specs=in_specs,
        out_specs=tuple(out_specs),
        compiler_params=pltpu.CompilerParams(
            dimension_semantics=("parallel", "parallel"),
            vmem_limit_bytes=vmem_limit),
    )(*in_arrays)
    return outs if return_attn else outs[0]


# ----------------------------------------------------------------------------
# Pure-JAX f32 reference (mirrors the PyTorch module) for the correctness check
# ----------------------------------------------------------------------------
def _ref_layer_norm(x, gamma, beta):
    mean = jnp.mean(x, axis=-1, keepdims=True)
    var = jnp.mean((x - mean) ** 2, axis=-1, keepdims=True)
    return (x - mean) / jnp.sqrt(var + LN_EPS) * gamma + beta


def _ref_mha(qx, kx, vx, mask, p, n_head, d_k, d_v):
    B, Lq, dm = qx.shape
    Lk = kx.shape[1]
    q = (qx @ p["wq"]).reshape(B, Lq, n_head, d_k).transpose(0, 2, 1, 3)
    k = (kx @ p["wk"]).reshape(B, Lk, n_head, d_k).transpose(0, 2, 1, 3)
    v = (vx @ p["wv"]).reshape(B, Lk, n_head, d_v).transpose(0, 2, 1, 3)
    scores = jnp.einsum("bhqd,bhkd->bhqk", q / math.sqrt(d_k), k)
    scores = jnp.where(mask[:, None] == 0, -1e9, scores)
    attn = jax.nn.softmax(scores, axis=-1)
    o = jnp.einsum("bhqk,bhkd->bhqd", attn, v).transpose(0, 2, 1, 3).reshape(B, Lq, n_head * d_v)
    o = o @ p["wfc"] + qx
    return _ref_layer_norm(o, p["gamma"], p["beta"]), attn


def _ref_decoder_layer(dec_in, enc_out, slf_mask, de_mask, params, n_head, d_k, d_v):
    o, a1 = _ref_mha(dec_in, dec_in, dec_in, slf_mask, params["slf_attn"], n_head, d_k, d_v)
    o, a2 = _ref_mha(o, enc_out, enc_out, de_mask, params["enc_attn"], n_head, d_k, d_v)
    p = params["pos_ffn"]
    r = o
    h = jnp.maximum(o @ p["w1"] + p["b1"], 0.0)
    y = h @ p["w2"] + p["b2"] + r
    return _ref_layer_norm(y, p["gamma"], p["beta"]), a1, a2


# ----------------------------------------------------------------------------
# Deterministic parameter init (PyTorch layout: y = x @ W (+ b))
# ----------------------------------------------------------------------------
def init_params(key, d_model, d_inner, n_head, d_k, d_v):
    ks = jax.random.split(key, 16)

    def mha_params(k0, k1, k2, k3, k4, k5):
        s = 1.0 / math.sqrt(d_model)
        return {
            "wq": jax.random.normal(k0, (d_model, n_head * d_k), F32) * s,
            "wk": jax.random.normal(k1, (d_model, n_head * d_k), F32) * s,
            "wv": jax.random.normal(k2, (d_model, n_head * d_v), F32) * s,
            "wfc": jax.random.normal(k3, (n_head * d_v, d_model), F32) * (1.0 / math.sqrt(n_head * d_v)),
            "gamma": 1.0 + 0.1 * jax.random.normal(k4, (1, d_model), F32),
            "beta": 0.1 * jax.random.normal(k5, (1, d_model), F32),
        }

    return {
        "slf_attn": mha_params(*ks[0:6]),
        "enc_attn": mha_params(*ks[6:12]),
        "pos_ffn": {
            "w1": jax.random.normal(ks[12], (d_model, d_inner), F32) * (1.0 / math.sqrt(d_model)),
            "b1": 0.1 * jax.random.normal(ks[13], (1, d_inner), F32),
            "w2": jax.random.normal(ks[14], (d_inner, d_model), F32) * (1.0 / math.sqrt(d_inner)),
            "b2": 0.1 * jax.random.normal(ks[15], (1, d_model), F32),
            "gamma": jnp.ones((1, d_model), F32),
            "beta": jnp.zeros((1, d_model), F32),
        },
    }


# ----------------------------------------------------------------------------
if __name__ == "__main__":
    # Small shapes consistent with the module
    B, L_dec, L_enc = 2, 8, 8
    d_model, d_inner, n_head, d_k, d_v = 32, 64, 2, 8, 8

    key = jax.random.PRNGKey(0)
    k_in, k_enc, k_par = jax.random.split(key, 3)

    dec_input = jax.random.normal(k_in, (B, L_dec, d_model), F32)
    enc_output = jax.random.normal(k_enc, (B, L_enc, d_model), F32)

    # Self-attention: causal (subsequent) mask (1 = attend, 0 = masked).
    causal = jnp.tril(jnp.ones((L_dec, L_dec), F32))
    slf_attn_mask = jnp.broadcast_to(causal, (B, L_dec, L_dec))
    # Dec-enc mask: all ones (equivalent to mask=None in the PyTorch forward).
    dec_enc_attn_mask = jnp.ones((B, L_dec, L_enc), F32)

    params = init_params(k_par, d_model, d_inner, n_head, d_k, d_v)

    ref_out, ref_slf, ref_enc = _ref_decoder_layer(
        dec_input, enc_output, slf_attn_mask, dec_enc_attn_mask, params, n_head, d_k, d_v)

    # Fast path: causal bias generated in-kernel, dec-enc mask None (no bias add).
    dec_out, slf_attn, enc_attn = decoder_layer(
        dec_input, enc_output, None, None, params,
        n_head=n_head, d_k=d_k, d_v=d_v, slf_mask_is_causal=True)
    jax.block_until_ready((dec_out, slf_attn, enc_attn))

    assert dec_out.shape == (B, L_dec, d_model)
    assert slf_attn.shape == (B, n_head, L_dec, L_dec)
    assert enc_attn.shape == (B, n_head, L_dec, L_enc)
    assert jnp.allclose(dec_out, ref_out, atol=3e-2, rtol=3e-2)
    assert jnp.allclose(slf_attn, ref_slf, atol=3e-2, rtol=3e-2)
    assert jnp.allclose(enc_attn, ref_enc, atol=3e-2, rtol=3e-2)

    # General path: explicit array masks (matches PyTorch mask tensors).
    dec_out2, slf2, enc2 = decoder_layer(
        dec_input, enc_output, slf_attn_mask, dec_enc_attn_mask, params,
        n_head=n_head, d_k=d_k, d_v=d_v)
    jax.block_until_ready((dec_out2, slf2, enc2))
    assert jnp.allclose(dec_out2, ref_out, atol=3e-2, rtol=3e-2)
    assert jnp.allclose(slf2, ref_slf, atol=3e-2, rtol=3e-2)
    assert jnp.allclose(enc2, ref_enc, atol=3e-2, rtol=3e-2)

    print("KERNEL_OK")
</pallas_src>

<mosaic_0001>
module attributes {stable_mosaic.version = 11 : i64} {
  func.func @kernel(%arg0: i32, %arg1: i32, %arg2: memref<1x8x32xf32, #tpu.memory_space<vmem>>, %arg3: memref<1x8x32xf32, #tpu.memory_space<vmem>>, %arg4: memref<32x16xbf16, #tpu.memory_space<vmem>>, %arg5: memref<32x32xbf16, #tpu.memory_space<vmem>>, %arg6: memref<16x32xbf16, #tpu.memory_space<vmem>>, %arg7: memref<1x32xf32, #tpu.memory_space<vmem>>, %arg8: memref<1x32xf32, #tpu.memory_space<vmem>>, %arg9: memref<32x16xbf16, #tpu.memory_space<vmem>>, %arg10: memref<32x32xbf16, #tpu.memory_space<vmem>>, %arg11: memref<16x32xbf16, #tpu.memory_space<vmem>>, %arg12: memref<1x32xf32, #tpu.memory_space<vmem>>, %arg13: memref<1x32xf32, #tpu.memory_space<vmem>>, %arg14: memref<32x64xbf16, #tpu.memory_space<vmem>>, %arg15: memref<1x64xf32, #tpu.memory_space<vmem>>, %arg16: memref<64x32xbf16, #tpu.memory_space<vmem>>, %arg17: memref<1x32xf32, #tpu.memory_space<vmem>>, %arg18: memref<1x32xf32, #tpu.memory_space<vmem>>, %arg19: memref<1x32xf32, #tpu.memory_space<vmem>>, %arg20: memref<1x8x32xf32, #tpu.memory_space<vmem>>, %arg21: memref<1x2x8x8xf32, #tpu.memory_space<vmem>>, %arg22: memref<1x2x8x8xf32, #tpu.memory_space<vmem>>) attributes {dimension_semantics = [#tpu.dimension_semantics<parallel>, #tpu.dimension_semantics<parallel>], iteration_bounds = array<i64: 2, 1>, scalar_prefetch = 0 : i64, scratch_operands = 0 : i64, tpu.core_type = #tpu.core_type<tc>, window_params = [{transform_indices = @transform_0, window_bounds = array<i64: 1, 8, 32>}, {transform_indices = @transform_1, window_bounds = array<i64: 1, 8, 32>}, {pipeline_mode = #tpu.pipeline_mode<synchronous>, transform_indices = @transform_2, window_bounds = array<i64: 32, 16>}, {pipeline_mode = #tpu.pipeline_mode<synchronous>, transform_indices = @transform_3, window_bounds = array<i64: 32, 32>}, {pipeline_mode = #tpu.pipeline_mode<synchronous>, transform_indices = @transform_4, window_bounds = array<i64: 16, 32>}, {pipeline_mode = #tpu.pipeline_mode<synchronous>, transform_indices = @transform_5, window_bounds = array<i64: 1, 32>}, {pipeline_mode = #tpu.pipeline_mode<synchronous>, transform_indices = @transform_6, window_bounds = array<i64: 1, 32>}, {pipeline_mode = #tpu.pipeline_mode<synchronous>, transform_indices = @transform_7, window_bounds = array<i64: 32, 16>}, {pipeline_mode = #tpu.pipeline_mode<synchronous>, transform_indices = @transform_8, window_bounds = array<i64: 32, 32>}, {pipeline_mode = #tpu.pipeline_mode<synchronous>, transform_indices = @transform_9, window_bounds = array<i64: 16, 32>}, {pipeline_mode = #tpu.pipeline_mode<synchronous>, transform_indices = @transform_10, window_bounds = array<i64: 1, 32>}, {pipeline_mode = #tpu.pipeline_mode<synchronous>, transform_indices = @transform_11, window_bounds = array<i64: 1, 32>}, {pipeline_mode = #tpu.pipeline_mode<synchronous>, transform_indices = @transform_12, window_bounds = array<i64: 32, 64>}, {pipeline_mode = #tpu.pipeline_mode<synchronous>, transform_indices = @transform_13, window_bounds = array<i64: 1, 64>}, {pipeline_mode = #tpu.pipeline_mode<synchronous>, transform_indices = @transform_14, window_bounds = array<i64: 64, 32>}, {pipeline_mode = #tpu.pipeline_mode<synchronous>, transform_indices = @transform_15, window_bounds = array<i64: 1, 32>}, {pipeline_mode = #tpu.pipeline_mode<synchronous>, transform_indices = @transform_16, window_bounds = array<i64: 1, 32>}, {pipeline_mode = #tpu.pipeline_mode<synchronous>, transform_indices = @transform_17, window_bounds = array<i64: 1, 32>}, {transform_indices = @transform_18, window_bounds = array<i64: 1, 8, 32>}, {transform_indices = @transform_19, window_bounds = array<i64: 1, 2, 8, 8>}, {transform_indices = @transform_20, window_bounds = array<i64: 1, 2, 8, 8>}]} {
    %c8_i32 = arith.constant 8 : i32
    %0 = arith.muli %arg1, %c8_i32 : i32
    %1 = tpu.assume_multiple %0, 8 : i32
    %c0 = arith.constant 0 : index
    %c0_0 = arith.constant 0 : index
    %c0_1 = arith.constant 0 : index
    %2 = vector.load %arg2[%c0, %c0_0, %c0_1] : memref<1x8x32xf32, #tpu.memory_space<vmem>>, vector<1x8x32xf32>
    %3 = vector.shape_cast %2 : vector<1x8x32xf32> to vector<8x32xf32>
    %c0_2 = arith.constant 0 : index
    %c0_3 = arith.constant 0 : index
    %c0_4 = arith.constant 0 : index
    %4 = vector.load %arg3[%c0_2, %c0_3, %c0_4] : memref<1x8x32xf32, #tpu.memory_space<vmem>>, vector<1x8x32xf32>
    %5 = vector.shape_cast %4 : vector<1x8x32xf32> to vector<8x32xf32>
    %c0_5 = arith.constant 0 : index
    %6 = arith.index_cast %1 : i32 to index
    %c0_6 = arith.constant 0 : index
    %7 = vector.load %arg2[%c0_5, %6, %c0_6] : memref<1x8x32xf32, #tpu.memory_space<vmem>>, vector<1x8x32xf32>
    %8 = vector.shape_cast %7 : vector<1x8x32xf32> to vector<8x32xf32>
    %9 = tpu.iota {dimensions = array<i32: 0>} : vector<8x8xi32>
    %10 = vector.broadcast %1 : i32 to vector<8x8xi32>
    %11 = arith.addi %10, %9 : vector<8x8xi32>
    %12 = tpu.iota {dimensions = array<i32: 1>} : vector<8x8xi32>
    %13 = arith.cmpi sle, %12, %11 : vector<8x8xi32>
    %cst = arith.constant 0.000000e+00 : f32
    %cst_7 = arith.constant -1.000000e+09 : f32
    %14 = vector.broadcast %cst : f32 to vector<8x8xf32>
    %15 = vector.broadcast %cst_7 : f32 to vector<8x8xf32>
    %16 = arith.select %13, %14, %15 : vector<8x8xi1>, vector<8x8xf32>
    %17 = arith.truncf %8 : vector<8x32xf32> to vector<8x32xbf16>
    %c0_8 = arith.constant 0 : index
    %c0_9 = arith.constant 0 : index
    %18 = vector.load %arg4[%c0_8, %c0_9] : memref<32x16xbf16, #tpu.memory_space<vmem>>, vector<32x16xbf16>
    %cst_10 = arith.constant dense<0.000000e+00> : vector<8x16xf32>
    %19 = tpu.matmul %17, %18, %cst_10 {dimension_numbers = #tpu.dot_dimension_numbers<[1], [0], [0], [1], [0, 0, 1, 1], [], []>} : vector<8x32xbf16>, vector<32x16xbf16>, vector<8x16xf32> -> vector<8x16xf32>
    %20 = arith.truncf %3 : vector<8x32xf32> to vector<8x32xbf16>
    %c0_11 = arith.constant 0 : index
    %c0_12 = arith.constant 0 : index
    %21 = vector.load %arg5[%c0_11, %c0_12] : memref<32x32xbf16, #tpu.memory_space<vmem>>, vector<32x32xbf16>
    %cst_13 = arith.constant dense<0.000000e+00> : vector<8x32xf32>
    %22 = tpu.matmul %20, %21, %cst_13 {dimension_numbers = #tpu.dot_dimension_numbers<[1], [0], [0], [1], [0, 0, 1, 1], [], []>} : vector<8x32xbf16>, vector<32x32xbf16>, vector<8x32xf32> -> vector<8x32xf32>
    %23 = vector.shape_cast %19 : vector<8x16xf32> to vector<8x2x8xf32>
    %24 = tpu.transpose %23, [1, 0, 2] : vector<8x2x8xf32> -> vector<2x8x8xf32>
    %25 = vector.extract_strided_slice %22 {offsets = [0, 0], sizes = [8, 16], strides = [1, 1]} : vector<8x32xf32> to vector<8x16xf32>
    %26 = vector.shape_cast %25 : vector<8x16xf32> to vector<8x2x8xf32>
    %27 = tpu.transpose %26, [1, 0, 2] : vector<8x2x8xf32> -> vector<2x8x8xf32>
    %28 = vector.extract_strided_slice %22 {offsets = [0, 16], sizes = [8, 16], strides = [1, 1]} : vector<8x32xf32> to vector<8x16xf32>
    %29 = vector.shape_cast %28 : vector<8x16xf32> to vector<8x2x8xf32>
    %30 = tpu.transpose %29, [1, 0, 2] : vector<8x2x8xf32> -> vector<2x8x8xf32>
    %31 = arith.truncf %24 : vector<2x8x8xf32> to vector<2x8x8xbf16>
    %32 = arith.truncf %27 : vector<2x8x8xf32> to vector<2x8x8xbf16>
    "tpu.trace_start"() <{level = 10 : i32, message = "hqd,hkd->hqk"}> : () -> ()
    %cst_14 = arith.constant dense<0.000000e+00> : vector<2x8x8xf32>
    %33 = tpu.matmul %31, %32, %cst_14 {dimension_numbers = #tpu.dot_dimension_numbers<[2], [2], [1], [1], [0, 0, 0, 1, 1, 1], [0], [0]>} : vector<2x8x8xbf16>, vector<2x8x8xbf16>, vector<2x8x8xf32> -> vector<2x8x8xf32>
    "tpu.trace_stop"() : () -> ()
    %34 = vector.shape_cast %16 : vector<8x8xf32> to vector<1x8x8xf32>
    %35 = vector.broadcast %34 : vector<1x8x8xf32> to vector<2x8x8xf32>
    %36 = arith.addf %33, %35 : vector<2x8x8xf32>
    %cst_15 = arith.constant dense<0xFF800000> : vector<2x8xf32>
    %37 = vector.multi_reduction <maximumf>, %36, %cst_15 [2] : vector<2x8x8xf32> to vector<2x8xf32>
    %38 = vector.shape_cast %37 : vector<2x8xf32> to vector<2x8x1xf32>
    %39 = vector.broadcast %38 : vector<2x8x1xf32> to vector<2x8x8xf32>
    %40 = arith.subf %36, %39 : vector<2x8x8xf32>
    %41 = math.exp %40 : vector<2x8x8xf32>
    %cst_16 = arith.constant dense<0.000000e+00> : vector<2x8xf32>
    %42 = vector.multi_reduction <add>, %41, %cst_16 [2] : vector<2x8x8xf32> to vector<2x8xf32>
    %43 = vector.shape_cast %42 : vector<2x8xf32> to vector<2x8x1xf32>
    %44 = vector.broadcast %43 : vector<2x8x1xf32> to vector<2x8x8xf32>
    %45 = arith.divf %41, %44 : vector<2x8x8xf32>
    %46 = arith.truncf %45 : vector<2x8x8xf32> to vector<2x8x8xbf16>
    %47 = arith.truncf %30 : vector<2x8x8xf32> to vector<2x8x8xbf16>
    "tpu.trace_start"() <{level = 10 : i32, message = "hqk,hkv->hqv"}> : () -> ()
    %cst_17 = arith.constant dense<0.000000e+00> : vector<2x8x8xf32>
    %48 = tpu.matmul %46, %47, %cst_17 {dimension_numbers = #tpu.dot_dimension_numbers<[2], [1], [1], [2], [0, 0, 0, 1, 1, 2], [0], [0]>} : vector<2x8x8xbf16>, vector<2x8x8xbf16>, vector<2x8x8xf32> -> vector<2x8x8xf32>
    "tpu.trace_stop"() : () -> ()
    %49 = tpu.transpose %48, [1, 0, 2] : vector<2x8x8xf32> -> vector<8x2x8xf32>
    %50 = vector.shape_cast %49 : vector<8x2x8xf32> to vector<8x16xf32>
    %51 = arith.truncf %50 : vector<8x16xf32> to vector<8x16xbf16>
    %c0_18 = arith.constant 0 : index
    %c0_19 = arith.constant 0 : index
    %52 = vector.load %arg6[%c0_18, %c0_19] : memref<16x32xbf16, #tpu.memory_space<vmem>>, vector<16x32xbf16>
    %cst_20 = arith.constant dense<0.000000e+00> : vector<8x32xf32>
    %53 = tpu.matmul %51, %52, %cst_20 {dimension_numbers = #tpu.dot_dimension_numbers<[1], [0], [0], [1], [0, 0, 1, 1], [], []>} : vector<8x16xbf16>, vector<16x32xbf16>, vector<8x32xf32> -> vector<8x32xf32>
    %54 = arith.addf %53, %8 : vector<8x32xf32>
    %cst_21 = arith.constant dense<0.000000e+00> : vector<8xf32>
    %55 = vector.multi_reduction <add>, %54, %cst_21 [1] : vector<8x32xf32> to vector<8xf32>
    %56 = vector.shape_cast %55 : vector<8xf32> to vector<8x1xf32>
    %cst_22 = arith.constant 3.200000e+01 : f32
    %57 = vector.broadcast %cst_22 : f32 to vector<8x1xf32>
    %58 = arith.divf %56, %57 : vector<8x1xf32>
    %59 = vector.broadcast %58 : vector<8x1xf32> to vector<8x32xf32>
    %60 = arith.subf %54, %59 : vector<8x32xf32>
    %61 = arith.mulf %60, %60 : vector<8x32xf32>
    %cst_23 = arith.constant dense<0.000000e+00> : vector<8xf32>
    %62 = vector.multi_reduction <add>, %61, %cst_23 [1] : vector<8x32xf32> to vector<8xf32>
    %63 = vector.shape_cast %62 : vector<8xf32> to vector<8x1xf32>
    %cst_24 = arith.constant 3.200000e+01 : f32
    %64 = vector.broadcast %cst_24 : f32 to vector<8x1xf32>
    %65 = arith.divf %63, %64 : vector<8x1xf32>
    %66 = vector.broadcast %58 : vector<8x1xf32> to vector<8x32xf32>
    %67 = arith.subf %54, %66 : vector<8x32xf32>
    %cst_25 = arith.constant 9.99999997E-7 : f32
    %68 = vector.broadcast %cst_25 : f32 to vector<8x1xf32>
    %69 = arith.addf %65, %68 : vector<8x1xf32>
    %70 = math.rsqrt %69 : vector<8x1xf32>
    %71 = vector.broadcast %70 : vector<8x1xf32> to vector<8x32xf32>
    %72 = arith.mulf %67, %71 : vector<8x32xf32>
    %c0_26 = arith.constant 0 : index
    %c0_27 = arith.constant 0 : index
    %73 = vector.load %arg7[%c0_26, %c0_27] : memref<1x32xf32, #tpu.memory_space<vmem>>, vector<1x32xf32>
    %74 = vector.broadcast %73 : vector<1x32xf32> to vector<8x32xf32>
    %75 = arith.mulf %72, %74 : vector<8x32xf32>
    %c0_28 = arith.constant 0 : index
    %c0_29 = arith.constant 0 : index
    %76 = vector.load %arg8[%c0_28, %c0_29] : memref<1x32xf32, #tpu.memory_space<vmem>>, vector<1x32xf32>
    %77 = vector.broadcast %76 : vector<1x32xf32> to vector<8x32xf32>
    %78 = arith.addf %75, %77 : vector<8x32xf32>
    %79 = arith.truncf %78 : vector<8x32xf32> to vector<8x32xbf16>
    %c0_30 = arith.constant 0 : index
    %c0_31 = arith.constant 0 : index
    %80 = vector.load %arg9[%c0_30, %c0_31] : memref<32x16xbf16, #tpu.memory_space<vmem>>, vector<32x16xbf16>
    %cst_32 = arith.constant dense<0.000000e+00> : vector<8x16xf32>
    %81 = tpu.matmul %79, %80, %cst_32 {dimension_numbers = #tpu.dot_dimension_numbers<[1], [0], [0], [1], [0, 0, 1, 1], [], []>} : vector<8x32xbf16>, vector<32x16xbf16>, vector<8x16xf32> -> vector<8x16xf32>
    %82 = arith.truncf %5 : vector<8x32xf32> to vector<8x32xbf16>
    %c0_33 = arith.constant 0 : index
    %c0_34 = arith.constant 0 : index
    %83 = vector.load %arg10[%c0_33, %c0_34] : memref<32x32xbf16, #tpu.memory_space<vmem>>, vector<32x32xbf16>
    %cst_35 = arith.constant dense<0.000000e+00> : vector<8x32xf32>
    %84 = tpu.matmul %82, %83, %cst_35 {dimension_numbers = #tpu.dot_dimension_numbers<[1], [0], [0], [1], [0, 0, 1, 1], [], []>} : vector<8x32xbf16>, vector<32x32xbf16>, vector<8x32xf32> -> vector<8x32xf32>
    %85 = vector.shape_cast %81 : vector<8x16xf32> to vector<8x2x8xf32>
    %86 = tpu.transpose %85, [1, 0, 2] : vector<8x2x8xf32> -> vector<2x8x8xf32>
    %87 = vector.extract_strided_slice %84 {offsets = [0, 0], sizes = [8, 16], strides = [1, 1]} : vector<8x32xf32> to vector<8x16xf32>
    %88 = vector.shape_cast %87 : vector<8x16xf32> to vector<8x2x8xf32>
    %89 = tpu.transpose %88, [1, 0, 2] : vector<8x2x8xf32> -> vector<2x8x8xf32>
    %90 = vector.extract_strided_slice %84 {offsets = [0, 16], sizes = [8, 16], strides = [1, 1]} : vector<8x32xf32> to vector<8x16xf32>
    %91 = vector.shape_cast %90 : vector<8x16xf32> to vector<8x2x8xf32>
    %92 = tpu.transpose %91, [1, 0, 2] : vector<8x2x8xf32> -> vector<2x8x8xf32>
    %93 = arith.truncf %86 : vector<2x8x8xf32> to vector<2x8x8xbf16>
    %94 = arith.truncf %89 : vector<2x8x8xf32> to vector<2x8x8xbf16>
    "tpu.trace_start"() <{level = 10 : i32, message = "hqd,hkd->hqk"}> : () -> ()
    %cst_36 = arith.constant dense<0.000000e+00> : vector<2x8x8xf32>
    %95 = tpu.matmul %93, %94, %cst_36 {dimension_numbers = #tpu.dot_dimension_numbers<[2], [2], [1], [1], [0, 0, 0, 1, 1, 1], [0], [0]>} : vector<2x8x8xbf16>, vector<2x8x8xbf16>, vector<2x8x8xf32> -> vector<2x8x8xf32>
    "tpu.trace_stop"() : () -> ()
    %cst_37 = arith.constant dense<0xFF800000> : vector<2x8xf32>
    %96 = vector.multi_reduction <maximumf>, %95, %cst_37 [2] : vector<2x8x8xf32> to vector<2x8xf32>
    %97 = vector.shape_cast %96 : vector<2x8xf32> to vector<2x8x1xf32>
    %98 = vector.broadcast %97 : vector<2x8x1xf32> to vector<2x8x8xf32>
    %99 = arith.subf %95, %98 : vector<2x8x8xf32>
    %100 = math.exp %99 : vector<2x8x8xf32>
    %cst_38 = arith.constant dense<0.000000e+00> : vector<2x8xf32>
    %101 = vector.multi_reduction <add>, %100, %cst_38 [2] : vector<2x8x8xf32> to vector<2x8xf32>
    %102 = vector.shape_cast %101 : vector<2x8xf32> to vector<2x8x1xf32>
    %103 = vector.broadcast %102 : vector<2x8x1xf32> to vector<2x8x8xf32>
    %104 = arith.divf %100, %103 : vector<2x8x8xf32>
    %105 = arith.truncf %104 : vector<2x8x8xf32> to vector<2x8x8xbf16>
    %106 = arith.truncf %92 : vector<2x8x8xf32> to vector<2x8x8xbf16>
    "tpu.trace_start"() <{level = 10 : i32, message = "hqk,hkv->hqv"}> : () -> ()
    %cst_39 = arith.constant dense<0.000000e+00> : vector<2x8x8xf32>
    %107 = tpu.matmul %105, %106, %cst_39 {dimension_numbers = #tpu.dot_dimension_numbers<[2], [1], [1], [2], [0, 0, 0, 1, 1, 2], [0], [0]>} : vector<2x8x8xbf16>, vector<2x8x8xbf16>, vector<2x8x8xf32> -> vector<2x8x8xf32>
    "tpu.trace_stop"() : () -> ()
    %108 = tpu.transpose %107, [1, 0, 2] : vector<2x8x8xf32> -> vector<8x2x8xf32>
    %109 = vector.shape_cast %108 : vector<8x2x8xf32> to vector<8x16xf32>
    %110 = arith.truncf %109 : vector<8x16xf32> to vector<8x16xbf16>
    %c0_40 = arith.constant 0 : index
    %c0_41 = arith.constant 0 : index
    %111 = vector.load %arg11[%c0_40, %c0_41] : memref<16x32xbf16, #tpu.memory_space<vmem>>, vector<16x32xbf16>
    %cst_42 = arith.constant dense<0.000000e+00> : vector<8x32xf32>
    %112 = tpu.matmul %110, %111, %cst_42 {dimension_numbers = #tpu.dot_dimension_numbers<[1], [0], [0], [1], [0, 0, 1, 1], [], []>} : vector<8x16xbf16>, vector<16x32xbf16>, vector<8x32xf32> -> vector<8x32xf32>
    %113 = arith.addf %112, %78 : vector<8x32xf32>
    %cst_43 = arith.constant dense<0.000000e+00> : vector<8xf32>
    %114 = vector.multi_reduction <add>, %113, %cst_43 [1] : vector<8x32xf32> to vector<8xf32>
    %115 = vector.shape_cast %114 : vector<8xf32> to vector<8x1xf32>
    %cst_44 = arith.constant 3.200000e+01 : f32
    %116 = vector.broadcast %cst_44 : f32 to vector<8x1xf32>
    %117 = arith.divf %115, %116 : vector<8x1xf32>
    %118 = vector.broadcast %117 : vector<8x1xf32> to vector<8x32xf32>
    %119 = arith.subf %113, %118 : vector<8x32xf32>
    %120 = arith.mulf %119, %119 : vector<8x32xf32>
    %cst_45 = arith.constant dense<0.000000e+00> : vector<8xf32>
    %121 = vector.multi_reduction <add>, %120, %cst_45 [1] : vector<8x32xf32> to vector<8xf32>
    %122 = vector.shape_cast %121 : vector<8xf32> to vector<8x1xf32>
    %cst_46 = arith.constant 3.200000e+01 : f32
    %123 = vector.broadcast %cst_46 : f32 to vector<8x1xf32>
    %124 = arith.divf %122, %123 : vector<8x1xf32>
    %125 = vector.broadcast %117 : vector<8x1xf32> to vector<8x32xf32>
    %126 = arith.subf %113, %125 : vector<8x32xf32>
    %cst_47 = arith.constant 9.99999997E-7 : f32
    %127 = vector.broadcast %cst_47 : f32 to vector<8x1xf32>
    %128 = arith.addf %124, %127 : vector<8x1xf32>
    %129 = math.rsqrt %128 : vector<8x1xf32>
    %130 = vector.broadcast %129 : vector<8x1xf32> to vector<8x32xf32>
    %131 = arith.mulf %126, %130 : vector<8x32xf32>
    %c0_48 = arith.constant 0 : index
    %c0_49 = arith.constant 0 : index
    %132 = vector.load %arg12[%c0_48, %c0_49] : memref<1x32xf32, #tpu.memory_space<vmem>>, vector<1x32xf32>
    %133 = vector.broadcast %132 : vector<1x32xf32> to vector<8x32xf32>
    %134 = arith.mulf %131, %133 : vector<8x32xf32>
    %c0_50 = arith.constant 0 : index
    %c0_51 = arith.constant 0 : index
    %135 = vector.load %arg13[%c0_50, %c0_51] : memref<1x32xf32, #tpu.memory_space<vmem>>, vector<1x32xf32>
    %136 = vector.broadcast %135 : vector<1x32xf32> to vector<8x32xf32>
    %137 = arith.addf %134, %136 : vector<8x32xf32>
    %138 = arith.truncf %137 : vector<8x32xf32> to vector<8x32xbf16>
    %c0_52 = arith.constant 0 : index
    %c0_53 = arith.constant 0 : index
    %139 = vector.load %arg14[%c0_52, %c0_53] : memref<32x64xbf16, #tpu.memory_space<vmem>>, vector<32x64xbf16>
    %cst_54 = arith.constant dense<0.000000e+00> : vector<8x64xf32>
    %140 = tpu.matmul %138, %139, %cst_54 {dimension_numbers = #tpu.dot_dimension_numbers<[1], [0], [0], [1], [0, 0, 1, 1], [], []>} : vector<8x32xbf16>, vector<32x64xbf16>, vector<8x64xf32> -> vector<8x64xf32>
    %c0_55 = arith.constant 0 : index
    %c0_56 = arith.constant 0 : index
    %141 = vector.load %arg15[%c0_55, %c0_56] : memref<1x64xf32, #tpu.memory_space<vmem>>, vector<1x64xf32>
    %142 = vector.broadcast %141 : vector<1x64xf32> to vector<8x64xf32>
    %143 = arith.addf %140, %142 : vector<8x64xf32>
    %cst_57 = arith.constant 0.000000e+00 : f32
    %144 = vector.broadcast %cst_57 : f32 to vector<8x64xf32>
    %145 = arith.maximumf %143, %144 : vector<8x64xf32>
    %146 = arith.truncf %145 : vector<8x64xf32> to vector<8x64xbf16>
    %c0_58 = arith.constant 0 : index
    %c0_59 = arith.constant 0 : index
    %147 = vector.load %arg16[%c0_58, %c0_59] : memref<64x32xbf16, #tpu.memory_space<vmem>>, vector<64x32xbf16>
    %cst_60 = arith.constant dense<0.000000e+00> : vector<8x32xf32>
    %148 = tpu.matmul %146, %147, %cst_60 {dimension_numbers = #tpu.dot_dimension_numbers<[1], [0], [0], [1], [0, 0, 1, 1], [], []>} : vector<8x64xbf16>, vector<64x32xbf16>, vector<8x32xf32> -> vector<8x32xf32>
    %c0_61 = arith.constant 0 : index
    %c0_62 = arith.constant 0 : index
    %149 = vector.load %arg17[%c0_61, %c0_62] : memref<1x32xf32, #tpu.memory_space<vmem>>, vector<1x32xf32>
    %150 = vector.broadcast %149 : vector<1x32xf32> to vector<8x32xf32>
    %151 = arith.addf %148, %150 : vector<8x32xf32>
    %152 = arith.addf %151, %137 : vector<8x32xf32>
    %cst_63 = arith.constant dense<0.000000e+00> : vector<8xf32>
    %153 = vector.multi_reduction <add>, %152, %cst_63 [1] : vector<8x32xf32> to vector<8xf32>
    %154 = vector.shape_cast %153 : vector<8xf32> to vector<8x1xf32>
    %cst_64 = arith.constant 3.200000e+01 : f32
    %155 = vector.broadcast %cst_64 : f32 to vector<8x1xf32>
    %156 = arith.divf %154, %155 : vector<8x1xf32>
    %157 = vector.broadcast %156 : vector<8x1xf32> to vector<8x32xf32>
    %158 = arith.subf %152, %157 : vector<8x32xf32>
    %159 = arith.mulf %158, %158 : vector<8x32xf32>
    %cst_65 = arith.constant dense<0.000000e+00> : vector<8xf32>
    %160 = vector.multi_reduction <add>, %159, %cst_65 [1] : vector<8x32xf32> to vector<8xf32>
    %161 = vector.shape_cast %160 : vector<8xf32> to vector<8x1xf32>
    %cst_66 = arith.constant 3.200000e+01 : f32
    %162 = vector.broadcast %cst_66 : f32 to vector<8x1xf32>
    %163 = arith.divf %161, %162 : vector<8x1xf32>
    %164 = vector.broadcast %156 : vector<8x1xf32> to vector<8x32xf32>
    %165 = arith.subf %152, %164 : vector<8x32xf32>
    %cst_67 = arith.constant 9.99999997E-7 : f32
    %166 = vector.broadcast %cst_67 : f32 to vector<8x1xf32>
    %167 = arith.addf %163, %166 : vector<8x1xf32>
    %168 = math.rsqrt %167 : vector<8x1xf32>
    %169 = vector.broadcast %168 : vector<8x1xf32> to vector<8x32xf32>
    %170 = arith.mulf %165, %169 : vector<8x32xf32>
    %c0_68 = arith.constant 0 : index
    %c0_69 = arith.constant 0 : index
    %171 = vector.load %arg18[%c0_68, %c0_69] : memref<1x32xf32, #tpu.memory_space<vmem>>, vector<1x32xf32>
    %172 = vector.broadcast %171 : vector<1x32xf32> to vector<8x32xf32>
    %173 = arith.mulf %170, %172 : vector<8x32xf32>
    %c0_70 = arith.constant 0 : index
    %c0_71 = arith.constant 0 : index
    %174 = vector.load %arg19[%c0_70, %c0_71] : memref<1x32xf32, #tpu.memory_space<vmem>>, vector<1x32xf32>
    %175 = vector.broadcast %174 : vector<1x32xf32> to vector<8x32xf32>
    %176 = arith.addf %173, %175 : vector<8x32xf32>
    %c0_72 = arith.constant 0 : index
    %c0_73 = arith.constant 0 : index
    %c0_74 = arith.constant 0 : index
    %177 = vector.load %arg20[%c0_72, %c0_73, %c0_74] : memref<1x8x32xf32, #tpu.memory_space<vmem>>, vector<1x8x32xf32>
    %178 = vector.shape_cast %177 : vector<1x8x32xf32> to vector<8x32xf32>
    %179 = vector.shape_cast %176 : vector<8x32xf32> to vector<1x8x32xf32>
    tpu.vector_store %arg20[%c0_72, %c0_73, %c0_74], %179 {strides = array<i32>} : memref<1x8x32xf32, #tpu.memory_space<vmem>>, vector<1x8x32xf32>,
    %c0_75 = arith.constant 0 : index
    %c0_76 = arith.constant 0 : index
    %c0_77 = arith.constant 0 : index
    %c0_78 = arith.constant 0 : index
    %180 = vector.load %arg21[%c0_75, %c0_76, %c0_77, %c0_78] : memref<1x2x8x8xf32, #tpu.memory_space<vmem>>, vector<1x2x8x8xf32>
    %181 = vector.shape_cast %180 : vector<1x2x8x8xf32> to vector<2x8x8xf32>
    %182 = vector.shape_cast %45 : vector<2x8x8xf32> to vector<1x2x8x8xf32>
    tpu.vector_store %arg21[%c0_75, %c0_76, %c0_77, %c0_78], %182 {strides = array<i32>} : memref<1x2x8x8xf32, #tpu.memory_space<vmem>>, vector<1x2x8x8xf32>,
    %c0_79 = arith.constant 0 : index
    %c0_80 = arith.constant 0 : index
    %c0_81 = arith.constant 0 : index
    %c0_82 = arith.constant 0 : index
    %183 = vector.load %arg22[%c0_79, %c0_80, %c0_81, %c0_82] : memref<1x2x8x8xf32, #tpu.memory_space<vmem>>, vector<1x2x8x8xf32>
    %184 = vector.shape_cast %183 : vector<1x2x8x8xf32> to vector<2x8x8xf32>
    %185 = vector.shape_cast %104 : vector<2x8x8xf32> to vector<1x2x8x8xf32>
    tpu.vector_store %arg22[%c0_79, %c0_80, %c0_81, %c0_82], %185 {strides = array<i32>} : memref<1x2x8x8xf32, #tpu.memory_space<vmem>>, vector<1x2x8x8xf32>,
    return
  }
  func.func @transform_0(%arg0: i32, %arg1: i32) -> (i32, i32, i32) {
    %c0_i32 = arith.constant 0 : i32
    %c0_i32_0 = arith.constant 0 : i32
    %c0_i32_1 = arith.constant 0 : i32
    return %arg0, %c0_i32, %c0_i32_0 : i32, i32, i32
  }
  func.func @transform_1(%arg0: i32, %arg1: i32) -> (i32, i32, i32) {
    %c0_i32 = arith.constant 0 : i32
    %c0_i32_0 = arith.constant 0 : i32
    %c0_i32_1 = arith.constant 0 : i32
    return %arg0, %c0_i32, %c0_i32_0 : i32, i32, i32
  }
  func.func @transform_2(%arg0: i32, %arg1: i32) -> (i32, i32) {
    %c0_i32 = arith.constant 0 : i32
    %c0_i32_0 = arith.constant 0 : i32
    %c0_i32_1 = arith.constant 0 : i32
    return %c0_i32, %c0_i32_0 : i32, i32
  }
  func.func @transform_3(%arg0: i32, %arg1: i32) -> (i32, i32) {
    %c0_i32 = arith.constant 0 : i32
    %c0_i32_0 = arith.constant 0 : i32
    %c0_i32_1 = arith.constant 0 : i32
    return %c0_i32, %c0_i32_0 : i32, i32
  }
  func.func @transform_4(%arg0: i32, %arg1: i32) -> (i32, i32) {
    %c0_i32 = arith.constant 0 : i32
    %c0_i32_0 = arith.constant 0 : i32
    %c0_i32_1 = arith.constant 0 : i32
    return %c0_i32, %c0_i32_0 : i32, i32
  }
  func.func @transform_5(%arg0: i32, %arg1: i32) -> (i32, i32) {
    %c0_i32 = arith.constant 0 : i32
    %c0_i32_0 = arith.constant 0 : i32
    %c0_i32_1 = arith.constant 0 : i32
    return %c0_i32, %c0_i32_0 : i32, i32
  }
  func.func @transform_6(%arg0: i32, %arg1: i32) -> (i32, i32) {
    %c0_i32 = arith.constant 0 : i32
    %c0_i32_0 = arith.constant 0 : i32
    %c0_i32_1 = arith.constant 0 : i32
    return %c0_i32, %c0_i32_0 : i32, i32
  }
  func.func @transform_7(%arg0: i32, %arg1: i32) -> (i32, i32) {
    %c0_i32 = arith.constant 0 : i32
    %c0_i32_0 = arith.constant 0 : i32
    %c0_i32_1 = arith.constant 0 : i32
    return %c0_i32, %c0_i32_0 : i32, i32
  }
  func.func @transform_8(%arg0: i32, %arg1: i32) -> (i32, i32) {
    %c0_i32 = arith.constant 0 : i32
    %c0_i32_0 = arith.constant 0 : i32
    %c0_i32_1 = arith.constant 0 : i32
    return %c0_i32, %c0_i32_0 : i32, i32
  }
  func.func @transform_9(%arg0: i32, %arg1: i32) -> (i32, i32) {
    %c0_i32 = arith.constant 0 : i32
    %c0_i32_0 = arith.constant 0 : i32
    %c0_i32_1 = arith.constant 0 : i32
    return %c0_i32, %c0_i32_0 : i32, i32
  }
  func.func @transform_10(%arg0: i32, %arg1: i32) -> (i32, i32) {
    %c0_i32 = arith.constant 0 : i32
    %c0_i32_0 = arith.constant 0 : i32
    %c0_i32_1 = arith.constant 0 : i32
    return %c0_i32, %c0_i32_0 : i32, i32
  }
  func.func @transform_11(%arg0: i32, %arg1: i32) -> (i32, i32) {
    %c0_i32 = arith.constant 0 : i32
    %c0_i32_0 = arith.constant 0 : i32
    %c0_i32_1 = arith.constant 0 : i32
    return %c0_i32, %c0_i32_0 : i32, i32
  }
  func.func @transform_12(%arg0: i32, %arg1: i32) -> (i32, i32) {
    %c0_i32 = arith.constant 0 : i32
    %c0_i32_0 = arith.constant 0 : i32
    %c0_i32_1 = arith.constant 0 : i32
    return %c0_i32, %c0_i32_0 : i32, i32
  }
  func.func @transform_13(%arg0: i32, %arg1: i32) -> (i32, i32) {
    %c0_i32 = arith.constant 0 : i32
    %c0_i32_0 = arith.constant 0 : i32
    %c0_i32_1 = arith.constant 0 : i32
    return %c0_i32, %c0_i32_0 : i32, i32
  }
  func.func @transform_14(%arg0: i32, %arg1: i32) -> (i32, i32) {
    %c0_i32 = arith.constant 0 : i32
    %c0_i32_0 = arith.constant 0 : i32
    %c0_i32_1 = arith.constant 0 : i32
    return %c0_i32, %c0_i32_0 : i32, i32
  }
  func.func @transform_15(%arg0: i32, %arg1: i32) -> (i32, i32) {
    %c0_i32 = arith.constant 0 : i32
    %c0_i32_0 = arith.constant 0 : i32
    %c0_i32_1 = arith.constant 0 : i32
    return %c0_i32, %c0_i32_0 : i32, i32
  }
  func.func @transform_16(%arg0: i32, %arg1: i32) -> (i32, i32) {
    %c0_i32 = arith.constant 0 : i32
    %c0_i32_0 = arith.constant 0 : i32
    %c0_i32_1 = arith.constant 0 : i32
    return %c0_i32, %c0_i32_0 : i32, i32
  }
  func.func @transform_17(%arg0: i32, %arg1: i32) -> (i32, i32) {
    %c0_i32 = arith.constant 0 : i32
    %c0_i32_0 = arith.constant 0 : i32
    %c0_i32_1 = arith.constant 0 : i32
    return %c0_i32, %c0_i32_0 : i32, i32
  }
  func.func @transform_18(%arg0: i32, %arg1: i32) -> (i32, i32, i32) {
    %c0_i32 = arith.constant 0 : i32
    %c0_i32_0 = arith.constant 0 : i32
    return %arg0, %arg1, %c0_i32 : i32, i32, i32
  }
  func.func @transform_19(%arg0: i32, %arg1: i32) -> (i32, i32, i32, i32) {
    %c0_i32 = arith.constant 0 : i32
    %c0_i32_0 = arith.constant 0 : i32
    %c0_i32_1 = arith.constant 0 : i32
    return %arg0, %c0_i32, %arg1, %c0_i32_0 : i32, i32, i32, i32
  }
  func.func @transform_20(%arg0: i32, %arg1: i32) -> (i32, i32, i32, i32) {
    %c0_i32 = arith.constant 0 : i32
    %c0_i32_0 = arith.constant 0 : i32
    %c0_i32_1 = arith.constant 0 : i32
    return %arg0, %c0_i32, %arg1, %c0_i32_0 : i32, i32, i32, i32
  }
}

</mosaic_0001>

<llo_original>
// kernel: tpu_custom_call.1
$region0: #{tpu_custom_call.1}
  #allocation0 [shape = 'u32[]', space=smem, size = 0x4, offset = 0x4, fixed_abs, tag = 'smem constant byte address 0x4 - core index']
  #allocation1 [shape = 'u32[144,128]{1,0:T(1,128)}', space=vmem, size = 0x12000, scoped, tag = 'internal scratch']
  %s0 = inlined_call_operand.vmem [shape: f32[2,8,32], index: 0, kind: input, shape index: {}]
  %s1 = inlined_call_operand.vmem [shape: f32[2,8,32], index: 1, kind: input, shape index: {}]
  %s2 = inlined_call_operand.vmem [shape: bf16[32,16], index: 2, kind: input, shape index: {}]
  %s3 = inlined_call_operand.vmem [shape: bf16[32,32], index: 3, kind: input, shape index: {}]
  %s4 = inlined_call_operand.hbm [shape: bf16[16,32], index: 4, kind: input, shape index: {}]
  %s5 = inlined_call_operand.vmem [shape: f32[1,32], index: 5, kind: input, shape index: {}]
  %s6 = inlined_call_operand.vmem [shape: f32[1,32], index: 6, kind: input, shape index: {}]
  %s7 = inlined_call_operand.vmem [shape: bf16[32,16], index: 7, kind: input, shape index: {}]
  %s8 = inlined_call_operand.vmem [shape: bf16[32,32], index: 8, kind: input, shape index: {}]
  %s9 = inlined_call_operand.vmem [shape: bf16[16,32], index: 9, kind: input, shape index: {}]
  %s10 = inlined_call_operand.vmem [shape: f32[1,32], index: 10, kind: input, shape index: {}]
  %s11 = inlined_call_operand.vmem [shape: f32[1,32], index: 11, kind: input, shape index: {}]
  %s12 = inlined_call_operand.vmem [shape: bf16[32,64], index: 12, kind: input, shape index: {}]
  %s13 = inlined_call_operand.vmem [shape: f32[1,64], index: 13, kind: input, shape index: {}]
  %s14 = inlined_call_operand.vmem [shape: bf16[64,32], index: 14, kind: input, shape index: {}]
  %s15 = inlined_call_operand.vmem [shape: f32[1,32], index: 15, kind: input, shape index: {}]
  %s16 = inlined_call_operand.vmem [shape: f32[1,32], index: 16, kind: input, shape index: {}]
  %s17 = inlined_call_operand.vmem [shape: f32[1,32], index: 17, kind: input, shape index: {}]
  %s18 = inlined_call_operand.hbm [shape: f32[2,8,32], index: 18, kind: output, shape index: {0}]
  %s19 = inlined_call_operand.hbm [shape: f32[2,2,8,8], index: 19, kind: output, shape index: {1}]
  %s20 = inlined_call_operand.hbm [shape: f32[2,2,8,8], index: 20, kind: output, shape index: {2}]
  %21 = xla_tuple %s18, %s19, %s20
  %s22 = sld [smem:[#allocation0]]
  $region125: #{tpu_custom_call.1} parent=0
    _
  %s24 = ssub.s32 1, %s22
  %s25 = scalar_select 0, %s24, %s22
  $region1: #{tpu_custom_call.1} parent=0
    #allocation2 [shape = 'u8[4096]{0}', space=vmem, size = 0x1000, scoped, tag = 'input window, operand 4, single buffered']
    #allocation3 [shape = 's32[2]{0}', space=sflag, size = 0x8, scoped, tag = 'scoped memory for tpu_custom_call.1']
    #allocation4 [shape = 's32[2]{0}', space=sflag, size = 0x8, scoped, tag = 'scoped memory for tpu_custom_call.1']
    #allocation5 [shape = 'u8[8192]{0}', space=vmem, size = 0x2000, scoped, tag = 'output window, operand 0']
    #allocation6 [shape = 'u8[16384]{0}', space=vmem, size = 0x4000, scoped, tag = 'output window, operand 1']
    #allocation7 [shape = 's32[2]{0}', space=sflag, size = 0x8, scoped, tag = 'scoped memory for tpu_custom_call.1']
    #allocation8 [shape = 'u8[16384]{0}', space=vmem, size = 0x4000, scoped, tag = 'output window, operand 2']
    %26 = vsyncpa [#allocation3], 0
    %27 = vsyncpa [#allocation4], 0
    %s28 = scalar_lea.sflag [#allocation4], 1
    %29 = vsyncpa %s28, 0
    %30 = vsyncpa [#allocation7], 0
    %s31 = scalar_lea.sflag [#allocation7], 1
    %32 = vsyncpa %s31, 0
    loop: start=0, step=1, limit=4
    $region2: #{tpu_custom_call.1} parent=1 // loop_pre_header
      _
    $region3: #{tpu_custom_call.1} parent=1 // loop_header
      %s34 = sphi 0, %s38
      %p35 = scmp.ge.s32.totalorder %s34, 4
      %s41 = sphi 0, %s53
      %s42 = sphi 0, %s49
      %s43 = sphi 0, %s41
      %s44 = sphi 0, %s42
      %s45 = sphi 0, %s43
      %s46 = sphi 0, %s44
      %s56 = sphi 0, %s58
      %s59 = sphi 0, %s56
      %s60 = sphi 0, %s59
      %s76 = sphi 0, %s60
      %s82 = sphi 0, %s84
      %s85 = sphi 0, %s82
      %s86 = sphi 0, %s85
      %s102 = sphi 0, %s86
      %s106 = sphi 0, %s106
      %s108 = sphi 0, %s106
      %s109 = sphi 0, %s108
      %s123 = sphi 0, %s109
      %s127 = sphi 0, %s127
      %s129 = sphi 0, %s127
      %s130 = sphi 0, %s129
      %s144 = sphi 0, %s130
      %s148 = sphi 0, %s148
      %s150 = sphi 0, %s148
      %s151 = sphi 0, %s150
      %s165 = sphi 0, %s151
      %s169 = sphi 0, %s169
      %s171 = sphi 0, %s169
      %s172 = sphi 0, %s171
      %s186 = sphi 0, %s172
      %s190 = sphi 0, %s190
      %s192 = sphi 0, %s190
      %s193 = sphi 0, %s192
      %s207 = sphi 0, %s193
      %s211 = sphi 0, %s211
      %s213 = sphi 0, %s211
      %s214 = sphi 0, %s213
      %s228 = sphi 0, %s214
      %s232 = sphi 0, %s232
      %s234 = sphi 0, %s232
      %s235 = sphi 0, %s234
      %s249 = sphi 0, %s235
      %s253 = sphi 0, %s253
      %s255 = sphi 0, %s253
      %s256 = sphi 0, %s255
      %s270 = sphi 0, %s256
      %s274 = sphi 0, %s274
      %s276 = sphi 0, %s274
      %s277 = sphi 0, %s276
      %s291 = sphi 0, %s277
      %s295 = sphi 0, %s295
      %s297 = sphi 0, %s295
      %s298 = sphi 0, %s297
      %s312 = sphi 0, %s298
      %s316 = sphi 0, %s316
      %s318 = sphi 0, %s316
      %s319 = sphi 0, %s318
      %s333 = sphi 0, %s319
      %s337 = sphi 0, %s337
      %s339 = sphi 0, %s337
      %s340 = sphi 0, %s339
      %s354 = sphi 0, %s340
      %s358 = sphi 0, %s358
      %s360 = sphi 0, %s358
      %s361 = sphi 0, %s360
      %s375 = sphi 0, %s361
      %s379 = sphi 0, %s379
      %s381 = sphi 0, %s379
      %s382 = sphi 0, %s381
      %s396 = sphi 0, %s382
      %s400 = sphi 0, %s400
      %s402 = sphi 0, %s400
      %s403 = sphi 0, %s402
      %s417 = sphi 0, %s403
      %s421 = sphi 0, %s421
      %s423 = sphi 0, %s421
      %s424 = sphi 0, %s423
      %s438 = sphi 0, %s424
      %s446 = sphi 0, %s448
      %s449 = sphi 0, %s446
      %s450 = sphi 0, %s449
      %s466 = sphi 0, %s450
      %s474 = sphi 0, %s476
      %s477 = sphi 0, %s474
      %s478 = sphi 0, %s477
      %s494 = sphi 0, %s478
      %s502 = sphi 0, %s504
      %s505 = sphi 0, %s502
      %s506 = sphi 0, %s505
      %s522 = sphi 0, %s506
    $region4: #{tpu_custom_call.1} parent=1 // loop_header_branch
      %37 = sbr.rel (%p35) target = $region8
    $region5: #{tpu_custom_call.1} parent=1 // loop_body
      %s39 = ssub.s32 %s34, 1
      %s40 = ssub.s32 %s34, 2
      %s47 = sadd.s32 1, %s42
      %p48 = scmp.ge.s32.totalorder %s47, 1
      %s49 = scalar_select %p48, 0, %s47
      %s50 = sadd.s32 1, %s41
      %s51 = scalar_select %p48, %s50, %s41
      %p52 = scmp.ge.s32.totalorder %s51, 2
      %s53 = scalar_select %p52, 0, %s51
      %s54 = ssub.s32 %s41, %s53
      %p55 = scmp.eq.s32.totalorder %s54, 0
      %s57 = sadd.s32 %s56, 1
      %s58 = scalar_select %p55, %s56, %s57
      %p61 = pneg %p55
      %p62 = scmp.eq.s32.totalorder %s34, 1
      %p63 = por %p61, %p62
      %p64 = scmp.ne.s32.totalorder %s56, %s59
      %p65 = scmp.eq.s32.totalorder %s34, 0
      %p66 = por %p64, %p65
      %p67 = scmp.ne.s32.totalorder %s56, %s59
      %p68 = scmp.eq.s32.totalorder %s39, 1
      %p69 = por %p67, %p68
      %p70 = scmp.ne.s32.totalorder %s59, %s60
      %p71 = scmp.eq.s32.totalorder %s39, 0
      %p72 = por %p70, %p71
      %p73 = scmp.ne.s32.totalorder %s59, %s60
      %p74 = scmp.eq.s32.totalorder %s40, 1
      %p75 = por %p73, %p74
      %p77 = scmp.ne.s32.totalorder %s60, %s76
      %p78 = scmp.eq.s32.totalorder %s40, 0
      %p79 = por %p77, %p78
      %s80 = ssub.s32 %s41, %s53
      %p81 = scmp.eq.s32.totalorder %s80, 0
      %s83 = sadd.s32 %s82, 1
      %s84 = scalar_select %p81, %s82, %s83
      %p87 = pneg %p81
      %p88 = scmp.eq.s32.totalorder %s34, 1
      %p89 = por %p87, %p88
      %p90 = scmp.ne.s32.totalorder %s82, %s85
      %p91 = scmp.eq.s32.totalorder %s34, 0
      %p92 = por %p90, %p91
      %p93 = scmp.ne.s32.totalorder %s82, %s85
      %p94 = scmp.eq.s32.totalorder %s39, 1
      %p95 = por %p93, %p94
      %p96 = scmp.ne.s32.totalorder %s85, %s86
      %p97 = scmp.eq.s32.totalorder %s39, 0
      %p98 = por %p96, %p97
      %p99 = scmp.ne.s32.totalorder %s85, %s86
      %p100 = scmp.eq.s32.totalorder %s40, 1
      %p101 = por %p99, %p100
      %p103 = scmp.ne.s32.totalorder %s86, %s102
      %p104 = scmp.eq.s32.totalorder %s40, 0
      %p105 = por %p103, %p104
      %s107 = sadd.s32 %s106, 1
      %p110 = scmp.eq.s32.totalorder %s34, 1
      %p111 = scmp.ne.s32.totalorder %s106, %s108
      %p112 = scmp.eq.s32.totalorder %s34, 0
      %p113 = por %p111, %p112
      %p114 = scmp.ne.s32.totalorder %s106, %s108
      %p115 = scmp.eq.s32.totalorder %s39, 1
      %p116 = por %p114, %p115
      %p117 = scmp.ne.s32.totalorder %s108, %s109
      %p118 = scmp.eq.s32.totalorder %s39, 0
      %p119 = por %p117, %p118
      %p120 = scmp.ne.s32.totalorder %s108, %s109
      %p121 = scmp.eq.s32.totalorder %s40, 1
      %p122 = por %p120, %p121
      %p124 = scmp.ne.s32.totalorder %s109, %s123
      %p125 = scmp.eq.s32.totalorder %s40, 0
      %p126 = por %p124, %p125
      %s128 = sadd.s32 %s127, 1
      %p131 = scmp.eq.s32.totalorder %s34, 1
      %p132 = scmp.ne.s32.totalorder %s127, %s129
      %p133 = scmp.eq.s32.totalorder %s34, 0
      %p134 = por %p132, %p133
      %p135 = scmp.ne.s32.totalorder %s127, %s129
      %p136 = scmp.eq.s32.totalorder %s39, 1
      %p137 = por %p135, %p136
      %p138 = scmp.ne.s32.totalorder %s129, %s130
      %p139 = scmp.eq.s32.totalorder %s39, 0
      %p140 = por %p138, %p139
      %p141 = scmp.ne.s32.totalorder %s129, %s130
      %p142 = scmp.eq.s32.totalorder %s40, 1
      %p143 = por %p141, %p142
      %p145 = scmp.ne.s32.totalorder %s130, %s144
      %p146 = scmp.eq.s32.totalorder %s40, 0
      %p147 = por %p145, %p146
      %s149 = sadd.s32 %s148, 1
      %p152 = scmp.eq.s32.totalorder %s34, 1
      %p153 = scmp.ne.s32.totalorder %s148, %s150
      %p154 = scmp.eq.s32.totalorder %s34, 0
      %p155 = por %p153, %p154
      %p156 = scmp.ne.s32.totalorder %s148, %s150
      %p157 = scmp.eq.s32.totalorder %s39, 1
      %p158 = por %p156, %p157
      %p159 = scmp.ne.s32.totalorder %s150, %s151
      %p160 = scmp.eq.s32.totalorder %s39, 0
      %p161 = por %p159, %p160
      %p162 = scmp.ne.s32.totalorder %s150, %s151
      %p163 = scmp.eq.s32.totalorder %s40, 1
      %p164 = por %p162, %p163
      %p166 = scmp.ne.s32.totalorder %s151, %s165
      %p167 = scmp.eq.s32.totalorder %s40, 0
      %p168 = por %p166, %p167
      %s170 = sadd.s32 %s169, 1
      %p173 = scmp.eq.s32.totalorder %s34, 1
      %p174 = scmp.ne.s32.totalorder %s169, %s171
      %p175 = scmp.eq.s32.totalorder %s34, 0
      %p176 = por %p174, %p175
      %p177 = scmp.ne.s32.totalorder %s169, %s171
      %p178 = scmp.eq.s32.totalorder %s39, 1
      %p179 = por %p177, %p178
      %p180 = scmp.ne.s32.totalorder %s171, %s172
      %p181 = scmp.eq.s32.totalorder %s39, 0
      %p182 = por %p180, %p181
      %p183 = scmp.ne.s32.totalorder %s171, %s172
      %p184 = scmp.eq.s32.totalorder %s40, 1
      %p185 = por %p183, %p184
      %p187 = scmp.ne.s32.totalorder %s172, %s186
      %p188 = scmp.eq.s32.totalorder %s40, 0
      %p189 = por %p187, %p188
      %s191 = sadd.s32 %s190, 1
      %p194 = scmp.eq.s32.totalorder %s34, 1
      %p195 = scmp.ne.s32.totalorder %s190, %s192
      %p196 = scmp.eq.s32.totalorder %s34, 0
      %p197 = por %p195, %p196
      %p198 = scmp.ne.s32.totalorder %s190, %s192
      %p199 = scmp.eq.s32.totalorder %s39, 1
      %p200 = por %p198, %p199
      %p201 = scmp.ne.s32.totalorder %s192, %s193
      %p202 = scmp.eq.s32.totalorder %s39, 0
      %p203 = por %p201, %p202
      %p204 = scmp.ne.s32.totalorder %s192, %s193
      %p205 = scmp.eq.s32.totalorder %s40, 1
      %p206 = por %p204, %p205
      %p208 = scmp.ne.s32.totalorder %s193, %s207
      %p209 = scmp.eq.s32.totalorder %s40, 0
      %p210 = por %p208, %p209
      %s212 = sadd.s32 %s211, 1
      %p215 = scmp.eq.s32.totalorder %s34, 1
      %p216 = scmp.ne.s32.totalorder %s211, %s213
      %p217 = scmp.eq.s32.totalorder %s34, 0
      %p218 = por %p216, %p217
      %p219 = scmp.ne.s32.totalorder %s211, %s213
      %p220 = scmp.eq.s32.totalorder %s39, 1
      %p221 = por %p219, %p220
      %p222 = scmp.ne.s32.totalorder %s213, %s214
      %p223 = scmp.eq.s32.totalorder %s39, 0
      %p224 = por %p222, %p223
      %p225 = scmp.ne.s32.totalorder %s213, %s214
      %p226 = scmp.eq.s32.totalorder %s40, 1
      %p227 = por %p225, %p226
      %p229 = scmp.ne.s32.totalorder %s214, %s228
      %p230 = scmp.eq.s32.totalorder %s40, 0
      %p231 = por %p229, %p230
      %s233 = sadd.s32 %s232, 1
      %p236 = scmp.eq.s32.totalorder %s34, 1
      %p237 = scmp.ne.s32.totalorder %s232, %s234
      %p238 = scmp.eq.s32.totalorder %s34, 0
      %p239 = por %p237, %p238
      %p240 = scmp.ne.s32.totalorder %s232, %s234
      %p241 = scmp.eq.s32.totalorder %s39, 1
      %p242 = por %p240, %p241
      %p243 = scmp.ne.s32.totalorder %s234, %s235
      %p244 = scmp.eq.s32.totalorder %s39, 0
      %p245 = por %p243, %p244
      %p246 = scmp.ne.s32.totalorder %s234, %s235
      %p247 = scmp.eq.s32.totalorder %s40, 1
      %p248 = por %p246, %p247
      %p250 = scmp.ne.s32.totalorder %s235, %s249
      %p251 = scmp.eq.s32.totalorder %s40, 0
      %p252 = por %p250, %p251
      %s254 = sadd.s32 %s253, 1
      %p257 = scmp.eq.s32.totalorder %s34, 1
      %p258 = scmp.ne.s32.totalorder %s253, %s255
      %p259 = scmp.eq.s32.totalorder %s34, 0
      %p260 = por %p258, %p259
      %p261 = scmp.ne.s32.totalorder %s253, %s255
      %p262 = scmp.eq.s32.totalorder %s39, 1
      %p263 = por %p261, %p262
      %p264 = scmp.ne.s32.totalorder %s255, %s256
      %p265 = scmp.eq.s32.totalorder %s39, 0
      %p266 = por %p264, %p265
      %p267 = scmp.ne.s32.totalorder %s255, %s256
      %p268 = scmp.eq.s32.totalorder %s40, 1
      %p269 = por %p267, %p268
      %p271 = scmp.ne.s32.totalorder %s256, %s270
      %p272 = scmp.eq.s32.totalorder %s40, 0
      %p273 = por %p271, %p272
      %s275 = sadd.s32 %s274, 1
      %p278 = scmp.eq.s32.totalorder %s34, 1
      %p279 = scmp.ne.s32.totalorder %s274, %s276
      %p280 = scmp.eq.s32.totalorder %s34, 0
      %p281 = por %p279, %p280
      %p282 = scmp.ne.s32.totalorder %s274, %s276
      %p283 = scmp.eq.s32.totalorder %s39, 1
      %p284 = por %p282, %p283
      %p285 = scmp.ne.s32.totalorder %s276, %s277
      %p286 = scmp.eq.s32.totalorder %s39, 0
      %p287 = por %p285, %p286
      %p288 = scmp.ne.s32.totalorder %s276, %s277
      %p289 = scmp.eq.s32.totalorder %s40, 1
      %p290 = por %p288, %p289
      %p292 = scmp.ne.s32.totalorder %s277, %s291
      %p293 = scmp.eq.s32.totalorder %s40, 0
      %p294 = por %p292, %p293
      %s296 = sadd.s32 %s295, 1
      %p299 = scmp.eq.s32.totalorder %s34, 1
      %p300 = scmp.ne.s32.totalorder %s295, %s297
      %p301 = scmp.eq.s32.totalorder %s34, 0
      %p302 = por %p300, %p301
      %p303 = scmp.ne.s32.totalorder %s295, %s297
      %p304 = scmp.eq.s32.totalorder %s39, 1
      %p305 = por %p303, %p304
      %p306 = scmp.ne.s32.totalorder %s297, %s298
      %p307 = scmp.eq.s32.totalorder %s39, 0
      %p308 = por %p306, %p307
      %p309 = scmp.ne.s32.totalorder %s297, %s298
      %p310 = scmp.eq.s32.totalorder %s40, 1
      %p311 = por %p309, %p310
      %p313 = scmp.ne.s32.totalorder %s298, %s312
      %p314 = scmp.eq.s32.totalorder %s40, 0
      %p315 = por %p313, %p314
      %s317 = sadd.s32 %s316, 1
      %p320 = scmp.eq.s32.totalorder %s34, 1
      %p321 = scmp.ne.s32.totalorder %s316, %s318
      %p322 = scmp.eq.s32.totalorder %s34, 0
      %p323 = por %p321, %p322
      %p324 = scmp.ne.s32.totalorder %s316, %s318
      %p325 = scmp.eq.s32.totalorder %s39, 1
      %p326 = por %p324, %p325
      %p327 = scmp.ne.s32.totalorder %s318, %s319
      %p328 = scmp.eq.s32.totalorder %s39, 0
      %p329 = por %p327, %p328
      %p330 = scmp.ne.s32.totalorder %s318, %s319
      %p331 = scmp.eq.s32.totalorder %s40, 1
      %p332 = por %p330, %p331
      %p334 = scmp.ne.s32.totalorder %s319, %s333
      %p335 = scmp.eq.s32.totalorder %s40, 0
      %p336 = por %p334, %p335
      %s338 = sadd.s32 %s337, 1
      %p341 = scmp.eq.s32.totalorder %s34, 1
      %p342 = scmp.ne.s32.totalorder %s337, %s339
      %p343 = scmp.eq.s32.totalorder %s34, 0
      %p344 = por %p342, %p343
      %p345 = scmp.ne.s32.totalorder %s337, %s339
      %p346 = scmp.eq.s32.totalorder %s39, 1
      %p347 = por %p345, %p346
      %p348 = scmp.ne.s32.totalorder %s339, %s340
      %p349 = scmp.eq.s32.totalorder %s39, 0
      %p350 = por %p348, %p349
      %p351 = scmp.ne.s32.totalorder %s339, %s340
      %p352 = scmp.eq.s32.totalorder %s40, 1
      %p353 = por %p351, %p352
      %p355 = scmp.ne.s32.totalorder %s340, %s354
      %p356 = scmp.eq.s32.totalorder %s40, 0
      %p357 = por %p355, %p356
      %s359 = sadd.s32 %s358, 1
      %p362 = scmp.eq.s32.totalorder %s34, 1
      %p363 = scmp.ne.s32.totalorder %s358, %s360
      %p364 = scmp.eq.s32.totalorder %s34, 0
      %p365 = por %p363, %p364
      %p366 = scmp.ne.s32.totalorder %s358, %s360
      %p367 = scmp.eq.s32.totalorder %s39, 1
      %p368 = por %p366, %p367
      %p369 = scmp.ne.s32.totalorder %s360, %s361
      %p370 = scmp.eq.s32.totalorder %s39, 0
      %p371 = por %p369, %p370
      %p372 = scmp.ne.s32.totalorder %s360, %s361
      %p373 = scmp.eq.s32.totalorder %s40, 1
      %p374 = por %p372, %p373
      %p376 = scmp.ne.s32.totalorder %s361, %s375
      %p377 = scmp.eq.s32.totalorder %s40, 0
      %p378 = por %p376, %p377
      %s380 = sadd.s32 %s379, 1
      %p383 = scmp.eq.s32.totalorder %s34, 1
      %p384 = scmp.ne.s32.totalorder %s379, %s381
      %p385 = scmp.eq.s32.totalorder %s34, 0
      %p386 = por %p384, %p385
      %p387 = scmp.ne.s32.totalorder %s379, %s381
      %p388 = scmp.eq.s32.totalorder %s39, 1
      %p389 = por %p387, %p388
      %p390 = scmp.ne.s32.totalorder %s381, %s382
      %p391 = scmp.eq.s32.totalorder %s39, 0
      %p392 = por %p390, %p391
      %p393 = scmp.ne.s32.totalorder %s381, %s382
      %p394 = scmp.eq.s32.totalorder %s40, 1
      %p395 = por %p393, %p394
      %p397 = scmp.ne.s32.totalorder %s382, %s396
      %p398 = scmp.eq.s32.totalorder %s40, 0
      %p399 = por %p397, %p398
      %s401 = sadd.s32 %s400, 1
      %p404 = scmp.eq.s32.totalorder %s34, 1
      %p405 = scmp.ne.s32.totalorder %s400, %s402
      %p406 = scmp.eq.s32.totalorder %s34, 0
      %p407 = por %p405, %p406
      %p408 = scmp.ne.s32.totalorder %s400, %s402
      %p409 = scmp.eq.s32.totalorder %s39, 1
      %p410 = por %p408, %p409
      %p411 = scmp.ne.s32.totalorder %s402, %s403
      %p412 = scmp.eq.s32.totalorder %s39, 0
      %p413 = por %p411, %p412
      %p414 = scmp.ne.s32.totalorder %s402, %s403
      %p415 = scmp.eq.s32.totalorder %s40, 1
      %p416 = por %p414, %p415
      %p418 = scmp.ne.s32.totalorder %s403, %s417
      %p419 = scmp.eq.s32.totalorder %s40, 0
      %p420 = por %p418, %p419
      %s422 = sadd.s32 %s421, 1
      %p425 = scmp.eq.s32.totalorder %s34, 1
      %p426 = scmp.ne.s32.totalorder %s421, %s423
      %p427 = scmp.eq.s32.totalorder %s34, 0
      %p428 = por %p426, %p427
      %p429 = scmp.ne.s32.totalorder %s421, %s423
      %p430 = scmp.eq.s32.totalorder %s39, 1
      %p431 = por %p429, %p430
      %p432 = scmp.ne.s32.totalorder %s423, %s424
      %p433 = scmp.eq.s32.totalorder %s39, 0
      %p434 = por %p432, %p433
      %p435 = scmp.ne.s32.totalorder %s423, %s424
      %p436 = scmp.eq.s32.totalorder %s40, 1
      %p437 = por %p435, %p436
      %p439 = scmp.ne.s32.totalorder %s424, %s438
      %p440 = scmp.eq.s32.totalorder %s40, 0
      %p441 = por %p439, %p440
      %s442 = ssub.s32 %s41, %s53
      %s443 = ssub.s32 %s42, %s49
      %s444 = sor.u32 %s442, %s443
      %p445 = scmp.eq.s32.totalorder %s444, 0
      %s447 = sadd.s32 %s446, 1
      %s448 = scalar_select %p445, %s446, %s447
      %p451 = pneg %p445
      %p452 = scmp.eq.s32.totalorder %s34, 1
      %p453 = por %p451, %p452
      %p454 = scmp.ne.s32.totalorder %s446, %s449
      %p455 = scmp.eq.s32.totalorder %s34, 0
      %p456 = por %p454, %p455
      %p457 = scmp.ne.s32.totalorder %s446, %s449
      %p458 = scmp.eq.s32.totalorder %s39, 1
      %p459 = por %p457, %p458
      %p460 = scmp.ne.s32.totalorder %s449, %s450
      %p461 = scmp.eq.s32.totalorder %s39, 0
      %p462 = por %p460, %p461
      %p463 = scmp.ne.s32.totalorder %s449, %s450
      %p464 = scmp.eq.s32.totalorder %s40, 1
      %p465 = por %p463, %p464
      %p467 = scmp.ne.s32.totalorder %s450, %s466
      %p468 = scmp.eq.s32.totalorder %s40, 0
      %p469 = por %p467, %p468
      %s470 = ssub.s32 %s41, %s53
      %s471 = ssub.s32 %s42, %s49
      %s472 = sor.u32 %s470, %s471
      %p473 = scmp.eq.s32.totalorder %s472, 0
      %s475 = sadd.s32 %s474, 1
      %s476 = scalar_select %p473, %s474, %s475
      %p479 = pneg %p473
      %p480 = scmp.eq.s32.totalorder %s34, 1
      %p481 = por %p479, %p480
      %p482 = scmp.ne.s32.totalorder %s474, %s477
      %p483 = scmp.eq.s32.totalorder %s34, 0
      %p484 = por %p482, %p483
      %p485 = scmp.ne.s32.totalorder %s474, %s477
      %p486 = scmp.eq.s32.totalorder %s39, 1
      %p487 = por %p485, %p486
      %p488 = scmp.ne.s32.totalorder %s477, %s478
      %p489 = scmp.eq.s32.totalorder %s39, 0
      %p490 = por %p488, %p489
      %p491 = scmp.ne.s32.totalorder %s477, %s478
      %p492 = scmp.eq.s32.totalorder %s40, 1
      %p493 = por %p491, %p492
      %p495 = scmp.ne.s32.totalorder %s478, %s494
      %p496 = scmp.eq.s32.totalorder %s40, 0
      %p497 = por %p495, %p496
      %s498 = ssub.s32 %s41, %s53
      %s499 = ssub.s32 %s42, %s49
      %s500 = sor.u32 %s498, %s499
      %p501 = scmp.eq.s32.totalorder %s500, 0
      %s503 = sadd.s32 %s502, 1
      %s504 = scalar_select %p501, %s502, %s503
      %p507 = pneg %p501
      %p508 = scmp.eq.s32.totalorder %s34, 1
      %p509 = por %p507, %p508
      %p510 = scmp.ne.s32.totalorder %s502, %s505
      %p511 = scmp.eq.s32.totalorder %s34, 0
      %p512 = por %p510, %p511
      %p513 = scmp.ne.s32.totalorder %s502, %s505
      %p514 = scmp.eq.s32.totalorder %s39, 1
      %p515 = por %p513, %p514
      %p516 = scmp.ne.s32.totalorder %s505, %s506
      %p517 = scmp.eq.s32.totalorder %s39, 0
      %p518 = por %p516, %p517
      %p519 = scmp.ne.s32.totalorder %s505, %s506
      %p520 = scmp.eq.s32.totalorder %s40, 1
      %p521 = por %p519, %p520
      %p523 = scmp.ne.s32.totalorder %s506, %s522
      %p524 = scmp.eq.s32.totalorder %s40, 0
      %p525 = por %p523, %p524
      %p526 = scmp.le.s32.totalorder 1, %s34
      %p527 = scmp.lt.s32.totalorder %s34, 3
      %p528 = pnand %p526, %p527
      %p529 = pneg %p528
      // Predicated region
      $region9: #{tpu_custom_call.1} parent=5 // pred_check
        _
      $region10: #{tpu_custom_call.1} parent=5 // pred_check_branch
        %531 = sbr.rel (%p528) target = $region12
      $region11: #{tpu_custom_call.1} parent=5 // pred_region
        %s532 = ssub.s32 %s34, 1
        // Predicated region
        $region13: #{tpu_custom_call.1} parent=11 // pred_check
          %p533 = pneg %p119
        $region14: #{tpu_custom_call.1} parent=11 // pred_check_branch
          %535 = sbr.rel (%p533) target = $region16
        $region15: #{tpu_custom_call.1} parent=11 // pred_region
          _
        $region16: #{tpu_custom_call.1} parent=11 // pred_fallthru
          _
        // Predicated region
        $region17: #{tpu_custom_call.1} parent=11 // pred_check
          %p536 = pneg %p140
        $region18: #{tpu_custom_call.1} parent=11 // pred_check_branch
          %538 = sbr.rel (%p536) target = $region20
        $region19: #{tpu_custom_call.1} parent=11 // pred_region
          _
        $region20: #{tpu_custom_call.1} parent=11 // pred_fallthru
          _
        // Predicated region
        $region21: #{tpu_custom_call.1} parent=11 // pred_check
          %p539 = pneg %p161
        $region22: #{tpu_custom_call.1} parent=11 // pred_check_branch
          %541 = sbr.rel (%p539) target = $region24
        $region23: #{tpu_custom_call.1} parent=11 // pred_region
          %s543 = ssub.s32 128, 128
          %544 = vsyncadd [#allocation3], %s543
          %s545 = sshll.u32 [#allocation2], 4
          %s546 = int_to_ptr.vmem [resolvable:$true] %s545
          %551 = dma.hbm_to_vmem [thread:$0]  %s4, 128, %s546, [#allocation3], 64, 64, 4
        $region24: #{tpu_custom_call.1} parent=11 // pred_fallthru
          _
        // Predicated region
        $region25: #{tpu_custom_call.1} parent=11 // pred_check
          %p552 = pneg %p182
        $region26: #{tpu_custom_call.1} parent=11 // pred_check_branch
          %554 = sbr.rel (%p552) target = $region28
        $region27: #{tpu_custom_call.1} parent=11 // pred_region
          _
        $region28: #{tpu_custom_call.1} parent=11 // pred_fallthru
          _
        // Predicated region
        $region29: #{tpu_custom_call.1} parent=11 // pred_check
          %p555 = pneg %p203
        $region30: #{tpu_custom_call.1} parent=11 // pred_check_branch
          %557 = sbr.rel (%p555) target = $region32
        $region31: #{tpu_custom_call.1} parent=11 // pred_region
          _
        $region32: #{tpu_custom_call.1} parent=11 // pred_fallthru
          _
        // Predicated region
        $region33: #{tpu_custom_call.1} parent=11 // pred_check
          %p558 = pneg %p224
        $region34: #{tpu_custom_call.1} parent=11 // pred_check_branch
          %560 = sbr.rel (%p558) target = $region36
        $region35: #{tpu_custom_call.1} parent=11 // pred_region
          _
        $region36: #{tpu_custom_call.1} parent=11 // pred_fallthru
          _
        // Predicated region
        $region37: #{tpu_custom_call.1} parent=11 // pred_check
          %p561 = pneg %p245
        $region38: #{tpu_custom_call.1} parent=11 // pred_check_branch
          %563 = sbr.rel (%p561) target = $region40
        $region39: #{tpu_custom_call.1} parent=11 // pred_region
          _
        $region40: #{tpu_custom_call.1} parent=11 // pred_fallthru
          _
        // Predicated region
        $region41: #{tpu_custom_call.1} parent=11 // pred_check
          %p564 = pneg %p266
        $region42: #{tpu_custom_call.1} parent=11 // pred_check_branch
          %566 = sbr.rel (%p564) target = $region44
        $region43: #{tpu_custom_call.1} parent=11 // pred_region
          _
        $region44: #{tpu_custom_call.1} parent=11 // pred_fallthru
          _
        // Predicated region
        $region45: #{tpu_custom_call.1} parent=11 // pred_check
          %p567 = pneg %p287
        $region46: #{tpu_custom_call.1} parent=11 // pred_check_branch
          %569 = sbr.rel (%p567) target = $region48
        $region47: #{tpu_custom_call.1} parent=11 // pred_region
          _
        $region48: #{tpu_custom_call.1} parent=11 // pred_fallthru
          _
        // Predicated region
        $region49: #{tpu_custom_call.1} parent=11 // pred_check
          %p570 = pneg %p308
        $region50: #{tpu_custom_call.1} parent=11 // pred_check_branch
          %572 = sbr.rel (%p570) target = $region52
        $region51: #{tpu_custom_call.1} parent=11 // pred_region
          _
        $region52: #{tpu_custom_call.1} parent=11 // pred_fallthru
          _
        // Predicated region
        $region53: #{tpu_custom_call.1} parent=11 // pred_check
          %p573 = pneg %p329
        $region54: #{tpu_custom_call.1} parent=11 // pred_check_branch
          %575 = sbr.rel (%p573) target = $region56
        $region55: #{tpu_custom_call.1} parent=11 // pred_region
          _
        $region56: #{tpu_custom_call.1} parent=11 // pred_fallthru
          _
        // Predicated region
        $region57: #{tpu_custom_call.1} parent=11 // pred_check
          %p576 = pneg %p350
        $region58: #{tpu_custom_call.1} parent=11 // pred_check_branch
          %578 = sbr.rel (%p576) target = $region60
        $region59: #{tpu_custom_call.1} parent=11 // pred_region
          _
        $region60: #{tpu_custom_call.1} parent=11 // pred_fallthru
          _
        // Predicated region
        $region61: #{tpu_custom_call.1} parent=11 // pred_check
          %p579 = pneg %p371
        $region62: #{tpu_custom_call.1} parent=11 // pred_check_branch
          %581 = sbr.rel (%p579) target = $region64
        $region63: #{tpu_custom_call.1} parent=11 // pred_region
          _
        $region64: #{tpu_custom_call.1} parent=11 // pred_fallthru
          _
        // Predicated region
        $region65: #{tpu_custom_call.1} parent=11 // pred_check
          %p582 = pneg %p392
        $region66: #{tpu_custom_call.1} parent=11 // pred_check_branch
          %584 = sbr.rel (%p582) target = $region68
        $region67: #{tpu_custom_call.1} parent=11 // pred_region
          _
        $region68: #{tpu_custom_call.1} parent=11 // pred_fallthru
          _
        // Predicated region
        $region69: #{tpu_custom_call.1} parent=11 // pred_check
          %p585 = pneg %p413
        $region70: #{tpu_custom_call.1} parent=11 // pred_check_branch
          %587 = sbr.rel (%p585) target = $region72
        $region71: #{tpu_custom_call.1} parent=11 // pred_region
          _
        $region72: #{tpu_custom_call.1} parent=11 // pred_fallthru
          _
        // Predicated region
        $region73: #{tpu_custom_call.1} parent=11 // pred_check
          %p588 = pneg %p434
        $region74: #{tpu_custom_call.1} parent=11 // pred_check_branch
          %590 = sbr.rel (%p588) target = $region76
        $region75: #{tpu_custom_call.1} parent=11 // pred_region
          _
        $region76: #{tpu_custom_call.1} parent=11 // pred_fallthru
          _
      $region12: #{tpu_custom_call.1} parent=5 // pred_fallthru
        _
      %p591 = scmp.lt.s32.totalorder %s34, 2
      // Predicated region
      $region77: #{tpu_custom_call.1} parent=5 // pred_check
        %p592 = pneg %p591
      $region78: #{tpu_custom_call.1} parent=5 // pred_check_branch
        %594 = sbr.rel (%p592) target = $region80
      $region79: #{tpu_custom_call.1} parent=5 // pred_region
        // Predicated region
        $region81: #{tpu_custom_call.1} parent=79 // pred_check
          %p595 = pneg %p66
        $region82: #{tpu_custom_call.1} parent=79 // pred_check_branch
          %597 = sbr.rel (%p595) target = $region84
        $region83: #{tpu_custom_call.1} parent=79 // pred_region
          %p598 = scmp.lt.s32.totalorder %s41, 1
          %s599 = scalar_select %p598, %s41, 1
          %s600 = smul.addr %s599, 8
          %s601 = scalar_lea.vmem %s0, %s600
        $region84: #{tpu_custom_call.1} parent=79 // pred_fallthru
          _
        // Predicated region
        $region85: #{tpu_custom_call.1} parent=79 // pred_check
          %p602 = pneg %p92
        $region86: #{tpu_custom_call.1} parent=79 // pred_check_branch
          %604 = sbr.rel (%p602) target = $region88
        $region87: #{tpu_custom_call.1} parent=79 // pred_region
          %p605 = scmp.lt.s32.totalorder %s41, 1
          %s606 = scalar_select %p605, %s41, 1
          %s607 = smul.addr %s606, 8
          %s608 = scalar_lea.vmem %s1, %s607
        $region88: #{tpu_custom_call.1} parent=79 // pred_fallthru
          _
      $region80: #{tpu_custom_call.1} parent=5 // pred_fallthru
        _
      %p609 = scmp.le.s32.totalorder 1, %s34
      %p610 = scmp.lt.s32.totalorder %s34, 3
      %p611 = pnand %p609, %p610
      %p612 = pneg %p611
      // Predicated region
      $region89: #{tpu_custom_call.1} parent=5 // pred_check
        _
      $region90: #{tpu_custom_call.1} parent=5 // pred_check_branch
        %614 = sbr.rel (%p611) target = $region92
      $region91: #{tpu_custom_call.1} parent=5 // pred_region
        %s615 = ssub.s32 %s34, 1
        // Predicated region
        $region93: #{tpu_custom_call.1} parent=91 // pred_check
          %p616 = pneg %p161
        $region94: #{tpu_custom_call.1} parent=91 // pred_check_branch
          %618 = sbr.rel (%p616) target = $region96
        $region95: #{tpu_custom_call.1} parent=91 // pred_region
          %619 = dma.done [#allocation3], 128
        $region96: #{tpu_custom_call.1} parent=91 // pred_fallthru
          _
        %p620 = scmp.lt.s32.totalorder %s43, 1
        %s621 = scalar_select %p620, %s43, 1
        %s622 = smul.addr %s621, 8
        %s623 = scalar_lea.vmem %s0, %s622
        %p624 = pneg %p72
        %p625 = pneg %p69
        %p626 = scmp.lt.s32.totalorder %s43, 1
        %s627 = scalar_select %p626, %s43, 1
        %s628 = smul.addr %s627, 8
        %s629 = scalar_lea.vmem %s1, %s628
        %p630 = pneg %p98
        %p631 = pneg %p95
        %p632 = pneg %p119
        %p633 = pneg %p116
        %p634 = pneg %p140
        %p635 = pneg %p137
        %p636 = pneg %p161
        %p637 = pneg %p158
        %p638 = pneg %p182
        %p639 = pneg %p179
        %p640 = pneg %p203
        %p641 = pneg %p200
        %p642 = pneg %p224
        %p643 = pneg %p221
        %p644 = pneg %p245
        %p645 = pneg %p242
        %p646 = pneg %p266
        %p647 = pneg %p263
        %p648 = pneg %p287
        %p649 = pneg %p284
        %p650 = pneg %p308
        %p651 = pneg %p305
        %p652 = pneg %p329
        %p653 = pneg %p326
        %p654 = pneg %p350
        %p655 = pneg %p347
        %p656 = pneg %p371
        %p657 = pneg %p368
        %p658 = pneg %p392
        %p659 = pneg %p389
        %p660 = pneg %p413
        %p661 = pneg %p410
        %p662 = pneg %p434
        %p663 = pneg %p431
        %p664 = pneg %p462
        %p665 = pneg %p459
        %s666 = sand.u32 %s449, 1
        %s667 = scalar_lea.sflag [#allocation4], %s666
        %s668 = sand.u32 %s449, 1
        %s669 = smul.addr %s668, 8
        %s670 = scalar_lea.vmem [#allocation5], %s669
        %p671 = pneg %p490
        %p672 = pneg %p487
        %s673 = sand.u32 %s39, 1
        %s674 = scalar_lea.sflag [#allocation7], %s673
        %s675 = sand.u32 %s477, 1
        %s676 = smul.addr %s675, 16
        %s677 = scalar_lea.vmem [#allocation6], %s676
        %p678 = pneg %p518
        %p679 = pneg %p515
        %s680 = sand.u32 %s39, 1
        %s681 = scalar_lea.sflag [#allocation7], %s680
        %s682 = sand.u32 %s505, 1
        %s683 = smul.addr %s682, 16
        %s684 = scalar_lea.vmem [#allocation8], %s683
        %p685 = scmp.lt.s32.totalorder %s43, 1
        %s686 = scalar_select %p685, %s43, 1
        %s687 = smul.addr %s686, 8
        %s688 = scalar_lea.vmem %s0, %s687
        %p689 = scmp.lt.s32.totalorder %s43, 1
        %s690 = scalar_select %p689, %s43, 1
        %s691 = smul.addr %s690, 8
        %s692 = scalar_lea.vmem %s1, %s691
        %s694 = smul.u32 %s44, 8
        %v695 = vld [vmem:[%s688] sm:$0xff]
        %v696 = vld [vmem:[%s692] sm:$0xff]
        %s697 = scalar_lea.vmem %s688, %s694
        %v698 = vld [vmem:[%s697] sm:$0xff]
        %v699 = vlaneseq
        %v700 = vshrl.u32 %v699, 7
        %v701 = vstv %s694
        %v702 = vadd.s32 %v701, %v700
        %v703 = vlaneseq
        %v704 = vand.u32 %v703, 127
        %vm705 = vcmp.le.s32.totalorder %v704, %v702
        %v706 = vsel %vm705, 0.0, -1e+09
        %v707 = vpack.c.bf16 %v698, %v698
        %v708 = vld [vmem:[%s2] sm:$0xf]
        %v709 = vld [vmem:[%s2 + $0x4] sm:$0xf]
        %v710 = vld [vmem:[%s2 + $0x8] sm:$0xf]
        %v711 = vld [vmem:[%s2 + $0xc] sm:$0xf]
        %v716 = vunpack.c.l.b16 %v708
        %v717 = vunpack.c.l.b16 %v709
        %v718 = vunpack.c.l.b16 %v710
        %v719 = vunpack.c.l.b16 %v711
        %v720 = vpack.c.b16 %v717, %v716
        %v721 = vpack.c.b16 %v719, %v718
        %vm724 = vcmask 261120
        %v726 = vsel %vm724, %v707, 0
        %728 = vmatprep.subr.bf16.mxu0 0
        %729 = vmatpush1.bf16.msra.mxu0 %v720
        %730 = vmatprep.subr.bf16.mxu0 0
        %731 = vmatpush1.bf16.msra.mxu0 %v721
        %732 = vmatprep.subr.bf16.mxu0 0
        %733 = vmatpush1.bf16.msra.mxu0 0
        %734 = vmatprep.subr.bf16.mxu0 0
        %735 = vmatpush1.bf16.msra.mxu0 0
        %736 = vmatprep.subr.bf16.mxu0 0
        %737 = vmatpush1.bf16.msra.mxu0 0
        %738 = vmatprep.subr.bf16.mxu0 0
        %739 = vmatpush1.bf16.msra.mxu0 0
        %740 = vmatprep.subr.bf16.mxu0 0
        %741 = vmatpush1.bf16.msra.mxu0 0
        %742 = vmatprep.subr.bf16.mxu0 0
        %743 = vmatpush1.bf16.msra.mxu0 0
        %744 = vmatprep.subr.bf16.mxu0 0
        %745 = vmatpush1.bf16.msra.mxu0 0
        %746 = vmatprep.subr.bf16.mxu0 0
        %747 = vmatpush1.bf16.msra.mxu0 0
        %748 = vmatprep.subr.bf16.mxu0 0
        %749 = vmatpush1.bf16.msra.mxu0 0
        %750 = vmatprep.subr.bf16.mxu0 0
        %751 = vmatpush1.bf16.msra.mxu0 0
        %752 = vmatprep.subr.bf16.mxu0 0
        %753 = vmatpush1.bf16.msra.mxu0 0
        %754 = vmatprep.subr.bf16.mxu0 0
        %755 = vmatpush1.bf16.msra.mxu0 0
        %756 = vmatprep.subr.bf16.mxu0 0
        %757 = vmatpush1.bf16.msra.mxu0 0
        %758 = vmatprep.subr.bf16.mxu0 0
        %759 = vmatpush1.bf16.msra.mxu0 0
        %760 = vmatprep.mubr.bf16.mxu0 0
        %761 = vmatmul.mubr.bf16.gmra.mrb[0].mxu0 %v726
        %v762 = vpop.f32.mrb[0].mxu0
        %v763 = vadd.f32 0.0, %v762
        %v764 = vpop.f32.mrb[0].mxu0
        %v765 = vpop.f32.mrb[0].mxu0
        %v766 = vpop.f32.mrb[0].mxu0
        %767 = vdwg.mxu0
        %v768 = vpack.c.bf16 %v695, %v695
        %v769 = vld [vmem:[%s3] sm:$0xf]
        %v770 = vld [vmem:[%s3 + $0x4] sm:$0xf]
        %v771 = vld [vmem:[%s3 + $0x8] sm:$0xf]
        %v772 = vld [vmem:[%s3 + $0xc] sm:$0xf]
        %v777 = vunpack.c.l.b16 %v769
        %v778 = vunpack.c.l.b16 %v770
        %v779 = vunpack.c.l.b16 %v771
        %v780 = vunpack.c.l.b16 %v772
        %v781 = vpack.c.b16 %v778, %v777
        %v782 = vpack.c.b16 %v780, %v779
        %v786 = vsel %vm724, %v768, 0
        %788 = vmatprep.subr.bf16.mxu0 0
        %789 = vmatpush1.bf16.msra.mxu0 %v781
        %790 = vmatprep.subr.bf16.mxu0 0
        %791 = vmatpush1.bf16.msra.mxu0 %v782
        %792 = vmatprep.subr.bf16.mxu0 0
        %793 = vmatpush1.bf16.msra.mxu0 0
        %794 = vmatprep.subr.bf16.mxu0 0
        %795 = vmatpush1.bf16.msra.mxu0 0
        %796 = vmatprep.subr.bf16.mxu0 0
        %797 = vmatpush1.bf16.msra.mxu0 0
        %798 = vmatprep.subr.bf16.mxu0 0
        %799 = vmatpush1.bf16.msra.mxu0 0
        %800 = vmatprep.subr.bf16.mxu0 0
        %801 = vmatpush1.bf16.msra.mxu0 0
        %802 = vmatprep.subr.bf16.mxu0 0
        %803 = vmatpush1.bf16.msra.mxu0 0
        %804 = vmatprep.subr.bf16.mxu0 0
        %805 = vmatpush1.bf16.msra.mxu0 0
        %806 = vmatprep.subr.bf16.mxu0 0
        %807 = vmatpush1.bf16.msra.mxu0 0
        %808 = vmatprep.subr.bf16.mxu0 0
        %809 = vmatpush1.bf16.msra.mxu0 0
        %810 = vmatprep.subr.bf16.mxu0 0
        %811 = vmatpush1.bf16.msra.mxu0 0
        %812 = vmatprep.subr.bf16.mxu0 0
        %813 = vmatpush1.bf16.msra.mxu0 0
        %814 = vmatprep.subr.bf16.mxu0 0
        %815 = vmatpush1.bf16.msra.mxu0 0
        %816 = vmatprep.subr.bf16.mxu0 0
        %817 = vmatpush1.bf16.msra.mxu0 0
        %818 = vmatprep.subr.bf16.mxu0 0
        %819 = vmatpush1.bf16.msra.mxu0 0
        %820 = vmatprep.mubr.bf16.mxu0 0
        %821 = vmatmul.mubr.bf16.gmra.mrb[0].mxu0 %v786
        %v822 = vpop.f32.mrb[0].mxu0
        %v823 = vadd.f32 0.0, %v822
        %v824 = vpop.f32.mrb[0].mxu0
        %v825 = vpop.f32.mrb[0].mxu0
        %v826 = vpop.f32.mrb[0].mxu0
        %827 = vdwg.mxu0
        %829 = vrot.lane.b32.xlu0 %v763, 120
        %v830 = vpop.permute.xlu0 %829
        %v832 = vcombine.high %v763, 0.0
        %v834 = vunpack.c.l.s4 1983009808
        %v835 = vunpack.c.0.s8 %v834
        %v836 = vlaneseq
        %v837 = vshrl.u32 %v836, 7
        %v838 = vsub.s32 %v835, %v837
        %v839 = vrot.slane %v763, %v838
        %v841 = vunpack.c.l.s4 1983009808
        %v842 = vunpack.c.0.s8 %v841
        %v843 = vlaneseq
        %v844 = vshrl.u32 %v843, 7
        %v845 = vsub.s32 %v842, %v844
        %v846 = vrot.slane %v832, %v845
        %v847 = vcombine.high %v830, 0.0
        %v849 = vunpack.c.l.s4 1983009808
        %v850 = vunpack.c.0.s8 %v849
        %v851 = vlaneseq
        %v852 = vshrl.u32 %v851, 7
        %v853 = vsub.s32 %v850, %v852
        %v854 = vrot.slane %v830, %v853
        %v856 = vunpack.c.l.s4 1983009808
        %v857 = vunpack.c.0.s8 %v856
        %v858 = vlaneseq
        %v859 = vshrl.u32 %v858, 7
        %v860 = vsub.s32 %v857, %v859
        %v861 = vrot.slane %v847, %v860
        %v862 = vcombine.low %v839, %v854
        %v863 = vcombine.high %v839, %v854
        %v865 = vunpack.c.l.s4 1934713408
        %v866 = vunpack.c.0.s8 %v865
        %v867 = vlaneseq
        %v868 = vshrl.u32 %v867, 7
        %v869 = vsub.s32 %v866, %v868
        %v870 = vrot.slane %v862, %v869
        %v872 = vunpack.c.l.s4 1934713408
        %v873 = vunpack.c.0.s8 %v872
        %v874 = vlaneseq
        %v875 = vshrl.u32 %v874, 7
        %v876 = vsub.s32 %v873, %v875
        %v877 = vrot.slane %v863, %v876
        %v878 = vcombine.low %v846, %v861
        %v879 = vcombine.high %v846, %v861
        %v881 = vunpack.c.l.s4 1934713408
        %v882 = vunpack.c.0.s8 %v881
        %v883 = vlaneseq
        %v884 = vshrl.u32 %v883, 7
        %v885 = vsub.s32 %v882, %v884
        %v886 = vrot.slane %v878, %v885
        %v888 = vunpack.c.l.s4 1934713408
        %v889 = vunpack.c.0.s8 %v888
        %v890 = vlaneseq
        %v891 = vshrl.u32 %v890, 7
        %v892 = vsub.s32 %v889, %v891
        %v893 = vrot.slane %v879, %v892
        %v894 = vcombine.high %v870, 0.0
        %v895 = vcombine.high %v877, 0.0
        %v896 = vcombine.high %v886, 0.0
        %v897 = vcombine.high %v893, 0.0
        %v898 = vcombine.low %v870, %v877
        %v900 = vunpack.c.l.s4 1983009808
        %v901 = vunpack.c.0.s8 %v900
        %v902 = vlaneseq
        %v903 = vshrl.u32 %v902, 7
        %v904 = vsub.s32 %v901, %v903
        %v905 = vrot.slane %v898, %v904
        %v906 = vcombine.low %v894, %v895
        %v908 = vunpack.c.l.s4 1983009808
        %v909 = vunpack.c.0.s8 %v908
        %v910 = vlaneseq
        %v911 = vshrl.u32 %v910, 7
        %v912 = vsub.s32 %v909, %v911
        %v913 = vrot.slane %v906, %v912
        %v914 = vcombine.low %v886, %v893
        %v916 = vunpack.c.l.s4 1983009808
        %v917 = vunpack.c.0.s8 %v916
        %v918 = vlaneseq
        %v919 = vshrl.u32 %v918, 7
        %v920 = vsub.s32 %v917, %v919
        %v921 = vrot.slane %v914, %v920
        %v922 = vcombine.low %v896, %v897
        %v924 = vunpack.c.l.s4 1983009808
        %v925 = vunpack.c.0.s8 %v924
        %v926 = vlaneseq
        %v927 = vshrl.u32 %v926, 7
        %v928 = vsub.s32 %v925, %v927
        %v929 = vrot.slane %v922, %v928
        %v930 = vcombine.low %v905, %v913
        %v932 = vunpack.c.l.s4 1934713408
        %v933 = vunpack.c.0.s8 %v932
        %v934 = vlaneseq
        %v935 = vshrl.u32 %v934, 7
        %v936 = vsub.s32 %v933, %v935
        %v937 = vrot.slane %v930, %v936
        %v938 = vcombine.low %v921, %v929
        %v940 = vunpack.c.l.s4 1934713408
        %v941 = vunpack.c.0.s8 %v940
        %v942 = vlaneseq
        %v943 = vshrl.u32 %v942, 7
        %v944 = vsub.s32 %v941, %v943
        %v945 = vrot.slane %v938, %v944
        %v946 = vcombine.low %v937, %v945
        %v947 = vcombine.high %v937, %v945
        %949 = vrot.lane.b32.xlu0 %v823, 120
        %v950 = vpop.permute.xlu0 %949
        %v952 = vcombine.high %v823, 0.0
        %v954 = vunpack.c.l.s4 1983009808
        %v955 = vunpack.c.0.s8 %v954
        %v956 = vlaneseq
        %v957 = vshrl.u32 %v956, 7
        %v958 = vsub.s32 %v955, %v957
        %v959 = vrot.slane %v823, %v958
        %v961 = vunpack.c.l.s4 1983009808
        %v962 = vunpack.c.0.s8 %v961
        %v963 = vlaneseq
        %v964 = vshrl.u32 %v963, 7
        %v965 = vsub.s32 %v962, %v964
        %v966 = vrot.slane %v952, %v965
        %v967 = vcombine.high %v950, 0.0
        %v969 = vunpack.c.l.s4 1983009808
        %v970 = vunpack.c.0.s8 %v969
        %v971 = vlaneseq
        %v972 = vshrl.u32 %v971, 7
        %v973 = vsub.s32 %v970, %v972
        %v974 = vrot.slane %v950, %v973
        %v976 = vunpack.c.l.s4 1983009808
        %v977 = vunpack.c.0.s8 %v976
        %v978 = vlaneseq
        %v979 = vshrl.u32 %v978, 7
        %v980 = vsub.s32 %v977, %v979
        %v981 = vrot.slane %v967, %v980
        %v982 = vcombine.low %v959, %v974
        %v983 = vcombine.high %v959, %v974
        %v985 = vunpack.c.l.s4 1934713408
        %v986 = vunpack.c.0.s8 %v985
        %v987 = vlaneseq
        %v988 = vshrl.u32 %v987, 7
        %v989 = vsub.s32 %v986, %v988
        %v990 = vrot.slane %v982, %v989
        %v992 = vunpack.c.l.s4 1934713408
        %v993 = vunpack.c.0.s8 %v992
        %v994 = vlaneseq
        %v995 = vshrl.u32 %v994, 7
        %v996 = vsub.s32 %v993, %v995
        %v997 = vrot.slane %v983, %v996
        %v998 = vcombine.low %v966, %v981
        %v999 = vcombine.high %v966, %v981
        %v1001 = vunpack.c.l.s4 1934713408
        %v1002 = vunpack.c.0.s8 %v1001
        %v1003 = vlaneseq
        %v1004 = vshrl.u32 %v1003, 7
        %v1005 = vsub.s32 %v1002, %v1004
        %v1006 = vrot.slane %v998, %v1005
        %v1008 = vunpack.c.l.s4 1934713408
        %v1009 = vunpack.c.0.s8 %v1008
        %v1010 = vlaneseq
        %v1011 = vshrl.u32 %v1010, 7
        %v1012 = vsub.s32 %v1009, %v1011
        %v1013 = vrot.slane %v999, %v1012
        %v1014 = vcombine.high %v990, 0.0
        %v1015 = vcombine.high %v997, 0.0
        %v1016 = vcombine.high %v1006, 0.0
        %v1017 = vcombine.high %v1013, 0.0
        %v1018 = vcombine.low %v990, %v997
        %v1020 = vunpack.c.l.s4 1983009808
        %v1021 = vunpack.c.0.s8 %v1020
        %v1022 = vlaneseq
        %v1023 = vshrl.u32 %v1022, 7
        %v1024 = vsub.s32 %v1021, %v1023
        %v1025 = vrot.slane %v1018, %v1024
        %v1026 = vcombine.low %v1014, %v1015
        %v1028 = vunpack.c.l.s4 1983009808
        %v1029 = vunpack.c.0.s8 %v1028
        %v1030 = vlaneseq
        %v1031 = vshrl.u32 %v1030, 7
        %v1032 = vsub.s32 %v1029, %v1031
        %v1033 = vrot.slane %v1026, %v1032
        %v1034 = vcombine.low %v1006, %v1013
        %v1036 = vunpack.c.l.s4 1983009808
        %v1037 = vunpack.c.0.s8 %v1036
        %v1038 = vlaneseq
        %v1039 = vshrl.u32 %v1038, 7
        %v1040 = vsub.s32 %v1037, %v1039
        %v1041 = vrot.slane %v1034, %v1040
        %v1042 = vcombine.low %v1016, %v1017
        %v1044 = vunpack.c.l.s4 1983009808
        %v1045 = vunpack.c.0.s8 %v1044
        %v1046 = vlaneseq
        %v1047 = vshrl.u32 %v1046, 7
        %v1048 = vsub.s32 %v1045, %v1047
        %v1049 = vrot.slane %v1042, %v1048
        %v1050 = vcombine.low %v1025, %v1033
        %v1052 = vunpack.c.l.s4 1934713408
        %v1053 = vunpack.c.0.s8 %v1052
        %v1054 = vlaneseq
        %v1055 = vshrl.u32 %v1054, 7
        %v1056 = vsub.s32 %v1053, %v1055
        %v1057 = vrot.slane %v1050, %v1056
        %v1058 = vcombine.low %v1041, %v1049
        %v1060 = vunpack.c.l.s4 1934713408
        %v1061 = vunpack.c.0.s8 %v1060
        %v1062 = vlaneseq
        %v1063 = vshrl.u32 %v1062, 7
        %v1064 = vsub.s32 %v1061, %v1063
        %v1065 = vrot.slane %v1058, %v1064
        %v1066 = vcombine.low %v1057, %v1065
        %v1067 = vcombine.high %v1057, %v1065
        %1068 = vrot.lane.b32.xlu0 %v823, 112
        %v1069 = vpop.permute.xlu0 %1068
        %1070 = vrot.lane.b32.xlu0 %v950, 112
        %v1071 = vpop.permute.xlu0 %1070
        %v1074 = vcombine.high %v1069, 0.0
        %v1076 = vunpack.c.l.s4 1983009808
        %v1077 = vunpack.c.0.s8 %v1076
        %v1078 = vlaneseq
        %v1079 = vshrl.u32 %v1078, 7
        %v1080 = vsub.s32 %v1077, %v1079
        %v1081 = vrot.slane %v1069, %v1080
        %v1083 = vunpack.c.l.s4 1983009808
        %v1084 = vunpack.c.0.s8 %v1083
        %v1085 = vlaneseq
        %v1086 = vshrl.u32 %v1085, 7
        %v1087 = vsub.s32 %v1084, %v1086
        %v1088 = vrot.slane %v1074, %v1087
        %v1089 = vcombine.high %v1071, 0.0
        %v1091 = vunpack.c.l.s4 1983009808
        %v1092 = vunpack.c.0.s8 %v1091
        %v1093 = vlaneseq
        %v1094 = vshrl.u32 %v1093, 7
        %v1095 = vsub.s32 %v1092, %v1094
        %v1096 = vrot.slane %v1071, %v1095
        %v1098 = vunpack.c.l.s4 1983009808
        %v1099 = vunpack.c.0.s8 %v1098
        %v1100 = vlaneseq
        %v1101 = vshrl.u32 %v1100, 7
        %v1102 = vsub.s32 %v1099, %v1101
        %v1103 = vrot.slane %v1089, %v1102
        %v1104 = vcombine.low %v1081, %v1096
        %v1105 = vcombine.high %v1081, %v1096
        %v1107 = vunpack.c.l.s4 1934713408
        %v1108 = vunpack.c.0.s8 %v1107
        %v1109 = vlaneseq
        %v1110 = vshrl.u32 %v1109, 7
        %v1111 = vsub.s32 %v1108, %v1110
        %v1112 = vrot.slane %v1104, %v1111
        %v1114 = vunpack.c.l.s4 1934713408
        %v1115 = vunpack.c.0.s8 %v1114
        %v1116 = vlaneseq
        %v1117 = vshrl.u32 %v1116, 7
        %v1118 = vsub.s32 %v1115, %v1117
        %v1119 = vrot.slane %v1105, %v1118
        %v1120 = vcombine.low %v1088, %v1103
        %v1121 = vcombine.high %v1088, %v1103
        %v1123 = vunpack.c.l.s4 1934713408
        %v1124 = vunpack.c.0.s8 %v1123
        %v1125 = vlaneseq
        %v1126 = vshrl.u32 %v1125, 7
        %v1127 = vsub.s32 %v1124, %v1126
        %v1128 = vrot.slane %v1120, %v1127
        %v1130 = vunpack.c.l.s4 1934713408
        %v1131 = vunpack.c.0.s8 %v1130
        %v1132 = vlaneseq
        %v1133 = vshrl.u32 %v1132, 7
        %v1134 = vsub.s32 %v1131, %v1133
        %v1135 = vrot.slane %v1121, %v1134
        %v1136 = vcombine.high %v1112, 0.0
        %v1137 = vcombine.high %v1119, 0.0
        %v1138 = vcombine.high %v1128, 0.0
        %v1139 = vcombine.high %v1135, 0.0
        %v1140 = vcombine.low %v1112, %v1119
        %v1142 = vunpack.c.l.s4 1983009808
        %v1143 = vunpack.c.0.s8 %v1142
        %v1144 = vlaneseq
        %v1145 = vshrl.u32 %v1144, 7
        %v1146 = vsub.s32 %v1143, %v1145
        %v1147 = vrot.slane %v1140, %v1146
        %v1148 = vcombine.low %v1136, %v1137
        %v1150 = vunpack.c.l.s4 1983009808
        %v1151 = vunpack.c.0.s8 %v1150
        %v1152 = vlaneseq
        %v1153 = vshrl.u32 %v1152, 7
        %v1154 = vsub.s32 %v1151, %v1153
        %v1155 = vrot.slane %v1148, %v1154
        %v1156 = vcombine.low %v1128, %v1135
        %v1158 = vunpack.c.l.s4 1983009808
        %v1159 = vunpack.c.0.s8 %v1158
        %v1160 = vlaneseq
        %v1161 = vshrl.u32 %v1160, 7
        %v1162 = vsub.s32 %v1159, %v1161
        %v1163 = vrot.slane %v1156, %v1162
        %v1164 = vcombine.low %v1138, %v1139
        %v1166 = vunpack.c.l.s4 1983009808
        %v1167 = vunpack.c.0.s8 %v1166
        %v1168 = vlaneseq
        %v1169 = vshrl.u32 %v1168, 7
        %v1170 = vsub.s32 %v1167, %v1169
        %v1171 = vrot.slane %v1164, %v1170
        %v1172 = vcombine.low %v1147, %v1155
        %v1174 = vunpack.c.l.s4 1934713408
        %v1175 = vunpack.c.0.s8 %v1174
        %v1176 = vlaneseq
        %v1177 = vshrl.u32 %v1176, 7
        %v1178 = vsub.s32 %v1175, %v1177
        %v1179 = vrot.slane %v1172, %v1178
        %v1180 = vcombine.low %v1163, %v1171
        %v1182 = vunpack.c.l.s4 1934713408
        %v1183 = vunpack.c.0.s8 %v1182
        %v1184 = vlaneseq
        %v1185 = vshrl.u32 %v1184, 7
        %v1186 = vsub.s32 %v1183, %v1185
        %v1187 = vrot.slane %v1180, %v1186
        %v1188 = vcombine.low %v1179, %v1187
        %v1189 = vcombine.high %v1179, %v1187
        %v1190 = vpack.c.bf16 %v946, %v946
        %v1191 = vpack.c.bf16 %v947, %v947
        %v1192 = vpack.c.bf16 %v1066, %v1066
        %v1193 = vpack.c.bf16 %v1067, %v1067
        %vm1194 = vcmask 64512
        %v1196 = vsel %vm1194, %v1190, 0
        %v1199 = vsel %vm1194, %v1192, 0
        %1201 = vmatprep.subr.bf16.mxu0 0
        %1202 = vmatpush1.bf16.xpose.msra.mxu0 %v1199
        %1203 = vmatprep.subr.bf16.mxu0 0
        %1204 = vmatpush1.bf16.xpose.msra.mxu0 0
        %1205 = vmatprep.subr.bf16.mxu0 0
        %1206 = vmatpush1.bf16.xpose.msra.mxu0 0
        %1207 = vmatprep.subr.bf16.mxu0 0
        %1208 = vmatpush1.bf16.xpose.msra.mxu0 0
        %1209 = vmatprep.subr.bf16.mxu0 0
        %1210 = vmatpush1.bf16.xpose.msra.mxu0 0
        %1211 = vmatprep.subr.bf16.mxu0 0
        %1212 = vmatpush1.bf16.xpose.msra.mxu0 0
        %1213 = vmatprep.subr.bf16.mxu0 0
        %1214 = vmatpush1.bf16.xpose.msra.mxu0 0
        %1215 = vmatprep.subr.bf16.mxu0 0
        %1216 = vmatpush1.bf16.xpose.msra.mxu0 0
        %1217 = vmatprep.subr.bf16.mxu0 0
        %1218 = vmatpush1.bf16.xpose.msra.mxu0 0
        %1219 = vmatprep.subr.bf16.mxu0 0
        %1220 = vmatpush1.bf16.xpose.msra.mxu0 0
        %1221 = vmatprep.subr.bf16.mxu0 0
        %1222 = vmatpush1.bf16.xpose.msra.mxu0 0
        %1223 = vmatprep.subr.bf16.mxu0 0
        %1224 = vmatpush1.bf16.xpose.msra.mxu0 0
        %1225 = vmatprep.subr.bf16.mxu0 0
        %1226 = vmatpush1.bf16.xpose.msra.mxu0 0
        %1227 = vmatprep.subr.bf16.mxu0 0
        %1228 = vmatpush1.bf16.xpose.msra.mxu0 0
        %1229 = vmatprep.subr.bf16.mxu0 0
        %1230 = vmatpush1.bf16.xpose.msra.mxu0 0
        %1231 = vmatprep.subr.bf16.mxu0 0
        %1232 = vmatpush1.bf16.xpose.msra.mxu0 0
        %1233 = vmatprep.mubr.bf16.mxu0 0
        %1234 = vmatmul.mubr.bf16.gmra.mrb[0].mxu0 %v1196
        %v1235 = vpop.f32.mrb[0].mxu0
        %v1236 = vadd.f32 %v706, %v1235
        %v1237 = vpop.f32.mrb[0].mxu0
        %v1238 = vpop.f32.mrb[0].mxu0
        %v1239 = vpop.f32.mrb[0].mxu0
        %1240 = vdwg.mxu0
        %v1242 = vsel %vm1194, %v1191, 0
        %v1245 = vsel %vm1194, %v1193, 0
        %1247 = vmatprep.subr.bf16.mxu0 0
        %1248 = vmatpush1.bf16.xpose.msra.mxu0 %v1245
        %1249 = vmatprep.subr.bf16.mxu0 0
        %1250 = vmatpush1.bf16.xpose.msra.mxu0 0
        %1251 = vmatprep.subr.bf16.mxu0 0
        %1252 = vmatpush1.bf16.xpose.msra.mxu0 0
        %1253 = vmatprep.subr.bf16.mxu0 0
        %1254 = vmatpush1.bf16.xpose.msra.mxu0 0
        %1255 = vmatprep.subr.bf16.mxu0 0
        %1256 = vmatpush1.bf16.xpose.msra.mxu0 0
        %1257 = vmatprep.subr.bf16.mxu0 0
        %1258 = vmatpush1.bf16.xpose.msra.mxu0 0
        %1259 = vmatprep.subr.bf16.mxu0 0
        %1260 = vmatpush1.bf16.xpose.msra.mxu0 0
        %1261 = vmatprep.subr.bf16.mxu0 0
        %1262 = vmatpush1.bf16.xpose.msra.mxu0 0
        %1263 = vmatprep.subr.bf16.mxu0 0
        %1264 = vmatpush1.bf16.xpose.msra.mxu0 0
        %1265 = vmatprep.subr.bf16.mxu0 0
        %1266 = vmatpush1.bf16.xpose.msra.mxu0 0
        %1267 = vmatprep.subr.bf16.mxu0 0
        %1268 = vmatpush1.bf16.xpose.msra.mxu0 0
        %1269 = vmatprep.subr.bf16.mxu0 0
        %1270 = vmatpush1.bf16.xpose.msra.mxu0 0
        %1271 = vmatprep.subr.bf16.mxu0 0
        %1272 = vmatpush1.bf16.xpose.msra.mxu0 0
        %1273 = vmatprep.subr.bf16.mxu0 0
        %1274 = vmatpush1.bf16.xpose.msra.mxu0 0
        %1275 = vmatprep.subr.bf16.mxu0 0
        %1276 = vmatpush1.bf16.xpose.msra.mxu0 0
        %1277 = vmatprep.subr.bf16.mxu0 0
        %1278 = vmatpush1.bf16.xpose.msra.mxu0 0
        %1279 = vmatprep.mubr.bf16.mxu0 0
        %1280 = vmatmul.mubr.bf16.gmra.mrb[0].mxu0 %v1242
        %v1281 = vpop.f32.mrb[0].mxu0
        %v1282 = vadd.f32 %v706, %v1281
        %v1283 = vpop.f32.mrb[0].mxu0
        %v1284 = vpop.f32.mrb[0].mxu0
        %v1285 = vpop.f32.mrb[0].mxu0
        %1286 = vdwg.mxu0
        %v1287 = vsel %vm1194, %v1236, -inf
        %1288 = vmax.xlane.f32.xlu0 %v1287
        %v1289 = vpop.xlane.xlu0 %1288
        %v1290 = vsel %vm1194, %v1282, -inf
        %1291 = vmax.xlane.f32.xlu0 %v1290
        %v1292 = vpop.xlane.xlu0 %1291
        %v1293 = vsub.f32 %v1236, %v1289
        %v1294 = vsub.f32 %v1282, %v1292
        %v1295 = vmul.f32 %v1293, 1.442695
        %v1296 = vpow.pop %v1295
        %v1297 = vmul.f32 %v1294, 1.442695
        %v1298 = vpow.pop %v1297
        %v1299 = vsel %vm1194, %v1296, 0.0
        %1300 = vadd.xlane.f32.xlu0 %v1299
        %v1301 = vpop.xlane.xlu0 %1300
        %v1302 = vsel %vm1194, %v1298, 0.0
        %1303 = vadd.xlane.f32.xlu0 %v1302
        %v1304 = vpop.xlane.xlu0 %1303
        %v1305 = vrcp.pop %v1301
        %v1306 = vmul.f32 %v1296, %v1305
        %v1307 = vrcp.pop %v1304
        %v1308 = vmul.f32 %v1298, %v1307
        %v1309 = vpack.c.bf16 %v1306, %v1306
        %v1310 = vpack.c.bf16 %v1308, %v1308
        %v1311 = vpack.c.bf16 %v1188, %v1188
        %v1312 = vpack.c.bf16 %v1189, %v1189
        %v1314 = vsel %vm1194, %v1309, 0
        %vm1316 = vcmask 1043456
        %v1318 = vsel %vm1316, %v1311, 0
        %1320 = vmatprep.subr.bf16.mxu0 0
        %1321 = vmatpush1.bf16.msra.mxu0 %v1318
        %1322 = vmatprep.subr.bf16.mxu0 0
        %1323 = vmatpush1.bf16.msra.mxu0 0
        %1324 = vmatprep.subr.bf16.mxu0 0
        %1325 = vmatpush1.bf16.msra.mxu0 0
        %1326 = vmatprep.subr.bf16.mxu0 0
        %1327 = vmatpush1.bf16.msra.mxu0 0
        %1328 = vmatprep.subr.bf16.mxu0 0
        %1329 = vmatpush1.bf16.msra.mxu0 0
        %1330 = vmatprep.subr.bf16.mxu0 0
        %1331 = vmatpush1.bf16.msra.mxu0 0
        %1332 = vmatprep.subr.bf16.mxu0 0
        %1333 = vmatpush1.bf16.msra.mxu0 0
        %1334 = vmatprep.subr.bf16.mxu0 0
        %1335 = vmatpush1.bf16.msra.mxu0 0
        %1336 = vmatprep.subr.bf16.mxu0 0
        %1337 = vmatpush1.bf16.msra.mxu0 0
        %1338 = vmatprep.subr.bf16.mxu0 0
        %1339 = vmatpush1.bf16.msra.mxu0 0
        %1340 = vmatprep.subr.bf16.mxu0 0
        %1341 = vmatpush1.bf16.msra.mxu0 0
        %1342 = vmatprep.subr.bf16.mxu0 0
        %1343 = vmatpush1.bf16.msra.mxu0 0
        %1344 = vmatprep.subr.bf16.mxu0 0
        %1345 = vmatpush1.bf16.msra.mxu0 0
        %1346 = vmatprep.subr.bf16.mxu0 0
        %1347 = vmatpush1.bf16.msra.mxu0 0
        %1348 = vmatprep.subr.bf16.mxu0 0
        %1349 = vmatpush1.bf16.msra.mxu0 0
        %1350 = vmatprep.subr.bf16.mxu0 0
        %1351 = vmatpush1.bf16.msra.mxu0 0
        %1352 = vmatprep.mubr.bf16.mxu0 0
        %1353 = vmatmul.mubr.bf16.gmra.mrb[0].mxu0 %v1314
        %v1354 = vpop.f32.mrb[0].mxu0
        %v1355 = vadd.f32 0.0, %v1354
        %v1356 = vpop.f32.mrb[0].mxu0
        %v1357 = vpop.f32.mrb[0].mxu0
        %v1358 = vpop.f32.mrb[0].mxu0
        %1359 = vdwg.mxu0
        %v1361 = vsel %vm1194, %v1310, 0
        %v1364 = vsel %vm1316, %v1312, 0
        %1366 = vmatprep.subr.bf16.mxu0 0
        %1367 = vmatpush1.bf16.msra.mxu0 %v1364
        %1368 = vmatprep.subr.bf16.mxu0 0
        %1369 = vmatpush1.bf16.msra.mxu0 0
        %1370 = vmatprep.subr.bf16.mxu0 0
        %1371 = vmatpush1.bf16.msra.mxu0 0
        %1372 = vmatprep.subr.bf16.mxu0 0
        %1373 = vmatpush1.bf16.msra.mxu0 0
        %1374 = vmatprep.subr.bf16.mxu0 0
        %1375 = vmatpush1.bf16.msra.mxu0 0
        %1376 = vmatprep.subr.bf16.mxu0 0
        %1377 = vmatpush1.bf16.msra.mxu0 0
        %1378 = vmatprep.subr.bf16.mxu0 0
        %1379 = vmatpush1.bf16.msra.mxu0 0
        %1380 = vmatprep.subr.bf16.mxu0 0
        %1381 = vmatpush1.bf16.msra.mxu0 0
        %1382 = vmatprep.subr.bf16.mxu0 0
        %1383 = vmatpush1.bf16.msra.mxu0 0
        %1384 = vmatprep.subr.bf16.mxu0 0
        %1385 = vmatpush1.bf16.msra.mxu0 0
        %1386 = vmatprep.subr.bf16.mxu0 0
        %1387 = vmatpush1.bf16.msra.mxu0 0
        %1388 = vmatprep.subr.bf16.mxu0 0
        %1389 = vmatpush1.bf16.msra.mxu0 0
        %1390 = vmatprep.subr.bf16.mxu0 0
        %1391 = vmatpush1.bf16.msra.mxu0 0
        %1392 = vmatprep.subr.bf16.mxu0 0
        %1393 = vmatpush1.bf16.msra.mxu0 0
        %1394 = vmatprep.subr.bf16.mxu0 0
        %1395 = vmatpush1.bf16.msra.mxu0 0
        %1396 = vmatprep.subr.bf16.mxu0 0
        %1397 = vmatpush1.bf16.msra.mxu0 0
        %1398 = vmatprep.mubr.bf16.mxu0 0
        %1399 = vmatmul.mubr.bf16.gmra.mrb[0].mxu0 %v1361
        %v1400 = vpop.f32.mrb[0].mxu0
        %v1401 = vadd.f32 0.0, %v1400
        %v1402 = vpop.f32.mrb[0].mxu0
        %v1403 = vpop.f32.mrb[0].mxu0
        %v1404 = vpop.f32.mrb[0].mxu0
        %1405 = vdwg.mxu0
        %v1406 = vcombine.high %v1355, 0.0
        %v1408 = vunpack.c.l.s4 1983009808
        %v1409 = vunpack.c.0.s8 %v1408
        %v1410 = vlaneseq
        %v1411 = vshrl.u32 %v1410, 7
        %v1412 = vsub.s32 %v1409, %v1411
        %v1413 = vrot.slane %v1355, %v1412
        %v1415 = vunpack.c.l.s4 1983009808
        %v1416 = vunpack.c.0.s8 %v1415
        %v1417 = vlaneseq
        %v1418 = vshrl.u32 %v1417, 7
        %v1419 = vsub.s32 %v1416, %v1418
        %v1420 = vrot.slane %v1406, %v1419
        %v1421 = vcombine.high %v1401, 0.0
        %v1423 = vunpack.c.l.s4 1983009808
        %v1424 = vunpack.c.0.s8 %v1423
        %v1425 = vlaneseq
        %v1426 = vshrl.u32 %v1425, 7
        %v1427 = vsub.s32 %v1424, %v1426
        %v1428 = vrot.slane %v1401, %v1427
        %v1430 = vunpack.c.l.s4 1983009808
        %v1431 = vunpack.c.0.s8 %v1430
        %v1432 = vlaneseq
        %v1433 = vshrl.u32 %v1432, 7
        %v1434 = vsub.s32 %v1431, %v1433
        %v1435 = vrot.slane %v1421, %v1434
        %v1436 = vcombine.low %v1413, %v1428
        %v1437 = vcombine.high %v1413, %v1428
        %v1439 = vunpack.c.l.s4 1934713408
        %v1440 = vunpack.c.0.s8 %v1439
        %v1441 = vlaneseq
        %v1442 = vshrl.u32 %v1441, 7
        %v1443 = vsub.s32 %v1440, %v1442
        %v1444 = vrot.slane %v1436, %v1443
        %v1446 = vunpack.c.l.s4 1934713408
        %v1447 = vunpack.c.0.s8 %v1446
        %v1448 = vlaneseq
        %v1449 = vshrl.u32 %v1448, 7
        %v1450 = vsub.s32 %v1447, %v1449
        %v1451 = vrot.slane %v1437, %v1450
        %v1452 = vcombine.low %v1420, %v1435
        %v1453 = vcombine.high %v1420, %v1435
        %v1455 = vunpack.c.l.s4 1934713408
        %v1456 = vunpack.c.0.s8 %v1455
        %v1457 = vlaneseq
        %v1458 = vshrl.u32 %v1457, 7
        %v1459 = vsub.s32 %v1456, %v1458
        %v1460 = vrot.slane %v1452, %v1459
        %v1462 = vunpack.c.l.s4 1934713408
        %v1463 = vunpack.c.0.s8 %v1462
        %v1464 = vlaneseq
        %v1465 = vshrl.u32 %v1464, 7
        %v1466 = vsub.s32 %v1463, %v1465
        %v1467 = vrot.slane %v1453, %v1466
        %v1468 = vcombine.high %v1444, 0.0
        %v1469 = vcombine.high %v1451, 0.0
        %v1470 = vcombine.high %v1460, 0.0
        %v1471 = vcombine.high %v1467, 0.0
        %v1472 = vcombine.low %v1444, %v1451
        %v1474 = vunpack.c.l.s4 1983009808
        %v1475 = vunpack.c.0.s8 %v1474
        %v1476 = vlaneseq
        %v1477 = vshrl.u32 %v1476, 7
        %v1478 = vsub.s32 %v1475, %v1477
        %v1479 = vrot.slane %v1472, %v1478
        %v1480 = vcombine.low %v1468, %v1469
        %v1482 = vunpack.c.l.s4 1983009808
        %v1483 = vunpack.c.0.s8 %v1482
        %v1484 = vlaneseq
        %v1485 = vshrl.u32 %v1484, 7
        %v1486 = vsub.s32 %v1483, %v1485
        %v1487 = vrot.slane %v1480, %v1486
        %v1488 = vcombine.low %v1460, %v1467
        %v1490 = vunpack.c.l.s4 1983009808
        %v1491 = vunpack.c.0.s8 %v1490
        %v1492 = vlaneseq
        %v1493 = vshrl.u32 %v1492, 7
        %v1494 = vsub.s32 %v1491, %v1493
        %v1495 = vrot.slane %v1488, %v1494
        %v1496 = vcombine.low %v1470, %v1471
        %v1498 = vunpack.c.l.s4 1983009808
        %v1499 = vunpack.c.0.s8 %v1498
        %v1500 = vlaneseq
        %v1501 = vshrl.u32 %v1500, 7
        %v1502 = vsub.s32 %v1499, %v1501
        %v1503 = vrot.slane %v1496, %v1502
        %v1504 = vcombine.low %v1479, %v1487
        %v1506 = vunpack.c.l.s4 1934713408
        %v1507 = vunpack.c.0.s8 %v1506
        %v1508 = vlaneseq
        %v1509 = vshrl.u32 %v1508, 7
        %v1510 = vsub.s32 %v1507, %v1509
        %v1511 = vrot.slane %v1504, %v1510
        %v1512 = vcombine.low %v1495, %v1503
        %v1514 = vunpack.c.l.s4 1934713408
        %v1515 = vunpack.c.0.s8 %v1514
        %v1516 = vlaneseq
        %v1517 = vshrl.u32 %v1516, 7
        %v1518 = vsub.s32 %v1515, %v1517
        %v1519 = vrot.slane %v1512, %v1518
        %v1520 = vcombine.low %v1511, %v1519
        %v1521 = vcombine.high %v1511, %v1519
        %1523 = vrot.lane.b32.xlu0 %v1521, 8
        %v1524 = vpop.permute.xlu0 %1523
        %v1526 = vsel %vm1194, %v1520, %v1524
        %v1527 = vpack.c.bf16 %v1526, %v1526
        %v1528 = vld [vmem:[#allocation2] sm:$0xf]
        %v1529 = vld [vmem:[#allocation2 + $0x4] sm:$0xf]
        %v1532 = vunpack.c.l.b16 %v1528
        %v1533 = vunpack.c.l.b16 %v1529
        %v1534 = vpack.c.b16 %v1533, %v1532
        %vm1536 = vcmask 130048
        %v1538 = vsel %vm1536, %v1527, 0
        %1540 = vmatprep.subr.bf16.mxu0 0
        %1541 = vmatpush1.bf16.msra.mxu0 %v1534
        %1542 = vmatprep.subr.bf16.mxu0 0
        %1543 = vmatpush1.bf16.msra.mxu0 0
        %1544 = vmatprep.subr.bf16.mxu0 0
        %1545 = vmatpush1.bf16.msra.mxu0 0
        %1546 = vmatprep.subr.bf16.mxu0 0
        %1547 = vmatpush1.bf16.msra.mxu0 0
        %1548 = vmatprep.subr.bf16.mxu0 0
        %1549 = vmatpush1.bf16.msra.mxu0 0
        %1550 = vmatprep.subr.bf16.mxu0 0
        %1551 = vmatpush1.bf16.msra.mxu0 0
        %1552 = vmatprep.subr.bf16.mxu0 0
        %1553 = vmatpush1.bf16.msra.mxu0 0
        %1554 = vmatprep.subr.bf16.mxu0 0
        %1555 = vmatpush1.bf16.msra.mxu0 0
        %1556 = vmatprep.subr.bf16.mxu0 0
        %1557 = vmatpush1.bf16.msra.mxu0 0
        %1558 = vmatprep.subr.bf16.mxu0 0
        %1559 = vmatpush1.bf16.msra.mxu0 0
        %1560 = vmatprep.subr.bf16.mxu0 0
        %1561 = vmatpush1.bf16.msra.mxu0 0
        %1562 = vmatprep.subr.bf16.mxu0 0
        %1563 = vmatpush1.bf16.msra.mxu0 0
        %1564 = vmatprep.subr.bf16.mxu0 0
        %1565 = vmatpush1.bf16.msra.mxu0 0
        %1566 = vmatprep.subr.bf16.mxu0 0
        %1567 = vmatpush1.bf16.msra.mxu0 0
        %1568 = vmatprep.subr.bf16.mxu0 0
        %1569 = vmatpush1.bf16.msra.mxu0 0
        %1570 = vmatprep.subr.bf16.mxu0 0
        %1571 = vmatpush1.bf16.msra.mxu0 0
        %1572 = vmatprep.mubr.bf16.mxu0 0
        %1573 = vmatmul.mubr.bf16.gmra.mrb[0].mxu0 %v1538
        %v1574 = vpop.f32.mrb[0].mxu0
        %v1575 = vadd.f32 %v698, %v1574
        %v1576 = vpop.f32.mrb[0].mxu0
        %v1577 = vpop.f32.mrb[0].mxu0
        %v1578 = vpop.f32.mrb[0].mxu0
        %1579 = vdwg.mxu0
        %v1580 = vsel %vm724, %v1575, 0.0
        %1581 = vadd.xlane.f32.xlu0 %v1580
        %v1582 = vpop.xlane.xlu0 %1581
        %v1583 = vrcp.pop 32.0
        %v1584 = vmul.f32 %v1582, %v1583
        %v1585 = vsub.f32 %v1575, %v1584
        %v1586 = vmul.f32 %v1585, %v1585
        %v1587 = vsel %vm724, %v1586, 0.0
        %1588 = vadd.xlane.f32.xlu0 %v1587
        %v1589 = vpop.xlane.xlu0 %1588
        %v1590 = vmul.f32 %v1589, %v1583
        %v1591 = vadd.f32 %v1590, 1e-06
        %v1592 = vrsqrt.pop %v1591
        %v1593 = vmul.f32 %v1585, %v1592
        %v1594 = vld [vmem:[%s5] sm:$0x1]
        %v1596 = vlaneseq
        %v1597 = vshrl.u32 %v1596, 7
        %v1598 = vsub.s32 0, %v1597
        %v1599 = vrot.slane %v1594, %v1598
        %v1601 = vmul.f32 %v1593, %v1599
        %v1602 = vld [vmem:[%s6] sm:$0x1]
        %v1604 = vlaneseq
        %v1605 = vshrl.u32 %v1604, 7
        %v1606 = vsub.s32 0, %v1605
        %v1607 = vrot.slane %v1602, %v1606
        %v1609 = vadd.f32 %v1601, %v1607
        %v1610 = vpack.c.bf16 %v1609, %v1609
        %v1611 = vld [vmem:[%s7] sm:$0xf]
        %v1612 = vld [vmem:[%s7 + $0x4] sm:$0xf]
        %v1613 = vld [vmem:[%s7 + $0x8] sm:$0xf]
        %v1614 = vld [vmem:[%s7 + $0xc] sm:$0xf]
        %v1619 = vunpack.c.l.b16 %v1611
        %v1620 = vunpack.c.l.b16 %v1612
        %v1621 = vunpack.c.l.b16 %v1613
        %v1622 = vunpack.c.l.b16 %v1614
        %v1623 = vpack.c.b16 %v1620, %v1619
        %v1624 = vpack.c.b16 %v1622, %v1621
        %v1628 = vsel %vm724, %v1610, 0
        %1630 = vmatprep.subr.bf16.mxu0 0
        %1631 = vmatpush1.bf16.msra.mxu0 %v1623
        %1632 = vmatprep.subr.bf16.mxu0 0
        %1633 = vmatpush1.bf16.msra.mxu0 %v1624
        %1634 = vmatprep.subr.bf16.mxu0 0
        %1635 = vmatpush1.bf16.msra.mxu0 0
        %1636 = vmatprep.subr.bf16.mxu0 0
        %1637 = vmatpush1.bf16.msra.mxu0 0
        %1638 = vmatprep.subr.bf16.mxu0 0
        %1639 = vmatpush1.bf16.msra.mxu0 0
        %1640 = vmatprep.subr.bf16.mxu0 0
        %1641 = vmatpush1.bf16.msra.mxu0 0
        %1642 = vmatprep.subr.bf16.mxu0 0
        %1643 = vmatpush1.bf16.msra.mxu0 0
        %1644 = vmatprep.subr.bf16.mxu0 0
        %1645 = vmatpush1.bf16.msra.mxu0 0
        %1646 = vmatprep.subr.bf16.mxu0 0
        %1647 = vmatpush1.bf16.msra.mxu0 0
        %1648 = vmatprep.subr.bf16.mxu0 0
        %1649 = vmatpush1.bf16.msra.mxu0 0
        %1650 = vmatprep.subr.bf16.mxu0 0
        %1651 = vmatpush1.bf16.msra.mxu0 0
        %1652 = vmatprep.subr.bf16.mxu0 0
        %1653 = vmatpush1.bf16.msra.mxu0 0
        %1654 = vmatprep.subr.bf16.mxu0 0
        %1655 = vmatpush1.bf16.msra.mxu0 0
        %1656 = vmatprep.subr.bf16.mxu0 0
        %1657 = vmatpush1.bf16.msra.mxu0 0
        %1658 = vmatprep.subr.bf16.mxu0 0
        %1659 = vmatpush1.bf16.msra.mxu0 0
        %1660 = vmatprep.subr.bf16.mxu0 0
        %1661 = vmatpush1.bf16.msra.mxu0 0
        %1662 = vmatprep.mubr.bf16.mxu0 0
        %1663 = vmatmul.mubr.bf16.gmra.mrb[0].mxu0 %v1628
        %v1664 = vpop.f32.mrb[0].mxu0
        %v1665 = vadd.f32 0.0, %v1664
        %v1666 = vpop.f32.mrb[0].mxu0
        %v1667 = vpop.f32.mrb[0].mxu0
        %v1668 = vpop.f32.mrb[0].mxu0
        %1669 = vdwg.mxu0
        %v1670 = vpack.c.bf16 %v696, %v696
        %v1671 = vld [vmem:[%s8] sm:$0xf]
        %v1672 = vld [vmem:[%s8 + $0x4] sm:$0xf]
        %v1673 = vld [vmem:[%s8 + $0x8] sm:$0xf]
        %v1674 = vld [vmem:[%s8 + $0xc] sm:$0xf]
        %v1679 = vunpack.c.l.b16 %v1671
        %v1680 = vunpack.c.l.b16 %v1672
        %v1681 = vunpack.c.l.b16 %v1673
        %v1682 = vunpack.c.l.b16 %v1674
        %v1683 = vpack.c.b16 %v1680, %v1679
        %v1684 = vpack.c.b16 %v1682, %v1681
        %v1688 = vsel %vm724, %v1670, 0
        %1690 = vmatprep.subr.bf16.mxu0 0
        %1691 = vmatpush1.bf16.msra.mxu0 %v1683
        %1692 = vmatprep.subr.bf16.mxu0 0
        %1693 = vmatpush1.bf16.msra.mxu0 %v1684
        %1694 = vmatprep.subr.bf16.mxu0 0
        %1695 = vmatpush1.bf16.msra.mxu0 0
        %1696 = vmatprep.subr.bf16.mxu0 0
        %1697 = vmatpush1.bf16.msra.mxu0 0
        %1698 = vmatprep.subr.bf16.mxu0 0
        %1699 = vmatpush1.bf16.msra.mxu0 0
        %1700 = vmatprep.subr.bf16.mxu0 0
        %1701 = vmatpush1.bf16.msra.mxu0 0
        %1702 = vmatprep.subr.bf16.mxu0 0
        %1703 = vmatpush1.bf16.msra.mxu0 0
        %1704 = vmatprep.subr.bf16.mxu0 0
        %1705 = vmatpush1.bf16.msra.mxu0 0
        %1706 = vmatprep.subr.bf16.mxu0 0
        %1707 = vmatpush1.bf16.msra.mxu0 0
        %1708 = vmatprep.subr.bf16.mxu0 0
        %1709 = vmatpush1.bf16.msra.mxu0 0
        %1710 = vmatprep.subr.bf16.mxu0 0
        %1711 = vmatpush1.bf16.msra.mxu0 0
        %1712 = vmatprep.subr.bf16.mxu0 0
        %1713 = vmatpush1.bf16.msra.mxu0 0
        %1714 = vmatprep.subr.bf16.mxu0 0
        %1715 = vmatpush1.bf16.msra.mxu0 0
        %1716 = vmatprep.subr.bf16.mxu0 0
        %1717 = vmatpush1.bf16.msra.mxu0 0
        %1718 = vmatprep.subr.bf16.mxu0 0
        %1719 = vmatpush1.bf16.msra.mxu0 0
        %1720 = vmatprep.subr.bf16.mxu0 0
        %1721 = vmatpush1.bf16.msra.mxu0 0
        %1722 = vmatprep.mubr.bf16.mxu0 0
        %1723 = vmatmul.mubr.bf16.gmra.mrb[0].mxu0 %v1688
        %v1724 = vpop.f32.mrb[0].mxu0
        %v1725 = vadd.f32 0.0, %v1724
        %v1726 = vpop.f32.mrb[0].mxu0
        %v1727 = vpop.f32.mrb[0].mxu0
        %v1728 = vpop.f32.mrb[0].mxu0
        %1729 = vdwg.mxu0
        %1731 = vrot.lane.b32.xlu0 %v1665, 120
        %v1732 = vpop.permute.xlu0 %1731
        %v1734 = vcombine.high %v1665, 0.0
        %v1736 = vunpack.c.l.s4 1983009808
        %v1737 = vunpack.c.0.s8 %v1736
        %v1738 = vlaneseq
        %v1739 = vshrl.u32 %v1738, 7
        %v1740 = vsub.s32 %v1737, %v1739
        %v1741 = vrot.slane %v1665, %v1740
        %v1743 = vunpack.c.l.s4 1983009808
        %v1744 = vunpack.c.0.s8 %v1743
        %v1745 = vlaneseq
        %v1746 = vshrl.u32 %v1745, 7
        %v1747 = vsub.s32 %v1744, %v1746
        %v1748 = vrot.slane %v1734, %v1747
        %v1749 = vcombine.high %v1732, 0.0
        %v1751 = vunpack.c.l.s4 1983009808
        %v1752 = vunpack.c.0.s8 %v1751
        %v1753 = vlaneseq
        %v1754 = vshrl.u32 %v1753, 7
        %v1755 = vsub.s32 %v1752, %v1754
        %v1756 = vrot.slane %v1732, %v1755
        %v1758 = vunpack.c.l.s4 1983009808
        %v1759 = vunpack.c.0.s8 %v1758
        %v1760 = vlaneseq
        %v1761 = vshrl.u32 %v1760, 7
        %v1762 = vsub.s32 %v1759, %v1761
        %v1763 = vrot.slane %v1749, %v1762
        %v1764 = vcombine.low %v1741, %v1756
        %v1765 = vcombine.high %v1741, %v1756
        %v1767 = vunpack.c.l.s4 1934713408
        %v1768 = vunpack.c.0.s8 %v1767
        %v1769 = vlaneseq
        %v1770 = vshrl.u32 %v1769, 7
        %v1771 = vsub.s32 %v1768, %v1770
        %v1772 = vrot.slane %v1764, %v1771
        %v1774 = vunpack.c.l.s4 1934713408
        %v1775 = vunpack.c.0.s8 %v1774
        %v1776 = vlaneseq
        %v1777 = vshrl.u32 %v1776, 7
        %v1778 = vsub.s32 %v1775, %v1777
        %v1779 = vrot.slane %v1765, %v1778
        %v1780 = vcombine.low %v1748, %v1763
        %v1781 = vcombine.high %v1748, %v1763
        %v1783 = vunpack.c.l.s4 1934713408
        %v1784 = vunpack.c.0.s8 %v1783
        %v1785 = vlaneseq
        %v1786 = vshrl.u32 %v1785, 7
        %v1787 = vsub.s32 %v1784, %v1786
        %v1788 = vrot.slane %v1780, %v1787
        %v1790 = vunpack.c.l.s4 1934713408
        %v1791 = vunpack.c.0.s8 %v1790
        %v1792 = vlaneseq
        %v1793 = vshrl.u32 %v1792, 7
        %v1794 = vsub.s32 %v1791, %v1793
        %v1795 = vrot.slane %v1781, %v1794
        %v1796 = vcombine.high %v1772, 0.0
        %v1797 = vcombine.high %v1779, 0.0
        %v1798 = vcombine.high %v1788, 0.0
        %v1799 = vcombine.high %v1795, 0.0
        %v1800 = vcombine.low %v1772, %v1779
        %v1802 = vunpack.c.l.s4 1983009808
        %v1803 = vunpack.c.0.s8 %v1802
        %v1804 = vlaneseq
        %v1805 = vshrl.u32 %v1804, 7
        %v1806 = vsub.s32 %v1803, %v1805
        %v1807 = vrot.slane %v1800, %v1806
        %v1808 = vcombine.low %v1796, %v1797
        %v1810 = vunpack.c.l.s4 1983009808
        %v1811 = vunpack.c.0.s8 %v1810
        %v1812 = vlaneseq
        %v1813 = vshrl.u32 %v1812, 7
        %v1814 = vsub.s32 %v1811, %v1813
        %v1815 = vrot.slane %v1808, %v1814
        %v1816 = vcombine.low %v1788, %v1795
        %v1818 = vunpack.c.l.s4 1983009808
        %v1819 = vunpack.c.0.s8 %v1818
        %v1820 = vlaneseq
        %v1821 = vshrl.u32 %v1820, 7
        %v1822 = vsub.s32 %v1819, %v1821
        %v1823 = vrot.slane %v1816, %v1822
        %v1824 = vcombine.low %v1798, %v1799
        %v1826 = vunpack.c.l.s4 1983009808
        %v1827 = vunpack.c.0.s8 %v1826
        %v1828 = vlaneseq
        %v1829 = vshrl.u32 %v1828, 7
        %v1830 = vsub.s32 %v1827, %v1829
        %v1831 = vrot.slane %v1824, %v1830
        %v1832 = vcombine.low %v1807, %v1815
        %v1834 = vunpack.c.l.s4 1934713408
        %v1835 = vunpack.c.0.s8 %v1834
        %v1836 = vlaneseq
        %v1837 = vshrl.u32 %v1836, 7
        %v1838 = vsub.s32 %v1835, %v1837
        %v1839 = vrot.slane %v1832, %v1838
        %v1840 = vcombine.low %v1823, %v1831
        %v1842 = vunpack.c.l.s4 1934713408
        %v1843 = vunpack.c.0.s8 %v1842
        %v1844 = vlaneseq
        %v1845 = vshrl.u32 %v1844, 7
        %v1846 = vsub.s32 %v1843, %v1845
        %v1847 = vrot.slane %v1840, %v1846
        %v1848 = vcombine.low %v1839, %v1847
        %v1849 = vcombine.high %v1839, %v1847
        %1851 = vrot.lane.b32.xlu0 %v1725, 120
        %v1852 = vpop.permute.xlu0 %1851
        %v1854 = vcombine.high %v1725, 0.0
        %v1856 = vunpack.c.l.s4 1983009808
        %v1857 = vunpack.c.0.s8 %v1856
        %v1858 = vlaneseq
        %v1859 = vshrl.u32 %v1858, 7
        %v1860 = vsub.s32 %v1857, %v1859
        %v1861 = vrot.slane %v1725, %v1860
        %v1863 = vunpack.c.l.s4 1983009808
        %v1864 = vunpack.c.0.s8 %v1863
        %v1865 = vlaneseq
        %v1866 = vshrl.u32 %v1865, 7
        %v1867 = vsub.s32 %v1864, %v1866
        %v1868 = vrot.slane %v1854, %v1867
        %v1869 = vcombine.high %v1852, 0.0
        %v1871 = vunpack.c.l.s4 1983009808
        %v1872 = vunpack.c.0.s8 %v1871
        %v1873 = vlaneseq
        %v1874 = vshrl.u32 %v1873, 7
        %v1875 = vsub.s32 %v1872, %v1874
        %v1876 = vrot.slane %v1852, %v1875
        %v1878 = vunpack.c.l.s4 1983009808
        %v1879 = vunpack.c.0.s8 %v1878
        %v1880 = vlaneseq
        %v1881 = vshrl.u32 %v1880, 7
        %v1882 = vsub.s32 %v1879, %v1881
        %v1883 = vrot.slane %v1869, %v1882
        %v1884 = vcombine.low %v1861, %v1876
        %v1885 = vcombine.high %v1861, %v1876
        %v1887 = vunpack.c.l.s4 1934713408
        %v1888 = vunpack.c.0.s8 %v1887
        %v1889 = vlaneseq
        %v1890 = vshrl.u32 %v1889, 7
        %v1891 = vsub.s32 %v1888, %v1890
        %v1892 = vrot.slane %v1884, %v1891
        %v1894 = vunpack.c.l.s4 1934713408
        %v1895 = vunpack.c.0.s8 %v1894
        %v1896 = vlaneseq
        %v1897 = vshrl.u32 %v1896, 7
        %v1898 = vsub.s32 %v1895, %v1897
        %v1899 = vrot.slane %v1885, %v1898
        %v1900 = vcombine.low %v1868, %v1883
        %v1901 = vcombine.high %v1868, %v1883
        %v1903 = vunpack.c.l.s4 1934713408
        %v1904 = vunpack.c.0.s8 %v1903
        %v1905 = vlaneseq
        %v1906 = vshrl.u32 %v1905, 7
        %v1907 = vsub.s32 %v1904, %v1906
        %v1908 = vrot.slane %v1900, %v1907
        %v1910 = vunpack.c.l.s4 1934713408
        %v1911 = vunpack.c.0.s8 %v1910
        %v1912 = vlaneseq
        %v1913 = vshrl.u32 %v1912, 7
        %v1914 = vsub.s32 %v1911, %v1913
        %v1915 = vrot.slane %v1901, %v1914
        %v1916 = vcombine.high %v1892, 0.0
        %v1917 = vcombine.high %v1899, 0.0
        %v1918 = vcombine.high %v1908, 0.0
        %v1919 = vcombine.high %v1915, 0.0
        %v1920 = vcombine.low %v1892, %v1899
        %v1922 = vunpack.c.l.s4 1983009808
        %v1923 = vunpack.c.0.s8 %v1922
        %v1924 = vlaneseq
        %v1925 = vshrl.u32 %v1924, 7
        %v1926 = vsub.s32 %v1923, %v1925
        %v1927 = vrot.slane %v1920, %v1926
        %v1928 = vcombine.low %v1916, %v1917
        %v1930 = vunpack.c.l.s4 1983009808
        %v1931 = vunpack.c.0.s8 %v1930
        %v1932 = vlaneseq
        %v1933 = vshrl.u32 %v1932, 7
        %v1934 = vsub.s32 %v1931, %v1933
        %v1935 = vrot.slane %v1928, %v1934
        %v1936 = vcombine.low %v1908, %v1915
        %v1938 = vunpack.c.l.s4 1983009808
        %v1939 = vunpack.c.0.s8 %v1938
        %v1940 = vlaneseq
        %v1941 = vshrl.u32 %v1940, 7
        %v1942 = vsub.s32 %v1939, %v1941
        %v1943 = vrot.slane %v1936, %v1942
        %v1944 = vcombine.low %v1918, %v1919
        %v1946 = vunpack.c.l.s4 1983009808
        %v1947 = vunpack.c.0.s8 %v1946
        %v1948 = vlaneseq
        %v1949 = vshrl.u32 %v1948, 7
        %v1950 = vsub.s32 %v1947, %v1949
        %v1951 = vrot.slane %v1944, %v1950
        %v1952 = vcombine.low %v1927, %v1935
        %v1954 = vunpack.c.l.s4 1934713408
        %v1955 = vunpack.c.0.s8 %v1954
        %v1956 = vlaneseq
        %v1957 = vshrl.u32 %v1956, 7
        %v1958 = vsub.s32 %v1955, %v1957
        %v1959 = vrot.slane %v1952, %v1958
        %v1960 = vcombine.low %v1943, %v1951
        %v1962 = vunpack.c.l.s4 1934713408
        %v1963 = vunpack.c.0.s8 %v1962
        %v1964 = vlaneseq
        %v1965 = vshrl.u32 %v1964, 7
        %v1966 = vsub.s32 %v1963, %v1965
        %v1967 = vrot.slane %v1960, %v1966
        %v1968 = vcombine.low %v1959, %v1967
        %v1969 = vcombine.high %v1959, %v1967
        %1970 = vrot.lane.b32.xlu0 %v1725, 112
        %v1971 = vpop.permute.xlu0 %1970
        %1972 = vrot.lane.b32.xlu0 %v1852, 112
        %v1973 = vpop.permute.xlu0 %1972
        %v1976 = vcombine.high %v1971, 0.0
        %v1978 = vunpack.c.l.s4 1983009808
        %v1979 = vunpack.c.0.s8 %v1978
        %v1980 = vlaneseq
        %v1981 = vshrl.u32 %v1980, 7
        %v1982 = vsub.s32 %v1979, %v1981
        %v1983 = vrot.slane %v1971, %v1982
        %v1985 = vunpack.c.l.s4 1983009808
        %v1986 = vunpack.c.0.s8 %v1985
        %v1987 = vlaneseq
        %v1988 = vshrl.u32 %v1987, 7
        %v1989 = vsub.s32 %v1986, %v1988
        %v1990 = vrot.slane %v1976, %v1989
        %v1991 = vcombine.high %v1973, 0.0
        %v1993 = vunpack.c.l.s4 1983009808
        %v1994 = vunpack.c.0.s8 %v1993
        %v1995 = vlaneseq
        %v1996 = vshrl.u32 %v1995, 7
        %v1997 = vsub.s32 %v1994, %v1996
        %v1998 = vrot.slane %v1973, %v1997
        %v2000 = vunpack.c.l.s4 1983009808
        %v2001 = vunpack.c.0.s8 %v2000
        %v2002 = vlaneseq
        %v2003 = vshrl.u32 %v2002, 7
        %v2004 = vsub.s32 %v2001, %v2003
        %v2005 = vrot.slane %v1991, %v2004
        %v2006 = vcombine.low %v1983, %v1998
        %v2007 = vcombine.high %v1983, %v1998
        %v2009 = vunpack.c.l.s4 1934713408
        %v2010 = vunpack.c.0.s8 %v2009
        %v2011 = vlaneseq
        %v2012 = vshrl.u32 %v2011, 7
        %v2013 = vsub.s32 %v2010, %v2012
        %v2014 = vrot.slane %v2006, %v2013
        %v2016 = vunpack.c.l.s4 1934713408
        %v2017 = vunpack.c.0.s8 %v2016
        %v2018 = vlaneseq
        %v2019 = vshrl.u32 %v2018, 7
        %v2020 = vsub.s32 %v2017, %v2019
        %v2021 = vrot.slane %v2007, %v2020
        %v2022 = vcombine.low %v1990, %v2005
        %v2023 = vcombine.high %v1990, %v2005
        %v2025 = vunpack.c.l.s4 1934713408
        %v2026 = vunpack.c.0.s8 %v2025
        %v2027 = vlaneseq
        %v2028 = vshrl.u32 %v2027, 7
        %v2029 = vsub.s32 %v2026, %v2028
        %v2030 = vrot.slane %v2022, %v2029
        %v2032 = vunpack.c.l.s4 1934713408
        %v2033 = vunpack.c.0.s8 %v2032
        %v2034 = vlaneseq
        %v2035 = vshrl.u32 %v2034, 7
        %v2036 = vsub.s32 %v2033, %v2035
        %v2037 = vrot.slane %v2023, %v2036
        %v2038 = vcombine.high %v2014, 0.0
        %v2039 = vcombine.high %v2021, 0.0
        %v2040 = vcombine.high %v2030, 0.0
        %v2041 = vcombine.high %v2037, 0.0
        %v2042 = vcombine.low %v2014, %v2021
        %v2044 = vunpack.c.l.s4 1983009808
        %v2045 = vunpack.c.0.s8 %v2044
        %v2046 = vlaneseq
        %v2047 = vshrl.u32 %v2046, 7
        %v2048 = vsub.s32 %v2045, %v2047
        %v2049 = vrot.slane %v2042, %v2048
        %v2050 = vcombine.low %v2038, %v2039
        %v2052 = vunpack.c.l.s4 1983009808
        %v2053 = vunpack.c.0.s8 %v2052
        %v2054 = vlaneseq
        %v2055 = vshrl.u32 %v2054, 7
        %v2056 = vsub.s32 %v2053, %v2055
        %v2057 = vrot.slane %v2050, %v2056
        %v2058 = vcombine.low %v2030, %v2037
        %v2060 = vunpack.c.l.s4 1983009808
        %v2061 = vunpack.c.0.s8 %v2060
        %v2062 = vlaneseq
        %v2063 = vshrl.u32 %v2062, 7
        %v2064 = vsub.s32 %v2061, %v2063
        %v2065 = vrot.slane %v2058, %v2064
        %v2066 = vcombine.low %v2040, %v2041
        %v2068 = vunpack.c.l.s4 1983009808
        %v2069 = vunpack.c.0.s8 %v2068
        %v2070 = vlaneseq
        %v2071 = vshrl.u32 %v2070, 7
        %v2072 = vsub.s32 %v2069, %v2071
        %v2073 = vrot.slane %v2066, %v2072
        %v2074 = vcombine.low %v2049, %v2057
        %v2076 = vunpack.c.l.s4 1934713408
        %v2077 = vunpack.c.0.s8 %v2076
        %v2078 = vlaneseq
        %v2079 = vshrl.u32 %v2078, 7
        %v2080 = vsub.s32 %v2077, %v2079
        %v2081 = vrot.slane %v2074, %v2080
        %v2082 = vcombine.low %v2065, %v2073
        %v2084 = vunpack.c.l.s4 1934713408
        %v2085 = vunpack.c.0.s8 %v2084
        %v2086 = vlaneseq
        %v2087 = vshrl.u32 %v2086, 7
        %v2088 = vsub.s32 %v2085, %v2087
        %v2089 = vrot.slane %v2082, %v2088
        %v2090 = vcombine.low %v2081, %v2089
        %v2091 = vcombine.high %v2081, %v2089
        %v2092 = vpack.c.bf16 %v1848, %v1848
        %v2093 = vpack.c.bf16 %v1849, %v1849
        %v2094 = vpack.c.bf16 %v1968, %v1968
        %v2095 = vpack.c.bf16 %v1969, %v1969
        %v2097 = vsel %vm1194, %v2092, 0
        %v2100 = vsel %vm1194, %v2094, 0
        %2102 = vmatprep.subr.bf16.mxu0 0
        %2103 = vmatpush1.bf16.xpose.msra.mxu0 %v2100
        %2104 = vmatprep.subr.bf16.mxu0 0
        %2105 = vmatpush1.bf16.xpose.msra.mxu0 0
        %2106 = vmatprep.subr.bf16.mxu0 0
        %2107 = vmatpush1.bf16.xpose.msra.mxu0 0
        %2108 = vmatprep.subr.bf16.mxu0 0
        %2109 = vmatpush1.bf16.xpose.msra.mxu0 0
        %2110 = vmatprep.subr.bf16.mxu0 0
        %2111 = vmatpush1.bf16.xpose.msra.mxu0 0
        %2112 = vmatprep.subr.bf16.mxu0 0
        %2113 = vmatpush1.bf16.xpose.msra.mxu0 0
        %2114 = vmatprep.subr.bf16.mxu0 0
        %2115 = vmatpush1.bf16.xpose.msra.mxu0 0
        %2116 = vmatprep.subr.bf16.mxu0 0
        %2117 = vmatpush1.bf16.xpose.msra.mxu0 0
        %2118 = vmatprep.subr.bf16.mxu0 0
        %2119 = vmatpush1.bf16.xpose.msra.mxu0 0
        %2120 = vmatprep.subr.bf16.mxu0 0
        %2121 = vmatpush1.bf16.xpose.msra.mxu0 0
        %2122 = vmatprep.subr.bf16.mxu0 0
        %2123 = vmatpush1.bf16.xpose.msra.mxu0 0
        %2124 = vmatprep.subr.bf16.mxu0 0
        %2125 = vmatpush1.bf16.xpose.msra.mxu0 0
        %2126 = vmatprep.subr.bf16.mxu0 0
        %2127 = vmatpush1.bf16.xpose.msra.mxu0 0
        %2128 = vmatprep.subr.bf16.mxu0 0
        %2129 = vmatpush1.bf16.xpose.msra.mxu0 0
        %2130 = vmatprep.subr.bf16.mxu0 0
        %2131 = vmatpush1.bf16.xpose.msra.mxu0 0
        %2132 = vmatprep.subr.bf16.mxu0 0
        %2133 = vmatpush1.bf16.xpose.msra.mxu0 0
        %2134 = vmatprep.mubr.bf16.mxu0 0
        %2135 = vmatmul.mubr.bf16.gmra.mrb[0].mxu0 %v2097
        %v2136 = vpop.f32.mrb[0].mxu0
        %v2137 = vadd.f32 0.0, %v2136
        %v2138 = vpop.f32.mrb[0].mxu0
        %v2139 = vpop.f32.mrb[0].mxu0
        %v2140 = vpop.f32.mrb[0].mxu0
        %2141 = vdwg.mxu0
        %v2143 = vsel %vm1194, %v2093, 0
        %v2146 = vsel %vm1194, %v2095, 0
        %2148 = vmatprep.subr.bf16.mxu0 0
        %2149 = vmatpush1.bf16.xpose.msra.mxu0 %v2146
        %2150 = vmatprep.subr.bf16.mxu0 0
        %2151 = vmatpush1.bf16.xpose.msra.mxu0 0
        %2152 = vmatprep.subr.bf16.mxu0 0
        %2153 = vmatpush1.bf16.xpose.msra.mxu0 0
        %2154 = vmatprep.subr.bf16.mxu0 0
        %2155 = vmatpush1.bf16.xpose.msra.mxu0 0
        %2156 = vmatprep.subr.bf16.mxu0 0
        %2157 = vmatpush1.bf16.xpose.msra.mxu0 0
        %2158 = vmatprep.subr.bf16.mxu0 0
        %2159 = vmatpush1.bf16.xpose.msra.mxu0 0
        %2160 = vmatprep.subr.bf16.mxu0 0
        %2161 = vmatpush1.bf16.xpose.msra.mxu0 0
        %2162 = vmatprep.subr.bf16.mxu0 0
        %2163 = vmatpush1.bf16.xpose.msra.mxu0 0
        %2164 = vmatprep.subr.bf16.mxu0 0
        %2165 = vmatpush1.bf16.xpose.msra.mxu0 0
        %2166 = vmatprep.subr.bf16.mxu0 0
        %2167 = vmatpush1.bf16.xpose.msra.mxu0 0
        %2168 = vmatprep.subr.bf16.mxu0 0
        %2169 = vmatpush1.bf16.xpose.msra.mxu0 0
        %2170 = vmatprep.subr.bf16.mxu0 0
        %2171 = vmatpush1.bf16.xpose.msra.mxu0 0
        %2172 = vmatprep.subr.bf16.mxu0 0
        %2173 = vmatpush1.bf16.xpose.msra.mxu0 0
        %2174 = vmatprep.subr.bf16.mxu0 0
        %2175 = vmatpush1.bf16.xpose.msra.mxu0 0
        %2176 = vmatprep.subr.bf16.mxu0 0
        %2177 = vmatpush1.bf16.xpose.msra.mxu0 0
        %2178 = vmatprep.subr.bf16.mxu0 0
        %2179 = vmatpush1.bf16.xpose.msra.mxu0 0
        %2180 = vmatprep.mubr.bf16.mxu0 0
        %2181 = vmatmul.mubr.bf16.gmra.mrb[0].mxu0 %v2143
        %v2182 = vpop.f32.mrb[0].mxu0
        %v2183 = vadd.f32 0.0, %v2182
        %v2184 = vpop.f32.mrb[0].mxu0
        %v2185 = vpop.f32.mrb[0].mxu0
        %v2186 = vpop.f32.mrb[0].mxu0
        %2187 = vdwg.mxu0
        %v2188 = vsel %vm1194, %v2137, -inf
        %2189 = vmax.xlane.f32.xlu0 %v2188
        %v2190 = vpop.xlane.xlu0 %2189
        %v2191 = vsel %vm1194, %v2183, -inf
        %2192 = vmax.xlane.f32.xlu0 %v2191
        %v2193 = vpop.xlane.xlu0 %2192
        %v2194 = vsub.f32 %v2137, %v2190
        %v2195 = vsub.f32 %v2183, %v2193
        %v2196 = vmul.f32 %v2194, 1.442695
        %v2197 = vpow.pop %v2196
        %v2198 = vmul.f32 %v2195, 1.442695
        %v2199 = vpow.pop %v2198
        %v2200 = vsel %vm1194, %v2197, 0.0
        %2201 = vadd.xlane.f32.xlu0 %v2200
        %v2202 = vpop.xlane.xlu0 %2201
        %v2203 = vsel %vm1194, %v2199, 0.0
        %2204 = vadd.xlane.f32.xlu0 %v2203
        %v2205 = vpop.xlane.xlu0 %2204
        %v2206 = vrcp.pop %v2202
        %v2207 = vmul.f32 %v2197, %v2206
        %v2208 = vrcp.pop %v2205
        %v2209 = vmul.f32 %v2199, %v2208
        %v2210 = vpack.c.bf16 %v2207, %v2207
        %v2211 = vpack.c.bf16 %v2209, %v2209
        %v2212 = vpack.c.bf16 %v2090, %v2090
        %v2213 = vpack.c.bf16 %v2091, %v2091
        %v2215 = vsel %vm1194, %v2210, 0
        %v2218 = vsel %vm1316, %v2212, 0
        %2220 = vmatprep.subr.bf16.mxu0 0
        %2221 = vmatpush1.bf16.msra.mxu0 %v2218
        %2222 = vmatprep.subr.bf16.mxu0 0
        %2223 = vmatpush1.bf16.msra.mxu0 0
        %2224 = vmatprep.subr.bf16.mxu0 0
        %2225 = vmatpush1.bf16.msra.mxu0 0
        %2226 = vmatprep.subr.bf16.mxu0 0
        %2227 = vmatpush1.bf16.msra.mxu0 0
        %2228 = vmatprep.subr.bf16.mxu0 0
        %2229 = vmatpush1.bf16.msra.mxu0 0
        %2230 = vmatprep.subr.bf16.mxu0 0
        %2231 = vmatpush1.bf16.msra.mxu0 0
        %2232 = vmatprep.subr.bf16.mxu0 0
        %2233 = vmatpush1.bf16.msra.mxu0 0
        %2234 = vmatprep.subr.bf16.mxu0 0
        %2235 = vmatpush1.bf16.msra.mxu0 0
        %2236 = vmatprep.subr.bf16.mxu0 0
        %2237 = vmatpush1.bf16.msra.mxu0 0
        %2238 = vmatprep.subr.bf16.mxu0 0
        %2239 = vmatpush1.bf16.msra.mxu0 0
        %2240 = vmatprep.subr.bf16.mxu0 0
        %2241 = vmatpush1.bf16.msra.mxu0 0
        %2242 = vmatprep.subr.bf16.mxu0 0
        %2243 = vmatpush1.bf16.msra.mxu0 0
        %2244 = vmatprep.subr.bf16.mxu0 0
        %2245 = vmatpush1.bf16.msra.mxu0 0
        %2246 = vmatprep.subr.bf16.mxu0 0
        %2247 = vmatpush1.bf16.msra.mxu0 0
        %2248 = vmatprep.subr.bf16.mxu0 0
        %2249 = vmatpush1.bf16.msra.mxu0 0
        %2250 = vmatprep.subr.bf16.mxu0 0
        %2251 = vmatpush1.bf16.msra.mxu0 0
        %2252 = vmatprep.mubr.bf16.mxu0 0
        %2253 = vmatmul.mubr.bf16.gmra.mrb[0].mxu0 %v2215
        %v2254 = vpop.f32.mrb[0].mxu0
        %v2255 = vadd.f32 0.0, %v2254
        %v2256 = vpop.f32.mrb[0].mxu0
        %v2257 = vpop.f32.mrb[0].mxu0
        %v2258 = vpop.f32.mrb[0].mxu0
        %2259 = vdwg.mxu0
        %v2261 = vsel %vm1194, %v2211, 0
        %v2264 = vsel %vm1316, %v2213, 0
        %2266 = vmatprep.subr.bf16.mxu0 0
        %2267 = vmatpush1.bf16.msra.mxu0 %v2264
        %2268 = vmatprep.subr.bf16.mxu0 0
        %2269 = vmatpush1.bf16.msra.mxu0 0
        %2270 = vmatprep.subr.bf16.mxu0 0
        %2271 = vmatpush1.bf16.msra.mxu0 0
        %2272 = vmatprep.subr.bf16.mxu0 0
        %2273 = vmatpush1.bf16.msra.mxu0 0
        %2274 = vmatprep.subr.bf16.mxu0 0
        %2275 = vmatpush1.bf16.msra.mxu0 0
        %2276 = vmatprep.subr.bf16.mxu0 0
        %2277 = vmatpush1.bf16.msra.mxu0 0
        %2278 = vmatprep.subr.bf16.mxu0 0
        %2279 = vmatpush1.bf16.msra.mxu0 0
        %2280 = vmatprep.subr.bf16.mxu0 0
        %2281 = vmatpush1.bf16.msra.mxu0 0
        %2282 = vmatprep.subr.bf16.mxu0 0
        %2283 = vmatpush1.bf16.msra.mxu0 0
        %2284 = vmatprep.subr.bf16.mxu0 0
        %2285 = vmatpush1.bf16.msra.mxu0 0
        %2286 = vmatprep.subr.bf16.mxu0 0
        %2287 = vmatpush1.bf16.msra.mxu0 0
        %2288 = vmatprep.subr.bf16.mxu0 0
        %2289 = vmatpush1.bf16.msra.mxu0 0
        %2290 = vmatprep.subr.bf16.mxu0 0
        %2291 = vmatpush1.bf16.msra.mxu0 0
        %2292 = vmatprep.subr.bf16.mxu0 0
        %2293 = vmatpush1.bf16.msra.mxu0 0
        %2294 = vmatprep.subr.bf16.mxu0 0
        %2295 = vmatpush1.bf16.msra.mxu0 0
        %2296 = vmatprep.subr.bf16.mxu0 0
        %2297 = vmatpush1.bf16.msra.mxu0 0
        %2298 = vmatprep.mubr.bf16.mxu0 0
        %2299 = vmatmul.mubr.bf16.gmra.mrb[0].mxu0 %v2261
        %v2300 = vpop.f32.mrb[0].mxu0
        %v2301 = vadd.f32 0.0, %v2300
        %v2302 = vpop.f32.mrb[0].mxu0
        %v2303 = vpop.f32.mrb[0].mxu0
        %v2304 = vpop.f32.mrb[0].mxu0
        %2305 = vdwg.mxu0
        %v2306 = vcombine.high %v2255, 0.0
        %v2308 = vunpack.c.l.s4 1983009808
        %v2309 = vunpack.c.0.s8 %v2308
        %v2310 = vlaneseq
        %v2311 = vshrl.u32 %v2310, 7
        %v2312 = vsub.s32 %v2309, %v2311
        %v2313 = vrot.slane %v2255, %v2312
        %v2315 = vunpack.c.l.s4 1983009808
        %v2316 = vunpack.c.0.s8 %v2315
        %v2317 = vlaneseq
        %v2318 = vshrl.u32 %v2317, 7
        %v2319 = vsub.s32 %v2316, %v2318
        %v2320 = vrot.slane %v2306, %v2319
        %v2321 = vcombine.high %v2301, 0.0
        %v2323 = vunpack.c.l.s4 1983009808
        %v2324 = vunpack.c.0.s8 %v2323
        %v2325 = vlaneseq
        %v2326 = vshrl.u32 %v2325, 7
        %v2327 = vsub.s32 %v2324, %v2326
        %v2328 = vrot.slane %v2301, %v2327
        %v2330 = vunpack.c.l.s4 1983009808
        %v2331 = vunpack.c.0.s8 %v2330
        %v2332 = vlaneseq
        %v2333 = vshrl.u32 %v2332, 7
        %v2334 = vsub.s32 %v2331, %v2333
        %v2335 = vrot.slane %v2321, %v2334
        %v2336 = vcombine.low %v2313, %v2328
        %v2337 = vcombine.high %v2313, %v2328
        %v2339 = vunpack.c.l.s4 1934713408
        %v2340 = vunpack.c.0.s8 %v2339
        %v2341 = vlaneseq
        %v2342 = vshrl.u32 %v2341, 7
        %v2343 = vsub.s32 %v2340, %v2342
        %v2344 = vrot.slane %v2336, %v2343
        %v2346 = vunpack.c.l.s4 1934713408
        %v2347 = vunpack.c.0.s8 %v2346
        %v2348 = vlaneseq
        %v2349 = vshrl.u32 %v2348, 7
        %v2350 = vsub.s32 %v2347, %v2349
        %v2351 = vrot.slane %v2337, %v2350
        %v2352 = vcombine.low %v2320, %v2335
        %v2353 = vcombine.high %v2320, %v2335
        %v2355 = vunpack.c.l.s4 1934713408
        %v2356 = vunpack.c.0.s8 %v2355
        %v2357 = vlaneseq
        %v2358 = vshrl.u32 %v2357, 7
        %v2359 = vsub.s32 %v2356, %v2358
        %v2360 = vrot.slane %v2352, %v2359
        %v2362 = vunpack.c.l.s4 1934713408
        %v2363 = vunpack.c.0.s8 %v2362
        %v2364 = vlaneseq
        %v2365 = vshrl.u32 %v2364, 7
        %v2366 = vsub.s32 %v2363, %v2365
        %v2367 = vrot.slane %v2353, %v2366
        %v2368 = vcombine.high %v2344, 0.0
        %v2369 = vcombine.high %v2351, 0.0
        %v2370 = vcombine.high %v2360, 0.0
        %v2371 = vcombine.high %v2367, 0.0
        %v2372 = vcombine.low %v2344, %v2351
        %v2374 = vunpack.c.l.s4 1983009808
        %v2375 = vunpack.c.0.s8 %v2374
        %v2376 = vlaneseq
        %v2377 = vshrl.u32 %v2376, 7
        %v2378 = vsub.s32 %v2375, %v2377
        %v2379 = vrot.slane %v2372, %v2378
        %v2380 = vcombine.low %v2368, %v2369
        %v2382 = vunpack.c.l.s4 1983009808
        %v2383 = vunpack.c.0.s8 %v2382
        %v2384 = vlaneseq
        %v2385 = vshrl.u32 %v2384, 7
        %v2386 = vsub.s32 %v2383, %v2385
        %v2387 = vrot.slane %v2380, %v2386
        %v2388 = vcombine.low %v2360, %v2367
        %v2390 = vunpack.c.l.s4 1983009808
        %v2391 = vunpack.c.0.s8 %v2390
        %v2392 = vlaneseq
        %v2393 = vshrl.u32 %v2392, 7
        %v2394 = vsub.s32 %v2391, %v2393
        %v2395 = vrot.slane %v2388, %v2394
        %v2396 = vcombine.low %v2370, %v2371
        %v2398 = vunpack.c.l.s4 1983009808
        %v2399 = vunpack.c.0.s8 %v2398
        %v2400 = vlaneseq
        %v2401 = vshrl.u32 %v2400, 7
        %v2402 = vsub.s32 %v2399, %v2401
        %v2403 = vrot.slane %v2396, %v2402
        %v2404 = vcombine.low %v2379, %v2387
        %v2406 = vunpack.c.l.s4 1934713408
        %v2407 = vunpack.c.0.s8 %v2406
        %v2408 = vlaneseq
        %v2409 = vshrl.u32 %v2408, 7
        %v2410 = vsub.s32 %v2407, %v2409
        %v2411 = vrot.slane %v2404, %v2410
        %v2412 = vcombine.low %v2395, %v2403
        %v2414 = vunpack.c.l.s4 1934713408
        %v2415 = vunpack.c.0.s8 %v2414
        %v2416 = vlaneseq
        %v2417 = vshrl.u32 %v2416, 7
        %v2418 = vsub.s32 %v2415, %v2417
        %v2419 = vrot.slane %v2412, %v2418
        %v2420 = vcombine.low %v2411, %v2419
        %v2421 = vcombine.high %v2411, %v2419
        %2423 = vrot.lane.b32.xlu0 %v2421, 8
        %v2424 = vpop.permute.xlu0 %2423
        %v2426 = vsel %vm1194, %v2420, %v2424
        %v2427 = vpack.c.bf16 %v2426, %v2426
        %v2428 = vld [vmem:[%s9] sm:$0xf]
        %v2429 = vld [vmem:[%s9 + $0x4] sm:$0xf]
        %v2432 = vunpack.c.l.b16 %v2428
        %v2433 = vunpack.c.l.b16 %v2429
        %v2434 = vpack.c.b16 %v2433, %v2432
        %v2437 = vsel %vm1536, %v2427, 0
        %2439 = vmatprep.subr.bf16.mxu0 0
        %2440 = vmatpush1.bf16.msra.mxu0 %v2434
        %2441 = vmatprep.subr.bf16.mxu0 0
        %2442 = vmatpush1.bf16.msra.mxu0 0
        %2443 = vmatprep.subr.bf16.mxu0 0
        %2444 = vmatpush1.bf16.msra.mxu0 0
        %2445 = vmatprep.subr.bf16.mxu0 0
        %2446 = vmatpush1.bf16.msra.mxu0 0
        %2447 = vmatprep.subr.bf16.mxu0 0
        %2448 = vmatpush1.bf16.msra.mxu0 0
        %2449 = vmatprep.subr.bf16.mxu0 0
        %2450 = vmatpush1.bf16.msra.mxu0 0
        %2451 = vmatprep.subr.bf16.mxu0 0
        %2452 = vmatpush1.bf16.msra.mxu0 0
        %2453 = vmatprep.subr.bf16.mxu0 0
        %2454 = vmatpush1.bf16.msra.mxu0 0
        %2455 = vmatprep.subr.bf16.mxu0 0
        %2456 = vmatpush1.bf16.msra.mxu0 0
        %2457 = vmatprep.subr.bf16.mxu0 0
        %2458 = vmatpush1.bf16.msra.mxu0 0
        %2459 = vmatprep.subr.bf16.mxu0 0
        %2460 = vmatpush1.bf16.msra.mxu0 0
        %2461 = vmatprep.subr.bf16.mxu0 0
        %2462 = vmatpush1.bf16.msra.mxu0 0
        %2463 = vmatprep.subr.bf16.mxu0 0
        %2464 = vmatpush1.bf16.msra.mxu0 0
        %2465 = vmatprep.subr.bf16.mxu0 0
        %2466 = vmatpush1.bf16.msra.mxu0 0
        %2467 = vmatprep.subr.bf16.mxu0 0
        %2468 = vmatpush1.bf16.msra.mxu0 0
        %2469 = vmatprep.subr.bf16.mxu0 0
        %2470 = vmatpush1.bf16.msra.mxu0 0
        %2471 = vmatprep.mubr.bf16.mxu0 0
        %2472 = vmatmul.mubr.bf16.gmra.mrb[0].mxu0 %v2437
        %v2473 = vpop.f32.mrb[0].mxu0
        %v2474 = vadd.f32 %v1609, %v2473
        %v2475 = vpop.f32.mrb[0].mxu0
        %v2476 = vpop.f32.mrb[0].mxu0
        %v2477 = vpop.f32.mrb[0].mxu0
        %2478 = vdwg.mxu0
        %v2479 = vsel %vm724, %v2474, 0.0
        %2480 = vadd.xlane.f32.xlu0 %v2479
        %v2481 = vpop.xlane.xlu0 %2480
        %v2482 = vmul.f32 %v2481, %v1583
        %v2483 = vsub.f32 %v2474, %v2482
        %v2484 = vmul.f32 %v2483, %v2483
        %v2485 = vsel %vm724, %v2484, 0.0
        %2486 = vadd.xlane.f32.xlu0 %v2485
        %v2487 = vpop.xlane.xlu0 %2486
        %v2488 = vmul.f32 %v2487, %v1583
        %v2489 = vadd.f32 %v2488, 1e-06
        %v2490 = vrsqrt.pop %v2489
        %v2491 = vmul.f32 %v2483, %v2490
        %v2492 = vld [vmem:[%s10] sm:$0x1]
        %v2494 = vlaneseq
        %v2495 = vshrl.u32 %v2494, 7
        %v2496 = vsub.s32 0, %v2495
        %v2497 = vrot.slane %v2492, %v2496
        %v2499 = vmul.f32 %v2491, %v2497
        %v2500 = vld [vmem:[%s11] sm:$0x1]
        %v2502 = vlaneseq
        %v2503 = vshrl.u32 %v2502, 7
        %v2504 = vsub.s32 0, %v2503
        %v2505 = vrot.slane %v2500, %v2504
        %v2507 = vadd.f32 %v2499, %v2505
        %v2508 = vpack.c.bf16 %v2507, %v2507
        %v2509 = vld [vmem:[%s12] sm:$0xf]
        %v2510 = vld [vmem:[%s12 + $0x4] sm:$0xf]
        %v2511 = vld [vmem:[%s12 + $0x8] sm:$0xf]
        %v2512 = vld [vmem:[%s12 + $0xc] sm:$0xf]
        %v2513 = vld [vmem:[%s13] sm:$0x1]
        %v2515 = vlaneseq
        %v2516 = vshrl.u32 %v2515, 7
        %v2517 = vsub.s32 0, %v2516
        %v2518 = vrot.slane %v2513, %v2517
        %v2524 = vunpack.c.l.b16 %v2509
        %v2525 = vunpack.c.l.b16 %v2510
        %v2526 = vunpack.c.l.b16 %v2511
        %v2527 = vunpack.c.l.b16 %v2512
        %v2528 = vpack.c.b16 %v2525, %v2524
        %v2529 = vpack.c.b16 %v2527, %v2526
        %v2533 = vsel %vm724, %v2508, 0
        %2535 = vmatprep.subr.bf16.mxu0 0
        %2536 = vmatpush1.bf16.msra.mxu0 %v2528
        %2537 = vmatprep.subr.bf16.mxu0 0
        %2538 = vmatpush1.bf16.msra.mxu0 %v2529
        %2539 = vmatprep.subr.bf16.mxu0 0
        %2540 = vmatpush1.bf16.msra.mxu0 0
        %2541 = vmatprep.subr.bf16.mxu0 0
        %2542 = vmatpush1.bf16.msra.mxu0 0
        %2543 = vmatprep.subr.bf16.mxu0 0
        %2544 = vmatpush1.bf16.msra.mxu0 0
        %2545 = vmatprep.subr.bf16.mxu0 0
        %2546 = vmatpush1.bf16.msra.mxu0 0
        %2547 = vmatprep.subr.bf16.mxu0 0
        %2548 = vmatpush1.bf16.msra.mxu0 0
        %2549 = vmatprep.subr.bf16.mxu0 0
        %2550 = vmatpush1.bf16.msra.mxu0 0
        %2551 = vmatprep.subr.bf16.mxu0 0
        %2552 = vmatpush1.bf16.msra.mxu0 0
        %2553 = vmatprep.subr.bf16.mxu0 0
        %2554 = vmatpush1.bf16.msra.mxu0 0
        %2555 = vmatprep.subr.bf16.mxu0 0
        %2556 = vmatpush1.bf16.msra.mxu0 0
        %2557 = vmatprep.subr.bf16.mxu0 0
        %2558 = vmatpush1.bf16.msra.mxu0 0
        %2559 = vmatprep.subr.bf16.mxu0 0
        %2560 = vmatpush1.bf16.msra.mxu0 0
        %2561 = vmatprep.subr.bf16.mxu0 0
        %2562 = vmatpush1.bf16.msra.mxu0 0
        %2563 = vmatprep.subr.bf16.mxu0 0
        %2564 = vmatpush1.bf16.msra.mxu0 0
        %2565 = vmatprep.subr.bf16.mxu0 0
        %2566 = vmatpush1.bf16.msra.mxu0 0
        %2567 = vmatprep.mubr.bf16.mxu0 0
        %2568 = vmatmul.mubr.bf16.gmra.mrb[0].mxu0 %v2533
        %v2569 = vpop.f32.mrb[0].mxu0
        %v2570 = vadd.f32 %v2518, %v2569
        %v2571 = vpop.f32.mrb[0].mxu0
        %v2572 = vpop.f32.mrb[0].mxu0
        %v2573 = vpop.f32.mrb[0].mxu0
        %2574 = vdwg.mxu0
        %v2575 = vmax.f32 %v2570, 0.0
        %v2576 = vpack.c.bf16 %v2575, %v2575
        %v2577 = vld [vmem:[%s14] sm:$0xf]
        %v2578 = vld [vmem:[%s14 + $0x4] sm:$0xf]
        %v2579 = vld [vmem:[%s14 + $0x8] sm:$0xf]
        %v2580 = vld [vmem:[%s14 + $0xc] sm:$0xf]
        %v2581 = vld [vmem:[%s14 + $0x10] sm:$0xf]
        %v2582 = vld [vmem:[%s14 + $0x14] sm:$0xf]
        %v2583 = vld [vmem:[%s14 + $0x18] sm:$0xf]
        %v2584 = vld [vmem:[%s14 + $0x1c] sm:$0xf]
        %v2585 = vld [vmem:[%s15] sm:$0x1]
        %v2587 = vlaneseq
        %v2588 = vshrl.u32 %v2587, 7
        %v2589 = vsub.s32 0, %v2588
        %v2590 = vrot.slane %v2585, %v2589
        %v2600 = vunpack.c.l.b16 %v2577
        %v2601 = vunpack.c.l.b16 %v2578
        %v2602 = vunpack.c.l.b16 %v2579
        %v2603 = vunpack.c.l.b16 %v2580
        %v2604 = vunpack.c.l.b16 %v2581
        %v2605 = vunpack.c.l.b16 %v2582
        %v2606 = vunpack.c.l.b16 %v2583
        %v2607 = vunpack.c.l.b16 %v2584
        %v2608 = vpack.c.b16 %v2601, %v2600
        %v2609 = vpack.c.b16 %v2603, %v2602
        %v2610 = vpack.c.b16 %v2605, %v2604
        %v2611 = vpack.c.b16 %v2607, %v2606
        %vm2616 = vcmask 523264
        %v2618 = vsel %vm2616, %v2576, 0
        %2620 = vmatprep.subr.bf16.mxu0 0
        %2621 = vmatpush1.bf16.msra.mxu0 %v2608
        %2622 = vmatprep.subr.bf16.mxu0 0
        %2623 = vmatpush1.bf16.msra.mxu0 %v2609
        %2624 = vmatprep.subr.bf16.mxu0 0
        %2625 = vmatpush1.bf16.msra.mxu0 %v2610
        %2626 = vmatprep.subr.bf16.mxu0 0
        %2627 = vmatpush1.bf16.msra.mxu0 %v2611
        %2628 = vmatprep.subr.bf16.mxu0 0
        %2629 = vmatpush1.bf16.msra.mxu0 0
        %2630 = vmatprep.subr.bf16.mxu0 0
        %2631 = vmatpush1.bf16.msra.mxu0 0
        %2632 = vmatprep.subr.bf16.mxu0 0
        %2633 = vmatpush1.bf16.msra.mxu0 0
        %2634 = vmatprep.subr.bf16.mxu0 0
        %2635 = vmatpush1.bf16.msra.mxu0 0
        %2636 = vmatprep.subr.bf16.mxu0 0
        %2637 = vmatpush1.bf16.msra.mxu0 0
        %2638 = vmatprep.subr.bf16.mxu0 0
        %2639 = vmatpush1.bf16.msra.mxu0 0
        %2640 = vmatprep.subr.bf16.mxu0 0
        %2641 = vmatpush1.bf16.msra.mxu0 0
        %2642 = vmatprep.subr.bf16.mxu0 0
        %2643 = vmatpush1.bf16.msra.mxu0 0
        %2644 = vmatprep.subr.bf16.mxu0 0
        %2645 = vmatpush1.bf16.msra.mxu0 0
        %2646 = vmatprep.subr.bf16.mxu0 0
        %2647 = vmatpush1.bf16.msra.mxu0 0
        %2648 = vmatprep.subr.bf16.mxu0 0
        %2649 = vmatpush1.bf16.msra.mxu0 0
        %2650 = vmatprep.subr.bf16.mxu0 0
        %2651 = vmatpush1.bf16.msra.mxu0 0
        %2652 = vmatprep.mubr.bf16.mxu0 0
        %2653 = vmatmul.mubr.bf16.gmra.mrb[0].mxu0 %v2618
        %v2654 = vpop.f32.mrb[0].mxu0
        %v2655 = vadd.f32 %v2590, %v2654
        %v2656 = vpop.f32.mrb[0].mxu0
        %v2657 = vpop.f32.mrb[0].mxu0
        %v2658 = vpop.f32.mrb[0].mxu0
        %2659 = vdwg.mxu0
        %v2660 = vadd.f32 %v2655, %v2507
        %v2661 = vsel %vm724, %v2660, 0.0
        %2662 = vadd.xlane.f32.xlu0 %v2661
        %v2663 = vpop.xlane.xlu0 %2662
        %v2664 = vmul.f32 %v2663, %v1583
        %v2665 = vsub.f32 %v2660, %v2664
        %v2666 = vmul.f32 %v2665, %v2665
        %v2667 = vsel %vm724, %v2666, 0.0
        %2668 = vadd.xlane.f32.xlu0 %v2667
        %v2669 = vpop.xlane.xlu0 %2668
        %v2670 = vmul.f32 %v2669, %v1583
        %v2671 = vadd.f32 %v2670, 1e-06
        %v2672 = vrsqrt.pop %v2671
        %v2673 = vmul.f32 %v2665, %v2672
        %v2674 = vld [vmem:[%s16] sm:$0x1]
        %v2676 = vlaneseq
        %v2677 = vshrl.u32 %v2676, 7
        %v2678 = vsub.s32 0, %v2677
        %v2679 = vrot.slane %v2674, %v2678
        %v2681 = vmul.f32 %v2673, %v2679
        %v2682 = vld [vmem:[%s17] sm:$0x1]
        %v2684 = vlaneseq
        %v2685 = vshrl.u32 %v2684, 7
        %v2686 = vsub.s32 0, %v2685
        %v2687 = vrot.slane %v2682, %v2686
        %v2689 = vadd.f32 %v2681, %v2687
        %2690 = vst.msk [vmem:[%s670] sm:$0xff] %vm724, %v2689
        %2691 = vst.msk [vmem:[%s677] sm:$0xff] %vm1194, %v1306
        %2692 = vst.msk [vmem:[%s677 + $0x8] sm:$0xff] %vm1194, %v1308
        %2693 = vst.msk [vmem:[%s684] sm:$0xff] %vm1194, %v2207
        %2694 = vst.msk [vmem:[%s684 + $0x8] sm:$0xff] %vm1194, %v2209
        %s2695 = sand.u32 %s449, 1
        %s2696 = scalar_lea.sflag [#allocation4], %s2695
        %s2697 = sand.u32 %s449, 1
        %s2698 = smul.addr %s2697, 8
        %s2699 = scalar_lea.vmem [#allocation5], %s2698
        %s2700 = sand.u32 %s39, 1
        %s2701 = scalar_lea.sflag [#allocation7], %s2700
        %s2702 = sand.u32 %s477, 1
        %s2703 = smul.addr %s2702, 16
        %s2704 = scalar_lea.vmem [#allocation6], %s2703
        %s2705 = sand.u32 %s39, 1
        %s2706 = scalar_lea.sflag [#allocation7], %s2705
        %s2707 = sand.u32 %s505, 1
        %s2708 = smul.addr %s2707, 16
        %s2709 = scalar_lea.vmem [#allocation8], %s2708
        // Predicated region
        $region97: #{tpu_custom_call.1} parent=91 // pred_check
          %p2710 = pneg %p459
        $region98: #{tpu_custom_call.1} parent=91 // pred_check_branch
          %2712 = sbr.rel (%p2710) target = $region100
        $region99: #{tpu_custom_call.1} parent=91 // pred_region
          %s2714 = ssub.s32 128, 128
          %2715 = vsyncadd %s2696, %s2714
          %s2716 = sadd.s32 %s44, %s43
          %s2717 = smul.addr %s2716, 128
          %s2718 = scalar_lea.hbm %s18, %s2717
          %s2720 = sshll.u32 %s2699, 4
          %s2721 = int_to_ptr.vmem [resolvable:$true] %s2720
          %2723 = dma.vmem_to_hbm [thread:$0]  %s2721, 128, %s2718, %s2696
        $region100: #{tpu_custom_call.1} parent=91 // pred_fallthru
          _
        // Predicated region
        $region101: #{tpu_custom_call.1} parent=91 // pred_check
          %p2724 = pneg %p487
        $region102: #{tpu_custom_call.1} parent=91 // pred_check_branch
          %2726 = sbr.rel (%p2724) target = $region104
        $region103: #{tpu_custom_call.1} parent=91 // pred_region
          %s2728 = ssub.s32 256, 256
          %2729 = vsyncadd %s2701, %s2728
          %s2730 = smul.addr %s43, 2
          %s2731 = sadd.s32 %s44, %s2730
          %s2732 = smul.addr %s2731, 128
          %s2733 = scalar_lea.hbm %s19, %s2732
          %s2734 = sshll.u32 %s2704, 4
          %s2735 = int_to_ptr.vmem [resolvable:$true] %s2734
          %2740 = dma.vmem_to_hbm [thread:$0]  %s2735, 256, %s2733, %s2701, 128, 128, 8
        $region104: #{tpu_custom_call.1} parent=91 // pred_fallthru
          _
        // Predicated region
        $region105: #{tpu_custom_call.1} parent=91 // pred_check
          %p2741 = pneg %p515
        $region106: #{tpu_custom_call.1} parent=91 // pred_check_branch
          %2743 = sbr.rel (%p2741) target = $region108
        $region107: #{tpu_custom_call.1} parent=91 // pred_region
          %s2745 = ssub.s32 256, 256
          %2746 = vsyncadd %s2706, %s2745
          %s2747 = smul.addr %s43, 2
          %s2748 = sadd.s32 %s44, %s2747
          %s2749 = smul.addr %s2748, 128
          %s2750 = scalar_lea.hbm %s20, %s2749
          %s2751 = sshll.u32 %s2709, 4
          %s2752 = int_to_ptr.vmem [resolvable:$true] %s2751
          %2757 = dma.vmem_to_hbm [thread:$0]  %s2752, 256, %s2750, %s2706, 128, 128, 8
        $region108: #{tpu_custom_call.1} parent=91 // pred_fallthru
          _
      $region92: #{tpu_custom_call.1} parent=5 // pred_fallthru
        _
      %p2758 = scmp.le.s32.totalorder 2, %s34
      // Predicated region
      $region109: #{tpu_custom_call.1} parent=5 // pred_check
        %p2759 = pneg %p2758
      $region110: #{tpu_custom_call.1} parent=5 // pred_check_branch
        %2761 = sbr.rel (%p2759) target = $region112
      $region111: #{tpu_custom_call.1} parent=5 // pred_region
        %s2762 = ssub.s32 %s34, 2
        // Predicated region
        $region113: #{tpu_custom_call.1} parent=111 // pred_check
          %p2763 = pneg %p465
        $region114: #{tpu_custom_call.1} parent=111 // pred_check_branch
          %2765 = sbr.rel (%p2763) target = $region116
        $region115: #{tpu_custom_call.1} parent=111 // pred_region
          %s2766 = sand.u32 %s450, 1
          %s2767 = scalar_lea.sflag [#allocation4], %s2766
          %s2768 = sand.u32 %s450, 1
          %s2769 = smul.addr %s2768, 8
          %s2770 = scalar_lea.vmem [#allocation5], %s2769
          %2771 = dma.done %s2767, 128
        $region116: #{tpu_custom_call.1} parent=111 // pred_fallthru
          _
        // Predicated region
        $region117: #{tpu_custom_call.1} parent=111 // pred_check
          %p2772 = pneg %p493
        $region118: #{tpu_custom_call.1} parent=111 // pred_check_branch
          %2774 = sbr.rel (%p2772) target = $region120
        $region119: #{tpu_custom_call.1} parent=111 // pred_region
          %s2775 = sand.u32 %s40, 1
          %s2776 = scalar_lea.sflag [#allocation7], %s2775
          %s2777 = sand.u32 %s478, 1
          %s2778 = smul.addr %s2777, 16
          %s2779 = scalar_lea.vmem [#allocation6], %s2778
          %2780 = dma.done %s2776, 256
        $region120: #{tpu_custom_call.1} parent=111 // pred_fallthru
          _
        // Predicated region
        $region121: #{tpu_custom_call.1} parent=111 // pred_check
          %p2781 = pneg %p521
        $region122: #{tpu_custom_call.1} parent=111 // pred_check_branch
          %2783 = sbr.rel (%p2781) target = $region124
        $region123: #{tpu_custom_call.1} parent=111 // pred_region
          %s2784 = sand.u32 %s40, 1
          %s2785 = scalar_lea.sflag [#allocation7], %s2784
          %s2786 = sand.u32 %s506, 1
          %s2787 = smul.addr %s2786, 16
          %s2788 = scalar_lea.vmem [#allocation8], %s2787
          %2789 = dma.done %s2785, 256
        $region124: #{tpu_custom_call.1} parent=111 // pred_fallthru
          _
      $region112: #{tpu_custom_call.1} parent=5 // pred_fallthru
        _
    $region6: #{tpu_custom_call.1} parent=1 // loop_footer
      %s38 = sadd.s32 1, %s34
    $region7: #{tpu_custom_call.1} parent=1 // loop_footer_branch
      %33 = sbr.rel target = $region3
    $region8: #{tpu_custom_call.1} parent=1 // loop_exit
      _
    %2790 = vsyncpa [#allocation3], 1
    %s2791 = scalar_lea.sflag [#allocation3], 1
    %2792 = vsyncpa %s2791, 1
    %2793 = vsyncpa [#allocation4], 1
    %s2794 = scalar_lea.sflag [#allocation4], 1
    %2795 = vsyncpa %s2794, 1
    %2796 = vsyncpa [#allocation7], 1
    %s2797 = scalar_lea.sflag [#allocation7], 1
    %2798 = vsyncpa %s2797, 1

</llo_original>
